<compile_context>
chip_gen: v6e
topology: v6e:2x2x1
jax: 0.10.0
libtpu: 0.0.40
codegen_flags: <defaults>
</compile_context>

<pallas_src>
import functools

import jax
import jax.numpy as jnp
from jax.experimental import pallas as pl
from jax.experimental.pallas import tpu as pltpu

n_embd = 256       # module-level constant from wiki.py
block_size = 256   # causal-mask capacity (T <= block_size)


def _attention_math(x_bf, w_qkv_bf, w_proj_bf, b_proj_row, *, num_heads, head_size):
    """Causal MHA + output projection for one (T, C) sequence.

    Pure jnp/lax ops only, so the identical code runs inside the Pallas kernel
    (Mosaic) and inside the pure-JAX reference (via jax.vmap).  Matmuls take
    bf16 inputs and accumulate in f32; mask/softmax math stays in f32.
    """
    H, Hs = num_heads, head_size
    D = H * Hs
    T = x_bf.shape[0]
    C = w_proj_bf.shape[1]

    # ---- QKV projection: one wide (T,C)@(C,3D) MXU matmul, f32 accumulate ----
    qkv = jnp.dot(x_bf, w_qkv_bf, preferred_element_type=jnp.float32)     # (T,3D)

    # Hoisted full-slab scale fold + bf16 casts (one 256-lane pass per slab).
    scale = jnp.float32(Hs ** -0.5)
    q_bf = (qkv[:, :D] * scale).astype(jnp.bfloat16)                      # (T,D)
    k_bf = qkv[:, D:2 * D].astype(jnp.bfloat16)                           # (T,D)
    v_bf = qkv[:, 2 * D:3 * D].astype(jnp.bfloat16)                       # (T,D)

    # Causal mask as a finite additive bias (no -inf/NaN corner cases).
    row = jax.lax.broadcasted_iota(jnp.int32, (T, T), 0)
    col = jax.lax.broadcasted_iota(jnp.int32, (T, T), 1)
    mask_bias = jnp.where(col <= row, jnp.float32(0.0), jnp.float32(-1e30))

    nt = (((1,), (1,)), ((), ()))   # contract last dims: q @ k^T w/o transpose
    nn = (((1,), (0,)), ((), ()))   # plain matmul

    out = jnp.zeros((T, C), jnp.float32)
    for h in range(H):              # H = 4, statically unrolled
        sl = slice(h * Hs, (h + 1) * Hs)
        s = jax.lax.dot_general(q_bf[:, sl], k_bf[:, sl], nt,
                                preferred_element_type=jnp.float32)       # (T,T)
        s = s + mask_bias
        m = jnp.max(s, axis=-1, keepdims=True)
        p = jnp.exp(s - m)                                                # f32
        l = jnp.sum(p, axis=-1, keepdims=True)
        # TODO(synk): attention-weight dropout omitted (eval-mode identity).
        acc = jax.lax.dot_general(p.astype(jnp.bfloat16), v_bf[:, sl], nn,
                                  preferred_element_type=jnp.float32)     # (T,Hs)
        # Deferred softmax normalization: T*Hs multiplies instead of T*T.
        head = (acc / l).astype(jnp.bfloat16)
        # Per-head projection accumulation: no concat, bounded live ranges.
        out = out + jax.lax.dot_general(head, w_proj_bf[sl, :], nn,
                                        preferred_element_type=jnp.float32)

    # TODO(synk): output dropout omitted (eval-mode identity).
    return out + b_proj_row


def _mha_kernel(x_ref, wqkv_ref, wproj_ref, bproj_ref, o_ref, *,
                num_heads, head_size):
    out = _attention_math(x_ref[0], wqkv_ref[...], wproj_ref[...], bproj_ref[...],
                          num_heads=num_heads, head_size=head_size)
    o_ref[0] = out.astype(o_ref.dtype)            # lane-dense (T, 256) store


def _stack_qkv(wq, wk, wv):
    """(H,C,Hs) per-head weights -> one (C, 3*H*Hs) MXU-shaped matrix.

    Columns [0:D) -> Q (head-major), [D:2D) -> K, [2D:3D) -> V.
    """
    H, C, Hs = wq.shape
    D = H * Hs

    def stack(w):  # (H,C,Hs) -> (C, H*Hs), head-major columns
        return jnp.transpose(w, (1, 0, 2)).reshape(C, D)

    return jnp.concatenate([stack(wq), stack(wk), stack(wv)], axis=-1)


def multi_head_attention(x, wq, wk, wv, w_proj, b_proj):
    """x: (B,T,C) f32; wq/wk/wv: (H,C,Hs); w_proj: (H*Hs,C); b_proj: (C,)."""
    B, T, C = x.shape
    H, _, Hs = wq.shape
    D = H * Hs

    # bf16 at the kernel boundary (halves weight/activation DMA); bias stays f32.
    x_bf = x.astype(jnp.bfloat16)
    w_qkv_bf = _stack_qkv(wq, wk, wv).astype(jnp.bfloat16)
    w_proj_bf = w_proj.astype(jnp.bfloat16)
    b_proj_row = b_proj.reshape(1, C).astype(jnp.float32)

    kernel = functools.partial(_mha_kernel, num_heads=H, head_size=Hs)

    flops = B * (2 * T * C * 3 * D            # QKV projection
                 + 4 * H * T * T * Hs         # scores + wei@v
                 + 2 * T * D * C)             # output projection
    transcendentals = B * H * T * T           # exp
    bytes_accessed = (x_bf.size * 2 + w_qkv_bf.size * 2 + w_proj_bf.size * 2
                      + b_proj_row.size * 4 + B * T * C * 4)

    return pl.pallas_call(
        kernel,
        out_shape=jax.ShapeDtypeStruct((B, T, C), jnp.float32),
        grid=(B,),
        in_specs=[
            pl.BlockSpec((1, T, C), lambda b: (b, 0, 0)),
            pl.BlockSpec((C, 3 * D), lambda b: (0, 0)),
            pl.BlockSpec((D, C), lambda b: (0, 0)),
            pl.BlockSpec((1, C), lambda b: (0, 0)),
        ],
        out_specs=pl.BlockSpec((1, T, C), lambda b: (b, 0, 0)),
        compiler_params=pltpu.CompilerParams(
            dimension_semantics=("parallel",)),
        cost_estimate=pl.CostEstimate(flops=flops,
                                      transcendentals=transcendentals,
                                      bytes_accessed=bytes_accessed),
    )(x_bf, w_qkv_bf, w_proj_bf, b_proj_row)


def _reference(x, wq, wk, wv, w_proj, b_proj):
    """Pure-JAX reference mirroring the PyTorch forward (eval mode).

    Runs the exact same math function as the kernel (same bf16 quantization
    points, same f32 accumulation), batched with jax.vmap."""
    B, T, C = x.shape
    H, _, Hs = wq.shape
    w_qkv_bf = _stack_qkv(wq, wk, wv).astype(jnp.bfloat16)
    w_proj_bf = w_proj.astype(jnp.bfloat16)
    b_proj_row = b_proj.reshape(1, C).astype(jnp.float32)
    fn = functools.partial(_attention_math, num_heads=H, head_size=Hs)
    return jax.vmap(lambda xb: fn(xb, w_qkv_bf, w_proj_bf, b_proj_row))(
        x.astype(jnp.bfloat16))


if __name__ == "__main__":
    B, T = 2, 128
    num_heads, head_size = 4, 64          # head_size * num_heads == n_embd

    key = jax.random.PRNGKey(0)
    kx, kq, kk, kv, kp, kb = jax.random.split(key, 6)

    wscale = n_embd ** -0.5
    x = jax.random.normal(kx, (B, T, n_embd), jnp.float32)
    wq = jax.random.normal(kq, (num_heads, n_embd, head_size), jnp.float32) * wscale
    wk = jax.random.normal(kk, (num_heads, n_embd, head_size), jnp.float32) * wscale
    wv = jax.random.normal(kv, (num_heads, n_embd, head_size), jnp.float32) * wscale
    w_proj = jax.random.normal(kp, (num_heads * head_size, n_embd), jnp.float32) * wscale
    b_proj = jax.random.normal(kb, (n_embd,), jnp.float32) * 0.01

    out = jax.block_until_ready(
        multi_head_attention(x, wq, wk, wv, w_proj, b_proj))

    ref = _reference(x, wq, wk, wv, w_proj, b_proj)
    assert out.shape == (B, T, n_embd)
    # Kernel and reference share the same math / quantization points, so only
    # backend-level rounding differs; 2e-2 gives comfortable headroom for the
    # bf16 matmul path while still catching any layout/logic bug (O(0.1+)).
    assert jnp.allclose(out, ref, atol=2e-2, rtol=2e-2)

    print("KERNEL_OK")
</pallas_src>

<mosaic_0001>
module attributes {stable_mosaic.version = 11 : i64} {
  func.func @_mha_kernel(%arg0: i32, %arg1: memref<1x128x256xbf16, #tpu.memory_space<vmem>>, %arg2: memref<256x768xbf16, #tpu.memory_space<vmem>>, %arg3: memref<256x256xbf16, #tpu.memory_space<vmem>>, %arg4: memref<1x256xf32, #tpu.memory_space<vmem>>, %arg5: memref<1x128x256xf32, #tpu.memory_space<vmem>>) attributes {dimension_semantics = [#tpu.dimension_semantics<parallel>], iteration_bounds = array<i64: 2>, scalar_prefetch = 0 : i64, scratch_operands = 0 : i64, tpu.core_type = #tpu.core_type<tc>, window_params = [{transform_indices = @transform_0, window_bounds = array<i64: 1, 128, 256>}, {pipeline_mode = #tpu.pipeline_mode<synchronous>, transform_indices = @transform_1, window_bounds = array<i64: 256, 768>}, {pipeline_mode = #tpu.pipeline_mode<synchronous>, transform_indices = @transform_2, window_bounds = array<i64: 256, 256>}, {pipeline_mode = #tpu.pipeline_mode<synchronous>, transform_indices = @transform_3, window_bounds = array<i64: 1, 256>}, {transform_indices = @transform_4, window_bounds = array<i64: 1, 128, 256>}]} {
    %c0 = arith.constant 0 : index
    %c0_0 = arith.constant 0 : index
    %c0_1 = arith.constant 0 : index
    %0 = vector.load %arg1[%c0, %c0_0, %c0_1] : memref<1x128x256xbf16, #tpu.memory_space<vmem>>, vector<1x128x256xbf16>
    %1 = vector.shape_cast %0 : vector<1x128x256xbf16> to vector<128x256xbf16>
    %c0_2 = arith.constant 0 : index
    %c0_3 = arith.constant 0 : index
    %2 = vector.load %arg2[%c0_2, %c0_3] : memref<256x768xbf16, #tpu.memory_space<vmem>>, vector<256x768xbf16>
    %c0_4 = arith.constant 0 : index
    %c0_5 = arith.constant 0 : index
    %3 = vector.load %arg3[%c0_4, %c0_5] : memref<256x256xbf16, #tpu.memory_space<vmem>>, vector<256x256xbf16>
    %c0_6 = arith.constant 0 : index
    %c0_7 = arith.constant 0 : index
    %4 = vector.load %arg4[%c0_6, %c0_7] : memref<1x256xf32, #tpu.memory_space<vmem>>, vector<1x256xf32>
    %cst = arith.constant dense<0.000000e+00> : vector<128x768xf32>
    %5 = tpu.matmul %1, %2, %cst {dimension_numbers = #tpu.dot_dimension_numbers<[1], [0], [0], [1], [0, 0, 1, 1], [], []>} : vector<128x256xbf16>, vector<256x768xbf16>, vector<128x768xf32> -> vector<128x768xf32>
    %6 = vector.extract_strided_slice %5 {offsets = [0, 0], sizes = [128, 256], strides = [1, 1]} : vector<128x768xf32> to vector<128x256xf32>
    %cst_8 = arith.constant 1.250000e-01 : f32
    %7 = vector.broadcast %cst_8 : f32 to vector<128x256xf32>
    %8 = arith.mulf %6, %7 : vector<128x256xf32>
    %9 = arith.truncf %8 : vector<128x256xf32> to vector<128x256xbf16>
    %10 = vector.extract_strided_slice %5 {offsets = [0, 256], sizes = [128, 256], strides = [1, 1]} : vector<128x768xf32> to vector<128x256xf32>
    %11 = arith.truncf %10 : vector<128x256xf32> to vector<128x256xbf16>
    %12 = vector.extract_strided_slice %5 {offsets = [0, 512], sizes = [128, 256], strides = [1, 1]} : vector<128x768xf32> to vector<128x256xf32>
    %13 = arith.truncf %12 : vector<128x256xf32> to vector<128x256xbf16>
    %14 = tpu.iota {dimensions = array<i32: 0>} : vector<128x128xi32>
    %15 = tpu.iota {dimensions = array<i32: 1>} : vector<128x128xi32>
    %16 = arith.cmpi sle, %15, %14 : vector<128x128xi32>
    %cst_9 = arith.constant 0.000000e+00 : f32
    %cst_10 = arith.constant -1.000000e+30 : f32
    %17 = vector.broadcast %cst_9 : f32 to vector<128x128xf32>
    %18 = vector.broadcast %cst_10 : f32 to vector<128x128xf32>
    %19 = arith.select %16, %17, %18 : vector<128x128xi1>, vector<128x128xf32>
    %cst_11 = arith.constant 0.000000e+00 : f32
    %20 = vector.broadcast %cst_11 : f32 to vector<128x256xf32>
    %21 = vector.extract_strided_slice %9 {offsets = [0, 0], sizes = [128, 64], strides = [1, 1]} : vector<128x256xbf16> to vector<128x64xbf16>
    %22 = vector.extract_strided_slice %11 {offsets = [0, 0], sizes = [128, 64], strides = [1, 1]} : vector<128x256xbf16> to vector<128x64xbf16>
    %cst_12 = arith.constant dense<0.000000e+00> : vector<128x128xf32>
    %23 = tpu.matmul %21, %22, %cst_12 {dimension_numbers = #tpu.dot_dimension_numbers<[1], [1], [0], [0], [0, 0, 1, 0], [], []>} : vector<128x64xbf16>, vector<128x64xbf16>, vector<128x128xf32> -> vector<128x128xf32>
    %24 = arith.addf %23, %19 : vector<128x128xf32>
    %cst_13 = arith.constant dense<0xFF800000> : vector<128xf32>
    %25 = vector.multi_reduction <maximumf>, %24, %cst_13 [1] : vector<128x128xf32> to vector<128xf32>
    %26 = vector.shape_cast %25 : vector<128xf32> to vector<128x1xf32>
    %27 = vector.broadcast %26 : vector<128x1xf32> to vector<128x128xf32>
    %28 = arith.subf %24, %27 : vector<128x128xf32>
    %29 = math.exp %28 : vector<128x128xf32>
    %cst_14 = arith.constant dense<0.000000e+00> : vector<128xf32>
    %30 = vector.multi_reduction <add>, %29, %cst_14 [1] : vector<128x128xf32> to vector<128xf32>
    %31 = vector.shape_cast %30 : vector<128xf32> to vector<128x1xf32>
    %32 = arith.truncf %29 : vector<128x128xf32> to vector<128x128xbf16>
    %33 = vector.extract_strided_slice %13 {offsets = [0, 0], sizes = [128, 64], strides = [1, 1]} : vector<128x256xbf16> to vector<128x64xbf16>
    %cst_15 = arith.constant dense<0.000000e+00> : vector<128x64xf32>
    %34 = tpu.matmul %32, %33, %cst_15 {dimension_numbers = #tpu.dot_dimension_numbers<[1], [0], [0], [1], [0, 0, 1, 1], [], []>} : vector<128x128xbf16>, vector<128x64xbf16>, vector<128x64xf32> -> vector<128x64xf32>
    %35 = vector.broadcast %31 : vector<128x1xf32> to vector<128x64xf32>
    %36 = arith.divf %34, %35 : vector<128x64xf32>
    %37 = arith.truncf %36 : vector<128x64xf32> to vector<128x64xbf16>
    %38 = vector.extract_strided_slice %3 {offsets = [0, 0], sizes = [64, 256], strides = [1, 1]} : vector<256x256xbf16> to vector<64x256xbf16>
    %cst_16 = arith.constant dense<0.000000e+00> : vector<128x256xf32>
    %39 = tpu.matmul %37, %38, %cst_16 {dimension_numbers = #tpu.dot_dimension_numbers<[1], [0], [0], [1], [0, 0, 1, 1], [], []>} : vector<128x64xbf16>, vector<64x256xbf16>, vector<128x256xf32> -> vector<128x256xf32>
    %40 = arith.addf %20, %39 : vector<128x256xf32>
    %41 = vector.extract_strided_slice %9 {offsets = [0, 64], sizes = [128, 64], strides = [1, 1]} : vector<128x256xbf16> to vector<128x64xbf16>
    %42 = vector.extract_strided_slice %11 {offsets = [0, 64], sizes = [128, 64], strides = [1, 1]} : vector<128x256xbf16> to vector<128x64xbf16>
    %cst_17 = arith.constant dense<0.000000e+00> : vector<128x128xf32>
    %43 = tpu.matmul %41, %42, %cst_17 {dimension_numbers = #tpu.dot_dimension_numbers<[1], [1], [0], [0], [0, 0, 1, 0], [], []>} : vector<128x64xbf16>, vector<128x64xbf16>, vector<128x128xf32> -> vector<128x128xf32>
    %44 = arith.addf %43, %19 : vector<128x128xf32>
    %cst_18 = arith.constant dense<0xFF800000> : vector<128xf32>
    %45 = vector.multi_reduction <maximumf>, %44, %cst_18 [1] : vector<128x128xf32> to vector<128xf32>
    %46 = vector.shape_cast %45 : vector<128xf32> to vector<128x1xf32>
    %47 = vector.broadcast %46 : vector<128x1xf32> to vector<128x128xf32>
    %48 = arith.subf %44, %47 : vector<128x128xf32>
    %49 = math.exp %48 : vector<128x128xf32>
    %cst_19 = arith.constant dense<0.000000e+00> : vector<128xf32>
    %50 = vector.multi_reduction <add>, %49, %cst_19 [1] : vector<128x128xf32> to vector<128xf32>
    %51 = vector.shape_cast %50 : vector<128xf32> to vector<128x1xf32>
    %52 = arith.truncf %49 : vector<128x128xf32> to vector<128x128xbf16>
    %53 = vector.extract_strided_slice %13 {offsets = [0, 64], sizes = [128, 64], strides = [1, 1]} : vector<128x256xbf16> to vector<128x64xbf16>
    %cst_20 = arith.constant dense<0.000000e+00> : vector<128x64xf32>
    %54 = tpu.matmul %52, %53, %cst_20 {dimension_numbers = #tpu.dot_dimension_numbers<[1], [0], [0], [1], [0, 0, 1, 1], [], []>} : vector<128x128xbf16>, vector<128x64xbf16>, vector<128x64xf32> -> vector<128x64xf32>
    %55 = vector.broadcast %51 : vector<128x1xf32> to vector<128x64xf32>
    %56 = arith.divf %54, %55 : vector<128x64xf32>
    %57 = arith.truncf %56 : vector<128x64xf32> to vector<128x64xbf16>
    %58 = vector.extract_strided_slice %3 {offsets = [64, 0], sizes = [64, 256], strides = [1, 1]} : vector<256x256xbf16> to vector<64x256xbf16>
    %cst_21 = arith.constant dense<0.000000e+00> : vector<128x256xf32>
    %59 = tpu.matmul %57, %58, %cst_21 {dimension_numbers = #tpu.dot_dimension_numbers<[1], [0], [0], [1], [0, 0, 1, 1], [], []>} : vector<128x64xbf16>, vector<64x256xbf16>, vector<128x256xf32> -> vector<128x256xf32>
    %60 = arith.addf %40, %59 : vector<128x256xf32>
    %61 = vector.extract_strided_slice %9 {offsets = [0, 128], sizes = [128, 64], strides = [1, 1]} : vector<128x256xbf16> to vector<128x64xbf16>
    %62 = vector.extract_strided_slice %11 {offsets = [0, 128], sizes = [128, 64], strides = [1, 1]} : vector<128x256xbf16> to vector<128x64xbf16>
    %cst_22 = arith.constant dense<0.000000e+00> : vector<128x128xf32>
    %63 = tpu.matmul %61, %62, %cst_22 {dimension_numbers = #tpu.dot_dimension_numbers<[1], [1], [0], [0], [0, 0, 1, 0], [], []>} : vector<128x64xbf16>, vector<128x64xbf16>, vector<128x128xf32> -> vector<128x128xf32>
    %64 = arith.addf %63, %19 : vector<128x128xf32>
    %cst_23 = arith.constant dense<0xFF800000> : vector<128xf32>
    %65 = vector.multi_reduction <maximumf>, %64, %cst_23 [1] : vector<128x128xf32> to vector<128xf32>
    %66 = vector.shape_cast %65 : vector<128xf32> to vector<128x1xf32>
    %67 = vector.broadcast %66 : vector<128x1xf32> to vector<128x128xf32>
    %68 = arith.subf %64, %67 : vector<128x128xf32>
    %69 = math.exp %68 : vector<128x128xf32>
    %cst_24 = arith.constant dense<0.000000e+00> : vector<128xf32>
    %70 = vector.multi_reduction <add>, %69, %cst_24 [1] : vector<128x128xf32> to vector<128xf32>
    %71 = vector.shape_cast %70 : vector<128xf32> to vector<128x1xf32>
    %72 = arith.truncf %69 : vector<128x128xf32> to vector<128x128xbf16>
    %73 = vector.extract_strided_slice %13 {offsets = [0, 128], sizes = [128, 64], strides = [1, 1]} : vector<128x256xbf16> to vector<128x64xbf16>
    %cst_25 = arith.constant dense<0.000000e+00> : vector<128x64xf32>
    %74 = tpu.matmul %72, %73, %cst_25 {dimension_numbers = #tpu.dot_dimension_numbers<[1], [0], [0], [1], [0, 0, 1, 1], [], []>} : vector<128x128xbf16>, vector<128x64xbf16>, vector<128x64xf32> -> vector<128x64xf32>
    %75 = vector.broadcast %71 : vector<128x1xf32> to vector<128x64xf32>
    %76 = arith.divf %74, %75 : vector<128x64xf32>
    %77 = arith.truncf %76 : vector<128x64xf32> to vector<128x64xbf16>
    %78 = vector.extract_strided_slice %3 {offsets = [128, 0], sizes = [64, 256], strides = [1, 1]} : vector<256x256xbf16> to vector<64x256xbf16>
    %cst_26 = arith.constant dense<0.000000e+00> : vector<128x256xf32>
    %79 = tpu.matmul %77, %78, %cst_26 {dimension_numbers = #tpu.dot_dimension_numbers<[1], [0], [0], [1], [0, 0, 1, 1], [], []>} : vector<128x64xbf16>, vector<64x256xbf16>, vector<128x256xf32> -> vector<128x256xf32>
    %80 = arith.addf %60, %79 : vector<128x256xf32>
    %81 = vector.extract_strided_slice %9 {offsets = [0, 192], sizes = [128, 64], strides = [1, 1]} : vector<128x256xbf16> to vector<128x64xbf16>
    %82 = vector.extract_strided_slice %11 {offsets = [0, 192], sizes = [128, 64], strides = [1, 1]} : vector<128x256xbf16> to vector<128x64xbf16>
    %cst_27 = arith.constant dense<0.000000e+00> : vector<128x128xf32>
    %83 = tpu.matmul %81, %82, %cst_27 {dimension_numbers = #tpu.dot_dimension_numbers<[1], [1], [0], [0], [0, 0, 1, 0], [], []>} : vector<128x64xbf16>, vector<128x64xbf16>, vector<128x128xf32> -> vector<128x128xf32>
    %84 = arith.addf %83, %19 : vector<128x128xf32>
    %cst_28 = arith.constant dense<0xFF800000> : vector<128xf32>
    %85 = vector.multi_reduction <maximumf>, %84, %cst_28 [1] : vector<128x128xf32> to vector<128xf32>
    %86 = vector.shape_cast %85 : vector<128xf32> to vector<128x1xf32>
    %87 = vector.broadcast %86 : vector<128x1xf32> to vector<128x128xf32>
    %88 = arith.subf %84, %87 : vector<128x128xf32>
    %89 = math.exp %88 : vector<128x128xf32>
    %cst_29 = arith.constant dense<0.000000e+00> : vector<128xf32>
    %90 = vector.multi_reduction <add>, %89, %cst_29 [1] : vector<128x128xf32> to vector<128xf32>
    %91 = vector.shape_cast %90 : vector<128xf32> to vector<128x1xf32>
    %92 = arith.truncf %89 : vector<128x128xf32> to vector<128x128xbf16>
    %93 = vector.extract_strided_slice %13 {offsets = [0, 192], sizes = [128, 64], strides = [1, 1]} : vector<128x256xbf16> to vector<128x64xbf16>
    %cst_30 = arith.constant dense<0.000000e+00> : vector<128x64xf32>
    %94 = tpu.matmul %92, %93, %cst_30 {dimension_numbers = #tpu.dot_dimension_numbers<[1], [0], [0], [1], [0, 0, 1, 1], [], []>} : vector<128x128xbf16>, vector<128x64xbf16>, vector<128x64xf32> -> vector<128x64xf32>
    %95 = vector.broadcast %91 : vector<128x1xf32> to vector<128x64xf32>
    %96 = arith.divf %94, %95 : vector<128x64xf32>
    %97 = arith.truncf %96 : vector<128x64xf32> to vector<128x64xbf16>
    %98 = vector.extract_strided_slice %3 {offsets = [192, 0], sizes = [64, 256], strides = [1, 1]} : vector<256x256xbf16> to vector<64x256xbf16>
    %cst_31 = arith.constant dense<0.000000e+00> : vector<128x256xf32>
    %99 = tpu.matmul %97, %98, %cst_31 {dimension_numbers = #tpu.dot_dimension_numbers<[1], [0], [0], [1], [0, 0, 1, 1], [], []>} : vector<128x64xbf16>, vector<64x256xbf16>, vector<128x256xf32> -> vector<128x256xf32>
    %100 = arith.addf %80, %99 : vector<128x256xf32>
    %101 = vector.broadcast %4 : vector<1x256xf32> to vector<128x256xf32>
    %102 = arith.addf %100, %101 : vector<128x256xf32>
    %c0_32 = arith.constant 0 : index
    %c0_33 = arith.constant 0 : index
    %c0_34 = arith.constant 0 : index
    %103 = vector.load %arg5[%c0_32, %c0_33, %c0_34] : memref<1x128x256xf32, #tpu.memory_space<vmem>>, vector<1x128x256xf32>
    %104 = vector.shape_cast %103 : vector<1x128x256xf32> to vector<128x256xf32>
    %105 = vector.shape_cast %102 : vector<128x256xf32> to vector<1x128x256xf32>
    tpu.vector_store %arg5[%c0_32, %c0_33, %c0_34], %105 {strides = array<i32>} : memref<1x128x256xf32, #tpu.memory_space<vmem>>, vector<1x128x256xf32>,
    return
  }
  func.func @transform_0(%arg0: i32) -> (i32, i32, i32) {
    %c0_i32 = arith.constant 0 : i32
    %c0_i32_0 = arith.constant 0 : i32
    %c0_i32_1 = arith.constant 0 : i32
    return %arg0, %c0_i32, %c0_i32_0 : i32, i32, i32
  }
  func.func @transform_1(%arg0: i32) -> (i32, i32) {
    %c0_i32 = arith.constant 0 : i32
    %c0_i32_0 = arith.constant 0 : i32
    %c0_i32_1 = arith.constant 0 : i32
    return %c0_i32, %c0_i32_0 : i32, i32
  }
  func.func @transform_2(%arg0: i32) -> (i32, i32) {
    %c0_i32 = arith.constant 0 : i32
    %c0_i32_0 = arith.constant 0 : i32
    %c0_i32_1 = arith.constant 0 : i32
    return %c0_i32, %c0_i32_0 : i32, i32
  }
  func.func @transform_3(%arg0: i32) -> (i32, i32) {
    %c0_i32 = arith.constant 0 : i32
    %c0_i32_0 = arith.constant 0 : i32
    %c0_i32_1 = arith.constant 0 : i32
    return %c0_i32, %c0_i32_0 : i32, i32
  }
  func.func @transform_4(%arg0: i32) -> (i32, i32, i32) {
    %c0_i32 = arith.constant 0 : i32
    %c0_i32_0 = arith.constant 0 : i32
    %c0_i32_1 = arith.constant 0 : i32
    return %arg0, %c0_i32, %c0_i32_0 : i32, i32, i32
  }
}

</mosaic_0001>

<llo_original>
// kernel: tpu_custom_call.1
$region0: #{tpu_custom_call.1}
  #allocation0 [shape = 'u32[]', space=smem, size = 0x4, offset = 0x4, fixed_abs, tag = 'smem constant byte address 0x4 - core index']
  #allocation1 [shape = 'u32[144,128]{1,0:T(1,128)}', space=vmem, size = 0x12000, scoped, tag = 'internal scratch']
  %s0 = inlined_call_operand.hbm [shape: bf16[2,128,256], index: 0, kind: input, shape index: {}]
  %s1 = inlined_call_operand.hbm [shape: bf16[256,768], index: 1, kind: input, shape index: {}]
  %s2 = inlined_call_operand.hbm [shape: bf16[256,256], index: 2, kind: input, shape index: {}]
  %s3 = inlined_call_operand.vmem [shape: f32[1,256], index: 3, kind: input, shape index: {}]
  %s4 = inlined_call_operand.hbm [shape: f32[2,128,256], index: 4, kind: output, shape index: {}]
  %s5 = sld [smem:[#allocation0]]
  $region61: #{tpu_custom_call.1} parent=0
    _
  %s7 = ssub.s32 1, %s5
  %s8 = scalar_select 0, %s7, %s5
  $region1: #{tpu_custom_call.1} parent=0
    #allocation2 [shape = 'u8[131072]{0}', space=vmem, size = 0x20000, scoped, tag = 'input window, operand 0']
    #allocation3 [shape = 's32[2]{0}', space=sflag, size = 0x8, scoped, tag = 'scoped memory for tpu_custom_call.1']
    #allocation4 [shape = 's32[2]{0}', space=sflag, size = 0x8, scoped, tag = 'scoped memory for tpu_custom_call.1']
    #allocation5 [shape = 'u8[393216]{0}', space=vmem, size = 0x60000, scoped, tag = 'input window, operand 1, single buffered']
    #allocation6 [shape = 's32[1]{0}', space=sflag, size = 0x4, scoped, tag = 'scoped memory for tpu_custom_call.1']
    #allocation7 [shape = 'u8[131072]{0}', space=vmem, size = 0x20000, scoped, tag = 'input window, operand 2, single buffered']
    #allocation8 [shape = 'u8[262144]{0}', space=vmem, size = 0x40000, scoped, tag = 'output window, operand 0']
    %9 = vsyncpa [#allocation3], 0
    %s10 = scalar_lea.sflag [#allocation3], 1
    %11 = vsyncpa %s10, 0
    %12 = vsyncpa [#allocation6], 0
    %13 = vsyncpa [#allocation4], 0
    %s14 = scalar_lea.sflag [#allocation4], 1
    %15 = vsyncpa %s14, 0
    loop: start=0, step=1, limit=4
    $region2: #{tpu_custom_call.1} parent=1 // loop_pre_header
      _
    $region3: #{tpu_custom_call.1} parent=1 // loop_header
      %s17 = sphi 0, %s21
      %p18 = scmp.ge.s32.totalorder %s17, 4
      %s27 = sphi 0, %s29
      %s30 = sphi 0, %s27
      %s31 = sphi 0, %s30
      %s47 = sphi 0, %s31
      %s51 = sphi 0, %s51
      %s53 = sphi 0, %s51
      %s54 = sphi 0, %s53
      %s68 = sphi 0, %s54
      %s72 = sphi 0, %s72
      %s74 = sphi 0, %s72
      %s75 = sphi 0, %s74
      %s89 = sphi 0, %s75
      %s93 = sphi 0, %s93
      %s95 = sphi 0, %s93
      %s96 = sphi 0, %s95
      %s110 = sphi 0, %s96
      %s116 = sphi 0, %s118
      %s119 = sphi 0, %s116
      %s120 = sphi 0, %s119
      %s136 = sphi 0, %s120
    $region4: #{tpu_custom_call.1} parent=1 // loop_header_branch
      %20 = sbr.rel (%p18) target = $region8
    $region5: #{tpu_custom_call.1} parent=1 // loop_body
      %s22 = ssub.s32 %s17, 1
      %s23 = ssub.s32 %s17, 2
      %s24 = sadd.s32 %s17, 1
      %s25 = ssub.s32 %s17, %s24
      %p26 = scmp.eq.s32.totalorder %s25, 0
      %s28 = sadd.s32 %s27, 1
      %s29 = scalar_select %p26, %s27, %s28
      %p32 = pneg %p26
      %p33 = scmp.eq.s32.totalorder %s17, 1
      %p34 = por %p32, %p33
      %p35 = scmp.ne.s32.totalorder %s27, %s30
      %p36 = scmp.eq.s32.totalorder %s17, 0
      %p37 = por %p35, %p36
      %p38 = scmp.ne.s32.totalorder %s27, %s30
      %p39 = scmp.eq.s32.totalorder %s22, 1
      %p40 = por %p38, %p39
      %p41 = scmp.ne.s32.totalorder %s30, %s31
      %p42 = scmp.eq.s32.totalorder %s22, 0
      %p43 = por %p41, %p42
      %p44 = scmp.ne.s32.totalorder %s30, %s31
      %p45 = scmp.eq.s32.totalorder %s23, 1
      %p46 = por %p44, %p45
      %p48 = scmp.ne.s32.totalorder %s31, %s47
      %p49 = scmp.eq.s32.totalorder %s23, 0
      %p50 = por %p48, %p49
      %s52 = sadd.s32 %s51, 1
      %p55 = scmp.eq.s32.totalorder %s17, 1
      %p56 = scmp.ne.s32.totalorder %s51, %s53
      %p57 = scmp.eq.s32.totalorder %s17, 0
      %p58 = por %p56, %p57
      %p59 = scmp.ne.s32.totalorder %s51, %s53
      %p60 = scmp.eq.s32.totalorder %s22, 1
      %p61 = por %p59, %p60
      %p62 = scmp.ne.s32.totalorder %s53, %s54
      %p63 = scmp.eq.s32.totalorder %s22, 0
      %p64 = por %p62, %p63
      %p65 = scmp.ne.s32.totalorder %s53, %s54
      %p66 = scmp.eq.s32.totalorder %s23, 1
      %p67 = por %p65, %p66
      %p69 = scmp.ne.s32.totalorder %s54, %s68
      %p70 = scmp.eq.s32.totalorder %s23, 0
      %p71 = por %p69, %p70
      %s73 = sadd.s32 %s72, 1
      %p76 = scmp.eq.s32.totalorder %s17, 1
      %p77 = scmp.ne.s32.totalorder %s72, %s74
      %p78 = scmp.eq.s32.totalorder %s17, 0
      %p79 = por %p77, %p78
      %p80 = scmp.ne.s32.totalorder %s72, %s74
      %p81 = scmp.eq.s32.totalorder %s22, 1
      %p82 = por %p80, %p81
      %p83 = scmp.ne.s32.totalorder %s74, %s75
      %p84 = scmp.eq.s32.totalorder %s22, 0
      %p85 = por %p83, %p84
      %p86 = scmp.ne.s32.totalorder %s74, %s75
      %p87 = scmp.eq.s32.totalorder %s23, 1
      %p88 = por %p86, %p87
      %p90 = scmp.ne.s32.totalorder %s75, %s89
      %p91 = scmp.eq.s32.totalorder %s23, 0
      %p92 = por %p90, %p91
      %s94 = sadd.s32 %s93, 1
      %p97 = scmp.eq.s32.totalorder %s17, 1
      %p98 = scmp.ne.s32.totalorder %s93, %s95
      %p99 = scmp.eq.s32.totalorder %s17, 0
      %p100 = por %p98, %p99
      %p101 = scmp.ne.s32.totalorder %s93, %s95
      %p102 = scmp.eq.s32.totalorder %s22, 1
      %p103 = por %p101, %p102
      %p104 = scmp.ne.s32.totalorder %s95, %s96
      %p105 = scmp.eq.s32.totalorder %s22, 0
      %p106 = por %p104, %p105
      %p107 = scmp.ne.s32.totalorder %s95, %s96
      %p108 = scmp.eq.s32.totalorder %s23, 1
      %p109 = por %p107, %p108
      %p111 = scmp.ne.s32.totalorder %s96, %s110
      %p112 = scmp.eq.s32.totalorder %s23, 0
      %p113 = por %p111, %p112
      %s114 = ssub.s32 %s17, %s24
      %p115 = scmp.eq.s32.totalorder %s114, 0
      %s117 = sadd.s32 %s116, 1
      %s118 = scalar_select %p115, %s116, %s117
      %p121 = pneg %p115
      %p122 = scmp.eq.s32.totalorder %s17, 1
      %p123 = por %p121, %p122
      %p124 = scmp.ne.s32.totalorder %s116, %s119
      %p125 = scmp.eq.s32.totalorder %s17, 0
      %p126 = por %p124, %p125
      %p127 = scmp.ne.s32.totalorder %s116, %s119
      %p128 = scmp.eq.s32.totalorder %s22, 1
      %p129 = por %p127, %p128
      %p130 = scmp.ne.s32.totalorder %s119, %s120
      %p131 = scmp.eq.s32.totalorder %s22, 0
      %p132 = por %p130, %p131
      %p133 = scmp.ne.s32.totalorder %s119, %s120
      %p134 = scmp.eq.s32.totalorder %s23, 1
      %p135 = por %p133, %p134
      %p137 = scmp.ne.s32.totalorder %s120, %s136
      %p138 = scmp.eq.s32.totalorder %s23, 0
      %p139 = por %p137, %p138
      %p140 = scmp.le.s32.totalorder 1, %s17
      %p141 = scmp.lt.s32.totalorder %s17, 3
      %p142 = pnand %p140, %p141
      %p143 = pneg %p142
      // Predicated region
      $region9: #{tpu_custom_call.1} parent=5 // pred_check
        _
      $region10: #{tpu_custom_call.1} parent=5 // pred_check_branch
        %145 = sbr.rel (%p142) target = $region12
      $region11: #{tpu_custom_call.1} parent=5 // pred_region
        %s146 = ssub.s32 %s17, 1
        // Predicated region
        $region13: #{tpu_custom_call.1} parent=11 // pred_check
          %p147 = pneg %p64
        $region14: #{tpu_custom_call.1} parent=11 // pred_check_branch
          %149 = sbr.rel (%p147) target = $region16
        $region15: #{tpu_custom_call.1} parent=11 // pred_region
          %s151 = ssub.s32 12288, 12288
          %152 = vsyncadd [#allocation6], %s151
          %s153 = sshll.u32 [#allocation5], 4
          %s154 = int_to_ptr.vmem [resolvable:$true] %s153
          %159 = dma.hbm_to_vmem [thread:$0]  %s1, 12288, %s154, [#allocation6], 384, 384, 24
        $region16: #{tpu_custom_call.1} parent=11 // pred_fallthru
          _
        // Predicated region
        $region17: #{tpu_custom_call.1} parent=11 // pred_check
          %p160 = pneg %p85
        $region18: #{tpu_custom_call.1} parent=11 // pred_check_branch
          %162 = sbr.rel (%p160) target = $region20
        $region19: #{tpu_custom_call.1} parent=11 // pred_region
          %s164 = ssub.s32 4096, 4096
          %165 = vsyncadd [#allocation6], %s164
          %s166 = sshll.u32 [#allocation7], 4
          %s167 = int_to_ptr.vmem [resolvable:$true] %s166
          %172 = dma.hbm_to_vmem [thread:$0]  %s2, 4096, %s167, [#allocation6], 128, 128, 8
        $region20: #{tpu_custom_call.1} parent=11 // pred_fallthru
          _
        // Predicated region
        $region21: #{tpu_custom_call.1} parent=11 // pred_check
          %p173 = pneg %p106
        $region22: #{tpu_custom_call.1} parent=11 // pred_check_branch
          %175 = sbr.rel (%p173) target = $region24
        $region23: #{tpu_custom_call.1} parent=11 // pred_region
          _
        $region24: #{tpu_custom_call.1} parent=11 // pred_fallthru
          _
      $region12: #{tpu_custom_call.1} parent=5 // pred_fallthru
        _
      %p176 = scmp.lt.s32.totalorder %s17, 2
      // Predicated region
      $region25: #{tpu_custom_call.1} parent=5 // pred_check
        %p177 = pneg %p176
      $region26: #{tpu_custom_call.1} parent=5 // pred_check_branch
        %179 = sbr.rel (%p177) target = $region28
      $region27: #{tpu_custom_call.1} parent=5 // pred_region
        // Predicated region
        $region29: #{tpu_custom_call.1} parent=27 // pred_check
          %p180 = pneg %p37
        $region30: #{tpu_custom_call.1} parent=27 // pred_check_branch
          %182 = sbr.rel (%p180) target = $region32
        $region31: #{tpu_custom_call.1} parent=27 // pred_region
          %s183 = sand.u32 %s27, 1
          %s184 = scalar_lea.sflag [#allocation3], %s183
          %s185 = sand.u32 %s27, 1
          %s186 = smul.addr %s185, 128
          %s187 = scalar_lea.vmem [#allocation2], %s186
          %s189 = ssub.s32 2048, 2048
          %190 = vsyncadd %s184, %s189
          %s191 = smul.addr %s17, 32
          %s192 = smul.addr %s191, 64
          %s193 = scalar_lea.hbm %s0, %s192
          %s194 = sshll.u32 %s187, 4
          %s195 = int_to_ptr.vmem [resolvable:$true] %s194
          %200 = dma.hbm_to_vmem [thread:$0]  %s193, 2048, %s195, %s184, 128, 128, 8
        $region32: #{tpu_custom_call.1} parent=27 // pred_fallthru
          _
      $region28: #{tpu_custom_call.1} parent=5 // pred_fallthru
        _
      %p201 = scmp.le.s32.totalorder 1, %s17
      %p202 = scmp.lt.s32.totalorder %s17, 3
      %p203 = pnand %p201, %p202
      %p204 = pneg %p203
      // Predicated region
      $region33: #{tpu_custom_call.1} parent=5 // pred_check
        _
      $region34: #{tpu_custom_call.1} parent=5 // pred_check_branch
        %206 = sbr.rel (%p203) target = $region36
      $region35: #{tpu_custom_call.1} parent=5 // pred_region
        %s207 = ssub.s32 %s17, 1
        %s208 = sand.u32 %s30, 1
        %s209 = scalar_lea.sflag [#allocation3], %s208
        %s210 = sand.u32 %s30, 1
        %s211 = smul.addr %s210, 128
        %s212 = scalar_lea.vmem [#allocation2], %s211
        // Predicated region
        $region37: #{tpu_custom_call.1} parent=35 // pred_check
          %p213 = pneg %p43
        $region38: #{tpu_custom_call.1} parent=35 // pred_check_branch
          %215 = sbr.rel (%p213) target = $region40
        $region39: #{tpu_custom_call.1} parent=35 // pred_region
          %216 = dma.done %s209, 2048
        $region40: #{tpu_custom_call.1} parent=35 // pred_fallthru
          _
        // Predicated region
        $region41: #{tpu_custom_call.1} parent=35 // pred_check
          %p217 = pneg %p64
        $region42: #{tpu_custom_call.1} parent=35 // pred_check_branch
          %219 = sbr.rel (%p217) target = $region44
        $region43: #{tpu_custom_call.1} parent=35 // pred_region
          %220 = dma.done [#allocation6], 12288
        $region44: #{tpu_custom_call.1} parent=35 // pred_fallthru
          _
        // Predicated region
        $region45: #{tpu_custom_call.1} parent=35 // pred_check
          %p221 = pneg %p85
        $region46: #{tpu_custom_call.1} parent=35 // pred_check_branch
          %223 = sbr.rel (%p221) target = $region48
        $region47: #{tpu_custom_call.1} parent=35 // pred_region
          %224 = dma.done [#allocation6], 4096
        $region48: #{tpu_custom_call.1} parent=35 // pred_fallthru
          _
        %s225 = sand.u32 %s30, 1
        %s226 = scalar_lea.sflag [#allocation3], %s225
        %s227 = sand.u32 %s30, 1
        %s228 = smul.addr %s227, 128
        %s229 = scalar_lea.vmem [#allocation2], %s228
        %p230 = pneg %p43
        %p231 = pneg %p40
        %p232 = pneg %p64
        %p233 = pneg %p61
        %p234 = pneg %p85
        %p235 = pneg %p82
        %p236 = pneg %p106
        %p237 = pneg %p103
        %p238 = pneg %p132
        %p239 = pneg %p129
        %s240 = sand.u32 %s119, 1
        %s241 = scalar_lea.sflag [#allocation4], %s240
        %s242 = sand.u32 %s119, 1
        %s243 = smul.addr %s242, 256
        %s244 = scalar_lea.vmem [#allocation8], %s243
        %v246 = vld [vmem:[%s212] sm:$0xff]
        %v247 = vld [vmem:[%s212 + $0x8] sm:$0xff]
        %v248 = vld [vmem:[%s212 + $0x10] sm:$0xff]
        %v249 = vld [vmem:[%s212 + $0x18] sm:$0xff]
        %v250 = vld [vmem:[%s212 + $0x20] sm:$0xff]
        %v251 = vld [vmem:[%s212 + $0x28] sm:$0xff]
        %v252 = vld [vmem:[%s212 + $0x30] sm:$0xff]
        %v253 = vld [vmem:[%s212 + $0x38] sm:$0xff]
        %v254 = vld [vmem:[%s212 + $0x40] sm:$0xff]
        %v255 = vld [vmem:[%s212 + $0x48] sm:$0xff]
        %v256 = vld [vmem:[%s212 + $0x50] sm:$0xff]
        %v257 = vld [vmem:[%s212 + $0x58] sm:$0xff]
        %v258 = vld [vmem:[%s212 + $0x60] sm:$0xff]
        %v259 = vld [vmem:[%s212 + $0x68] sm:$0xff]
        %v260 = vld [vmem:[%s212 + $0x70] sm:$0xff]
        %v261 = vld [vmem:[%s212 + $0x78] sm:$0xff]
        %v262 = vld [vmem:[#allocation5] sm:$0xff]
        %v263 = vld [vmem:[#allocation5 + $0x8] sm:$0xff]
        %v264 = vld [vmem:[#allocation5 + $0x10] sm:$0xff]
        %v265 = vld [vmem:[#allocation5 + $0x18] sm:$0xff]
        %v266 = vld [vmem:[#allocation5 + $0x20] sm:$0xff]
        %v267 = vld [vmem:[#allocation5 + $0x28] sm:$0xff]
        %v268 = vld [vmem:[#allocation5 + $0x30] sm:$0xff]
        %v269 = vld [vmem:[#allocation5 + $0x38] sm:$0xff]
        %v270 = vld [vmem:[#allocation5 + $0x40] sm:$0xff]
        %v271 = vld [vmem:[#allocation5 + $0x48] sm:$0xff]
        %v272 = vld [vmem:[#allocation5 + $0x50] sm:$0xff]
        %v273 = vld [vmem:[#allocation5 + $0x58] sm:$0xff]
        %v274 = vld [vmem:[#allocation5 + $0x60] sm:$0xff]
        %v275 = vld [vmem:[#allocation5 + $0x68] sm:$0xff]
        %v276 = vld [vmem:[#allocation5 + $0x70] sm:$0xff]
        %v277 = vld [vmem:[#allocation5 + $0x78] sm:$0xff]
        %v278 = vld [vmem:[#allocation5 + $0x80] sm:$0xff]
        %v279 = vld [vmem:[#allocation5 + $0x88] sm:$0xff]
        %v280 = vld [vmem:[#allocation5 + $0x90] sm:$0xff]
        %v281 = vld [vmem:[#allocation5 + $0x98] sm:$0xff]
        %v282 = vld [vmem:[#allocation5 + $0xa0] sm:$0xff]
        %v283 = vld [vmem:[#allocation5 + $0xa8] sm:$0xff]
        %v284 = vld [vmem:[#allocation5 + $0xb0] sm:$0xff]
        %v285 = vld [vmem:[#allocation5 + $0xb8] sm:$0xff]
        %v286 = vld [vmem:[#allocation5 + $0xc0] sm:$0xff]
        %v287 = vld [vmem:[#allocation5 + $0xc8] sm:$0xff]
        %v288 = vld [vmem:[#allocation5 + $0xd0] sm:$0xff]
        %v289 = vld [vmem:[#allocation5 + $0xd8] sm:$0xff]
        %v290 = vld [vmem:[#allocation5 + $0xe0] sm:$0xff]
        %v291 = vld [vmem:[#allocation5 + $0xe8] sm:$0xff]
        %v292 = vld [vmem:[#allocation5 + $0xf0] sm:$0xff]
        %v293 = vld [vmem:[#allocation5 + $0xf8] sm:$0xff]
        %v294 = vld [vmem:[#allocation5 + $0x100] sm:$0xff]
        %v295 = vld [vmem:[#allocation5 + $0x108] sm:$0xff]
        %v296 = vld [vmem:[#allocation5 + $0x110] sm:$0xff]
        %v297 = vld [vmem:[#allocation5 + $0x118] sm:$0xff]
        %v298 = vld [vmem:[#allocation5 + $0x120] sm:$0xff]
        %v299 = vld [vmem:[#allocation5 + $0x128] sm:$0xff]
        %v300 = vld [vmem:[#allocation5 + $0x130] sm:$0xff]
        %v301 = vld [vmem:[#allocation5 + $0x138] sm:$0xff]
        %v302 = vld [vmem:[#allocation5 + $0x140] sm:$0xff]
        %v303 = vld [vmem:[#allocation5 + $0x148] sm:$0xff]
        %v304 = vld [vmem:[#allocation5 + $0x150] sm:$0xff]
        %v305 = vld [vmem:[#allocation5 + $0x158] sm:$0xff]
        %v306 = vld [vmem:[#allocation5 + $0x160] sm:$0xff]
        %v307 = vld [vmem:[#allocation5 + $0x168] sm:$0xff]
        %v308 = vld [vmem:[#allocation5 + $0x170] sm:$0xff]
        %v309 = vld [vmem:[#allocation5 + $0x178] sm:$0xff]
        %v310 = vld [vmem:[#allocation5 + $0x180] sm:$0xff]
        %v311 = vld [vmem:[#allocation5 + $0x188] sm:$0xff]
        %v312 = vld [vmem:[#allocation5 + $0x190] sm:$0xff]
        %v313 = vld [vmem:[#allocation5 + $0x198] sm:$0xff]
        %v314 = vld [vmem:[#allocation5 + $0x1a0] sm:$0xff]
        %v315 = vld [vmem:[#allocation5 + $0x1a8] sm:$0xff]
        %v316 = vld [vmem:[#allocation5 + $0x1b0] sm:$0xff]
        %v317 = vld [vmem:[#allocation5 + $0x1b8] sm:$0xff]
        %v318 = vld [vmem:[#allocation5 + $0x1c0] sm:$0xff]
        %v319 = vld [vmem:[#allocation5 + $0x1c8] sm:$0xff]
        %v320 = vld [vmem:[#allocation5 + $0x1d0] sm:$0xff]
        %v321 = vld [vmem:[#allocation5 + $0x1d8] sm:$0xff]
        %v322 = vld [vmem:[#allocation5 + $0x1e0] sm:$0xff]
        %v323 = vld [vmem:[#allocation5 + $0x1e8] sm:$0xff]
        %v324 = vld [vmem:[#allocation5 + $0x1f0] sm:$0xff]
        %v325 = vld [vmem:[#allocation5 + $0x1f8] sm:$0xff]
        %v326 = vld [vmem:[#allocation5 + $0x200] sm:$0xff]
        %v327 = vld [vmem:[#allocation5 + $0x208] sm:$0xff]
        %v328 = vld [vmem:[#allocation5 + $0x210] sm:$0xff]
        %v329 = vld [vmem:[#allocation5 + $0x218] sm:$0xff]
        %v330 = vld [vmem:[#allocation5 + $0x220] sm:$0xff]
        %v331 = vld [vmem:[#allocation5 + $0x228] sm:$0xff]
        %v332 = vld [vmem:[#allocation5 + $0x230] sm:$0xff]
        %v333 = vld [vmem:[#allocation5 + $0x238] sm:$0xff]
        %v334 = vld [vmem:[#allocation5 + $0x240] sm:$0xff]
        %v335 = vld [vmem:[#allocation5 + $0x248] sm:$0xff]
        %v336 = vld [vmem:[#allocation5 + $0x250] sm:$0xff]
        %v337 = vld [vmem:[#allocation5 + $0x258] sm:$0xff]
        %v338 = vld [vmem:[#allocation5 + $0x260] sm:$0xff]
        %v339 = vld [vmem:[#allocation5 + $0x268] sm:$0xff]
        %v340 = vld [vmem:[#allocation5 + $0x270] sm:$0xff]
        %v341 = vld [vmem:[#allocation5 + $0x278] sm:$0xff]
        %v342 = vld [vmem:[#allocation5 + $0x280] sm:$0xff]
        %v343 = vld [vmem:[#allocation5 + $0x288] sm:$0xff]
        %v344 = vld [vmem:[#allocation5 + $0x290] sm:$0xff]
        %v345 = vld [vmem:[#allocation5 + $0x298] sm:$0xff]
        %v346 = vld [vmem:[#allocation5 + $0x2a0] sm:$0xff]
        %v347 = vld [vmem:[#allocation5 + $0x2a8] sm:$0xff]
        %v348 = vld [vmem:[#allocation5 + $0x2b0] sm:$0xff]
        %v349 = vld [vmem:[#allocation5 + $0x2b8] sm:$0xff]
        %v350 = vld [vmem:[#allocation5 + $0x2c0] sm:$0xff]
        %v351 = vld [vmem:[#allocation5 + $0x2c8] sm:$0xff]
        %v352 = vld [vmem:[#allocation5 + $0x2d0] sm:$0xff]
        %v353 = vld [vmem:[#allocation5 + $0x2d8] sm:$0xff]
        %v354 = vld [vmem:[#allocation5 + $0x2e0] sm:$0xff]
        %v355 = vld [vmem:[#allocation5 + $0x2e8] sm:$0xff]
        %v356 = vld [vmem:[#allocation5 + $0x2f0] sm:$0xff]
        %v357 = vld [vmem:[#allocation5 + $0x2f8] sm:$0xff]
        %v358 = vld [vmem:[#allocation7] sm:$0xff]
        %v359 = vld [vmem:[#allocation7 + $0x8] sm:$0xff]
        %v360 = vld [vmem:[#allocation7 + $0x10] sm:$0xff]
        %v361 = vld [vmem:[#allocation7 + $0x18] sm:$0xff]
        %v362 = vld [vmem:[#allocation7 + $0x20] sm:$0xff]
        %v363 = vld [vmem:[#allocation7 + $0x28] sm:$0xff]
        %v364 = vld [vmem:[#allocation7 + $0x30] sm:$0xff]
        %v365 = vld [vmem:[#allocation7 + $0x38] sm:$0xff]
        %v366 = vld [vmem:[#allocation7 + $0x40] sm:$0xff]
        %v367 = vld [vmem:[#allocation7 + $0x48] sm:$0xff]
        %v368 = vld [vmem:[#allocation7 + $0x50] sm:$0xff]
        %v369 = vld [vmem:[#allocation7 + $0x58] sm:$0xff]
        %v370 = vld [vmem:[#allocation7 + $0x60] sm:$0xff]
        %v371 = vld [vmem:[#allocation7 + $0x68] sm:$0xff]
        %v372 = vld [vmem:[#allocation7 + $0x70] sm:$0xff]
        %v373 = vld [vmem:[#allocation7 + $0x78] sm:$0xff]
        %v374 = vld [vmem:[#allocation7 + $0x80] sm:$0xff]
        %v375 = vld [vmem:[#allocation7 + $0x88] sm:$0xff]
        %v376 = vld [vmem:[#allocation7 + $0x90] sm:$0xff]
        %v377 = vld [vmem:[#allocation7 + $0x98] sm:$0xff]
        %v378 = vld [vmem:[#allocation7 + $0xa0] sm:$0xff]
        %v379 = vld [vmem:[#allocation7 + $0xa8] sm:$0xff]
        %v380 = vld [vmem:[#allocation7 + $0xb0] sm:$0xff]
        %v381 = vld [vmem:[#allocation7 + $0xb8] sm:$0xff]
        %v382 = vld [vmem:[#allocation7 + $0xc0] sm:$0xff]
        %v383 = vld [vmem:[#allocation7 + $0xc8] sm:$0xff]
        %v384 = vld [vmem:[#allocation7 + $0xd0] sm:$0xff]
        %v385 = vld [vmem:[#allocation7 + $0xd8] sm:$0xff]
        %v386 = vld [vmem:[#allocation7 + $0xe0] sm:$0xff]
        %v387 = vld [vmem:[#allocation7 + $0xe8] sm:$0xff]
        %v388 = vld [vmem:[#allocation7 + $0xf0] sm:$0xff]
        %v389 = vld [vmem:[#allocation7 + $0xf8] sm:$0xff]
        %v390 = vld [vmem:[%s3] sm:$0x3]
        %v407 = vunpack.c.l.b16 %v246
        %v408 = vunpack.c.h.b16 %v246
        %v409 = vunpack.c.l.b16 %v247
        %v410 = vunpack.c.h.b16 %v247
        %v411 = vunpack.c.l.b16 %v248
        %v412 = vunpack.c.h.b16 %v248
        %v413 = vunpack.c.l.b16 %v249
        %v414 = vunpack.c.h.b16 %v249
        %v415 = vunpack.c.l.b16 %v250
        %v416 = vunpack.c.h.b16 %v250
        %v417 = vunpack.c.l.b16 %v251
        %v418 = vunpack.c.h.b16 %v251
        %v419 = vunpack.c.l.b16 %v252
        %v420 = vunpack.c.h.b16 %v252
        %v421 = vunpack.c.l.b16 %v253
        %v422 = vunpack.c.h.b16 %v253
        %v423 = vunpack.c.l.b16 %v254
        %v424 = vunpack.c.h.b16 %v254
        %v425 = vunpack.c.l.b16 %v255
        %v426 = vunpack.c.h.b16 %v255
        %v427 = vunpack.c.l.b16 %v256
        %v428 = vunpack.c.h.b16 %v256
        %v429 = vunpack.c.l.b16 %v257
        %v430 = vunpack.c.h.b16 %v257
        %v431 = vunpack.c.l.b16 %v258
        %v432 = vunpack.c.h.b16 %v258
        %v433 = vunpack.c.l.b16 %v259
        %v434 = vunpack.c.h.b16 %v259
        %v435 = vunpack.c.l.b16 %v260
        %v436 = vunpack.c.h.b16 %v260
        %v437 = vunpack.c.l.b16 %v261
        %v438 = vunpack.c.h.b16 %v261
        %v439 = vpack.c.b16 %v409, %v407
        %v440 = vpack.c.b16 %v410, %v408
        %v441 = vpack.c.b16 %v413, %v411
        %v442 = vpack.c.b16 %v414, %v412
        %v443 = vpack.c.b16 %v417, %v415
        %v444 = vpack.c.b16 %v418, %v416
        %v445 = vpack.c.b16 %v421, %v419
        %v446 = vpack.c.b16 %v422, %v420
        %v447 = vpack.c.b16 %v425, %v423
        %v448 = vpack.c.b16 %v426, %v424
        %v449 = vpack.c.b16 %v429, %v427
        %v450 = vpack.c.b16 %v430, %v428
        %v451 = vpack.c.b16 %v433, %v431
        %v452 = vpack.c.b16 %v434, %v432
        %v453 = vpack.c.b16 %v437, %v435
        %v454 = vpack.c.b16 %v438, %v436
        %v567 = vunpack.c.l.b16 %v262
        %v568 = vunpack.c.h.b16 %v262
        %v569 = vunpack.c.l.b16 %v263
        %v570 = vunpack.c.h.b16 %v263
        %v571 = vunpack.c.l.b16 %v264
        %v572 = vunpack.c.h.b16 %v264
        %v573 = vunpack.c.l.b16 %v265
        %v574 = vunpack.c.h.b16 %v265
        %v575 = vunpack.c.l.b16 %v266
        %v576 = vunpack.c.h.b16 %v266
        %v577 = vunpack.c.l.b16 %v267
        %v578 = vunpack.c.h.b16 %v267
        %v579 = vunpack.c.l.b16 %v268
        %v580 = vunpack.c.h.b16 %v268
        %v581 = vunpack.c.l.b16 %v269
        %v582 = vunpack.c.h.b16 %v269
        %v583 = vunpack.c.l.b16 %v270
        %v584 = vunpack.c.h.b16 %v270
        %v585 = vunpack.c.l.b16 %v271
        %v586 = vunpack.c.h.b16 %v271
        %v587 = vunpack.c.l.b16 %v272
        %v588 = vunpack.c.h.b16 %v272
        %v589 = vunpack.c.l.b16 %v273
        %v590 = vunpack.c.h.b16 %v273
        %v591 = vunpack.c.l.b16 %v274
        %v592 = vunpack.c.h.b16 %v274
        %v593 = vunpack.c.l.b16 %v275
        %v594 = vunpack.c.h.b16 %v275
        %v595 = vunpack.c.l.b16 %v276
        %v596 = vunpack.c.h.b16 %v276
        %v597 = vunpack.c.l.b16 %v277
        %v598 = vunpack.c.h.b16 %v277
        %v599 = vunpack.c.l.b16 %v278
        %v600 = vunpack.c.h.b16 %v278
        %v601 = vunpack.c.l.b16 %v279
        %v602 = vunpack.c.h.b16 %v279
        %v603 = vunpack.c.l.b16 %v280
        %v604 = vunpack.c.h.b16 %v280
        %v605 = vunpack.c.l.b16 %v281
        %v606 = vunpack.c.h.b16 %v281
        %v607 = vunpack.c.l.b16 %v282
        %v608 = vunpack.c.h.b16 %v282
        %v609 = vunpack.c.l.b16 %v283
        %v610 = vunpack.c.h.b16 %v283
        %v611 = vunpack.c.l.b16 %v284
        %v612 = vunpack.c.h.b16 %v284
        %v613 = vunpack.c.l.b16 %v285
        %v614 = vunpack.c.h.b16 %v285
        %v615 = vunpack.c.l.b16 %v286
        %v616 = vunpack.c.h.b16 %v286
        %v617 = vunpack.c.l.b16 %v287
        %v618 = vunpack.c.h.b16 %v287
        %v619 = vunpack.c.l.b16 %v288
        %v620 = vunpack.c.h.b16 %v288
        %v621 = vunpack.c.l.b16 %v289
        %v622 = vunpack.c.h.b16 %v289
        %v623 = vunpack.c.l.b16 %v290
        %v624 = vunpack.c.h.b16 %v290
        %v625 = vunpack.c.l.b16 %v291
        %v626 = vunpack.c.h.b16 %v291
        %v627 = vunpack.c.l.b16 %v292
        %v628 = vunpack.c.h.b16 %v292
        %v629 = vunpack.c.l.b16 %v293
        %v630 = vunpack.c.h.b16 %v293
        %v631 = vunpack.c.l.b16 %v294
        %v632 = vunpack.c.h.b16 %v294
        %v633 = vunpack.c.l.b16 %v295
        %v634 = vunpack.c.h.b16 %v295
        %v635 = vunpack.c.l.b16 %v296
        %v636 = vunpack.c.h.b16 %v296
        %v637 = vunpack.c.l.b16 %v297
        %v638 = vunpack.c.h.b16 %v297
        %v639 = vunpack.c.l.b16 %v298
        %v640 = vunpack.c.h.b16 %v298
        %v641 = vunpack.c.l.b16 %v299
        %v642 = vunpack.c.h.b16 %v299
        %v643 = vunpack.c.l.b16 %v300
        %v644 = vunpack.c.h.b16 %v300
        %v645 = vunpack.c.l.b16 %v301
        %v646 = vunpack.c.h.b16 %v301
        %v647 = vunpack.c.l.b16 %v302
        %v648 = vunpack.c.h.b16 %v302
        %v649 = vunpack.c.l.b16 %v303
        %v650 = vunpack.c.h.b16 %v303
        %v651 = vunpack.c.l.b16 %v304
        %v652 = vunpack.c.h.b16 %v304
        %v653 = vunpack.c.l.b16 %v305
        %v654 = vunpack.c.h.b16 %v305
        %v655 = vunpack.c.l.b16 %v306
        %v656 = vunpack.c.h.b16 %v306
        %v657 = vunpack.c.l.b16 %v307
        %v658 = vunpack.c.h.b16 %v307
        %v659 = vunpack.c.l.b16 %v308
        %v660 = vunpack.c.h.b16 %v308
        %v661 = vunpack.c.l.b16 %v309
        %v662 = vunpack.c.h.b16 %v309
        %v663 = vunpack.c.l.b16 %v310
        %v664 = vunpack.c.h.b16 %v310
        %v665 = vunpack.c.l.b16 %v311
        %v666 = vunpack.c.h.b16 %v311
        %v667 = vunpack.c.l.b16 %v312
        %v668 = vunpack.c.h.b16 %v312
        %v669 = vunpack.c.l.b16 %v313
        %v670 = vunpack.c.h.b16 %v313
        %v671 = vunpack.c.l.b16 %v314
        %v672 = vunpack.c.h.b16 %v314
        %v673 = vunpack.c.l.b16 %v315
        %v674 = vunpack.c.h.b16 %v315
        %v675 = vunpack.c.l.b16 %v316
        %v676 = vunpack.c.h.b16 %v316
        %v677 = vunpack.c.l.b16 %v317
        %v678 = vunpack.c.h.b16 %v317
        %v679 = vunpack.c.l.b16 %v318
        %v680 = vunpack.c.h.b16 %v318
        %v681 = vunpack.c.l.b16 %v319
        %v682 = vunpack.c.h.b16 %v319
        %v683 = vunpack.c.l.b16 %v320
        %v684 = vunpack.c.h.b16 %v320
        %v685 = vunpack.c.l.b16 %v321
        %v686 = vunpack.c.h.b16 %v321
        %v687 = vunpack.c.l.b16 %v322
        %v688 = vunpack.c.h.b16 %v322
        %v689 = vunpack.c.l.b16 %v323
        %v690 = vunpack.c.h.b16 %v323
        %v691 = vunpack.c.l.b16 %v324
        %v692 = vunpack.c.h.b16 %v324
        %v693 = vunpack.c.l.b16 %v325
        %v694 = vunpack.c.h.b16 %v325
        %v695 = vunpack.c.l.b16 %v326
        %v696 = vunpack.c.h.b16 %v326
        %v697 = vunpack.c.l.b16 %v327
        %v698 = vunpack.c.h.b16 %v327
        %v699 = vunpack.c.l.b16 %v328
        %v700 = vunpack.c.h.b16 %v328
        %v701 = vunpack.c.l.b16 %v329
        %v702 = vunpack.c.h.b16 %v329
        %v703 = vunpack.c.l.b16 %v330
        %v704 = vunpack.c.h.b16 %v330
        %v705 = vunpack.c.l.b16 %v331
        %v706 = vunpack.c.h.b16 %v331
        %v707 = vunpack.c.l.b16 %v332
        %v708 = vunpack.c.h.b16 %v332
        %v709 = vunpack.c.l.b16 %v333
        %v710 = vunpack.c.h.b16 %v333
        %v711 = vunpack.c.l.b16 %v334
        %v712 = vunpack.c.h.b16 %v334
        %v713 = vunpack.c.l.b16 %v335
        %v714 = vunpack.c.h.b16 %v335
        %v715 = vunpack.c.l.b16 %v336
        %v716 = vunpack.c.h.b16 %v336
        %v717 = vunpack.c.l.b16 %v337
        %v718 = vunpack.c.h.b16 %v337
        %v719 = vunpack.c.l.b16 %v338
        %v720 = vunpack.c.h.b16 %v338
        %v721 = vunpack.c.l.b16 %v339
        %v722 = vunpack.c.h.b16 %v339
        %v723 = vunpack.c.l.b16 %v340
        %v724 = vunpack.c.h.b16 %v340
        %v725 = vunpack.c.l.b16 %v341
        %v726 = vunpack.c.h.b16 %v341
        %v727 = vunpack.c.l.b16 %v342
        %v728 = vunpack.c.h.b16 %v342
        %v729 = vunpack.c.l.b16 %v343
        %v730 = vunpack.c.h.b16 %v343
        %v731 = vunpack.c.l.b16 %v344
        %v732 = vunpack.c.h.b16 %v344
        %v733 = vunpack.c.l.b16 %v345
        %v734 = vunpack.c.h.b16 %v345
        %v735 = vunpack.c.l.b16 %v346
        %v736 = vunpack.c.h.b16 %v346
        %v737 = vunpack.c.l.b16 %v347
        %v738 = vunpack.c.h.b16 %v347
        %v739 = vunpack.c.l.b16 %v348
        %v740 = vunpack.c.h.b16 %v348
        %v741 = vunpack.c.l.b16 %v349
        %v742 = vunpack.c.h.b16 %v349
        %v743 = vunpack.c.l.b16 %v350
        %v744 = vunpack.c.h.b16 %v350
        %v745 = vunpack.c.l.b16 %v351
        %v746 = vunpack.c.h.b16 %v351
        %v747 = vunpack.c.l.b16 %v352
        %v748 = vunpack.c.h.b16 %v352
        %v749 = vunpack.c.l.b16 %v353
        %v750 = vunpack.c.h.b16 %v353
        %v751 = vunpack.c.l.b16 %v354
        %v752 = vunpack.c.h.b16 %v354
        %v753 = vunpack.c.l.b16 %v355
        %v754 = vunpack.c.h.b16 %v355
        %v755 = vunpack.c.l.b16 %v356
        %v756 = vunpack.c.h.b16 %v356
        %v757 = vunpack.c.l.b16 %v357
        %v758 = vunpack.c.h.b16 %v357
        %v759 = vpack.c.b16 %v573, %v567
        %v760 = vpack.c.b16 %v574, %v568
        %v761 = vpack.c.b16 %v575, %v569
        %v762 = vpack.c.b16 %v576, %v570
        %v763 = vpack.c.b16 %v577, %v571
        %v764 = vpack.c.b16 %v578, %v572
        %v765 = vpack.c.b16 %v585, %v579
        %v766 = vpack.c.b16 %v586, %v580
        %v767 = vpack.c.b16 %v587, %v581
        %v768 = vpack.c.b16 %v588, %v582
        %v769 = vpack.c.b16 %v589, %v583
        %v770 = vpack.c.b16 %v590, %v584
        %v771 = vpack.c.b16 %v597, %v591
        %v772 = vpack.c.b16 %v598, %v592
        %v773 = vpack.c.b16 %v599, %v593
        %v774 = vpack.c.b16 %v600, %v594
        %v775 = vpack.c.b16 %v601, %v595
        %v776 = vpack.c.b16 %v602, %v596
        %v777 = vpack.c.b16 %v609, %v603
        %v778 = vpack.c.b16 %v610, %v604
        %v779 = vpack.c.b16 %v611, %v605
        %v780 = vpack.c.b16 %v612, %v606
        %v781 = vpack.c.b16 %v613, %v607
        %v782 = vpack.c.b16 %v614, %v608
        %v783 = vpack.c.b16 %v621, %v615
        %v784 = vpack.c.b16 %v622, %v616
        %v785 = vpack.c.b16 %v623, %v617
        %v786 = vpack.c.b16 %v624, %v618
        %v787 = vpack.c.b16 %v625, %v619
        %v788 = vpack.c.b16 %v626, %v620
        %v789 = vpack.c.b16 %v633, %v627
        %v790 = vpack.c.b16 %v634, %v628
        %v791 = vpack.c.b16 %v635, %v629
        %v792 = vpack.c.b16 %v636, %v630
        %v793 = vpack.c.b16 %v637, %v631
        %v794 = vpack.c.b16 %v638, %v632
        %v795 = vpack.c.b16 %v645, %v639
        %v796 = vpack.c.b16 %v646, %v640
        %v797 = vpack.c.b16 %v647, %v641
        %v798 = vpack.c.b16 %v648, %v642
        %v799 = vpack.c.b16 %v649, %v643
        %v800 = vpack.c.b16 %v650, %v644
        %v801 = vpack.c.b16 %v657, %v651
        %v802 = vpack.c.b16 %v658, %v652
        %v803 = vpack.c.b16 %v659, %v653
        %v804 = vpack.c.b16 %v660, %v654
        %v805 = vpack.c.b16 %v661, %v655
        %v806 = vpack.c.b16 %v662, %v656
        %v807 = vpack.c.b16 %v669, %v663
        %v808 = vpack.c.b16 %v670, %v664
        %v809 = vpack.c.b16 %v671, %v665
        %v810 = vpack.c.b16 %v672, %v666
        %v811 = vpack.c.b16 %v673, %v667
        %v812 = vpack.c.b16 %v674, %v668
        %v813 = vpack.c.b16 %v681, %v675
        %v814 = vpack.c.b16 %v682, %v676
        %v815 = vpack.c.b16 %v683, %v677
        %v816 = vpack.c.b16 %v684, %v678
        %v817 = vpack.c.b16 %v685, %v679
        %v818 = vpack.c.b16 %v686, %v680
        %v819 = vpack.c.b16 %v693, %v687
        %v820 = vpack.c.b16 %v694, %v688
        %v821 = vpack.c.b16 %v695, %v689
        %v822 = vpack.c.b16 %v696, %v690
        %v823 = vpack.c.b16 %v697, %v691
        %v824 = vpack.c.b16 %v698, %v692
        %v825 = vpack.c.b16 %v705, %v699
        %v826 = vpack.c.b16 %v706, %v700
        %v827 = vpack.c.b16 %v707, %v701
        %v828 = vpack.c.b16 %v708, %v702
        %v829 = vpack.c.b16 %v709, %v703
        %v830 = vpack.c.b16 %v710, %v704
        %v831 = vpack.c.b16 %v717, %v711
        %v832 = vpack.c.b16 %v718, %v712
        %v833 = vpack.c.b16 %v719, %v713
        %v834 = vpack.c.b16 %v720, %v714
        %v835 = vpack.c.b16 %v721, %v715
        %v836 = vpack.c.b16 %v722, %v716
        %v837 = vpack.c.b16 %v729, %v723
        %v838 = vpack.c.b16 %v730, %v724
        %v839 = vpack.c.b16 %v731, %v725
        %v840 = vpack.c.b16 %v732, %v726
        %v841 = vpack.c.b16 %v733, %v727
        %v842 = vpack.c.b16 %v734, %v728
        %v843 = vpack.c.b16 %v741, %v735
        %v844 = vpack.c.b16 %v742, %v736
        %v845 = vpack.c.b16 %v743, %v737
        %v846 = vpack.c.b16 %v744, %v738
        %v847 = vpack.c.b16 %v745, %v739
        %v848 = vpack.c.b16 %v746, %v740
        %v849 = vpack.c.b16 %v753, %v747
        %v850 = vpack.c.b16 %v754, %v748
        %v851 = vpack.c.b16 %v755, %v749
        %v852 = vpack.c.b16 %v756, %v750
        %v853 = vpack.c.b16 %v757, %v751
        %v854 = vpack.c.b16 %v758, %v752
        %951 = vmatprep.subr.bf16.mxu0 %v802
        %952 = vmatpush1.bf16.msra.mxu0 %v801
        %953 = vmatprep.subr.bf16.mxu0 %v796
        %954 = vmatpush1.bf16.msra.mxu0 %v795
        %955 = vmatprep.subr.bf16.mxu0 %v790
        %956 = vmatpush1.bf16.msra.mxu0 %v789
        %957 = vmatprep.subr.bf16.mxu0 %v784
        %958 = vmatpush1.bf16.msra.mxu0 %v783
        %959 = vmatprep.subr.bf16.mxu0 %v778
        %960 = vmatpush1.bf16.msra.mxu0 %v777
        %961 = vmatprep.subr.bf16.mxu0 %v772
        %962 = vmatpush1.bf16.msra.mxu0 %v771
        %963 = vmatprep.subr.bf16.mxu0 %v766
        %964 = vmatpush1.bf16.msra.mxu0 %v765
        %965 = vmatprep.subr.bf16.mxu0 %v760
        %966 = vmatpush1.bf16.msra.mxu0 %v759
        %967 = vmatprep.subr.bf16.mxu0 %v850
        %968 = vmatpush2.bf16.msra.mxu0 %v849
        %969 = vmatprep.subr.bf16.mxu0 %v844
        %970 = vmatpush2.bf16.msra.mxu0 %v843
        %971 = vmatprep.subr.bf16.mxu0 %v838
        %972 = vmatpush2.bf16.msra.mxu0 %v837
        %973 = vmatprep.subr.bf16.mxu0 %v832
        %974 = vmatpush2.bf16.msra.mxu0 %v831
        %975 = vmatprep.subr.bf16.mxu0 %v826
        %976 = vmatpush2.bf16.msra.mxu0 %v825
        %977 = vmatprep.subr.bf16.mxu0 %v820
        %978 = vmatpush2.bf16.msra.mxu0 %v819
        %979 = vmatprep.subr.bf16.mxu0 %v814
        %980 = vmatpush2.bf16.msra.mxu0 %v813
        %981 = vmatprep.subr.bf16.mxu0 %v808
        %982 = vmatpush2.bf16.msra.mxu0 %v807
        %983 = vmatprep.mubr.bf16.mxu0 %v440
        %984 = vmatmul.mubr.bf16.gmra.mxu0 %v439
        %v985 = vpop.f32.mrf.mxu0
        %v986 = vadd.f32 0.0, %v985
        %v987 = vpop.f32.mrf.mxu0
        %v988 = vadd.f32 0.0, %v987
        %v989 = vpop.f32.mrf.mxu0
        %v990 = vadd.f32 0.0, %v989
        %v991 = vpop.f32.mrf.mxu0
        %v992 = vadd.f32 0.0, %v991
        %993 = vmatprep.mubr.bf16.mxu0 %v442
        %994 = vmatmul.mubr.bf16.gmra.mxu0 %v441
        %v995 = vpop.f32.mrf.mxu0
        %v996 = vadd.f32 0.0, %v995
        %v997 = vpop.f32.mrf.mxu0
        %v998 = vadd.f32 0.0, %v997
        %v999 = vpop.f32.mrf.mxu0
        %v1000 = vadd.f32 0.0, %v999
        %v1001 = vpop.f32.mrf.mxu0
        %v1002 = vadd.f32 0.0, %v1001
        %1003 = vmatprep.mubr.bf16.mxu0 %v444
        %1004 = vmatmul.mubr.bf16.gmra.mxu0 %v443
        %v1005 = vpop.f32.mrf.mxu0
        %v1006 = vadd.f32 0.0, %v1005
        %v1007 = vpop.f32.mrf.mxu0
        %v1008 = vadd.f32 0.0, %v1007
        %v1009 = vpop.f32.mrf.mxu0
        %v1010 = vadd.f32 0.0, %v1009
        %v1011 = vpop.f32.mrf.mxu0
        %v1012 = vadd.f32 0.0, %v1011
        %1013 = vmatprep.mubr.bf16.mxu0 %v446
        %1014 = vmatmul.mubr.bf16.gmra.mxu0 %v445
        %v1015 = vpop.f32.mrf.mxu0
        %v1016 = vadd.f32 0.0, %v1015
        %v1017 = vpop.f32.mrf.mxu0
        %v1018 = vadd.f32 0.0, %v1017
        %v1019 = vpop.f32.mrf.mxu0
        %v1020 = vadd.f32 0.0, %v1019
        %v1021 = vpop.f32.mrf.mxu0
        %v1022 = vadd.f32 0.0, %v1021
        %1023 = vmatprep.mubr.bf16.mxu0 %v448
        %1024 = vmatmul.mubr.bf16.gmra.mxu0 %v447
        %v1025 = vpop.f32.mrf.mxu0
        %v1026 = vadd.f32 0.0, %v1025
        %v1027 = vpop.f32.mrf.mxu0
        %v1028 = vadd.f32 0.0, %v1027
        %v1029 = vpop.f32.mrf.mxu0
        %v1030 = vadd.f32 0.0, %v1029
        %v1031 = vpop.f32.mrf.mxu0
        %v1032 = vadd.f32 0.0, %v1031
        %1033 = vmatprep.mubr.bf16.mxu0 %v450
        %1034 = vmatmul.mubr.bf16.gmra.mxu0 %v449
        %v1035 = vpop.f32.mrf.mxu0
        %v1036 = vadd.f32 0.0, %v1035
        %v1037 = vpop.f32.mrf.mxu0
        %v1038 = vadd.f32 0.0, %v1037
        %v1039 = vpop.f32.mrf.mxu0
        %v1040 = vadd.f32 0.0, %v1039
        %v1041 = vpop.f32.mrf.mxu0
        %v1042 = vadd.f32 0.0, %v1041
        %1043 = vmatprep.mubr.bf16.mxu0 %v452
        %1044 = vmatmul.mubr.bf16.gmra.mxu0 %v451
        %v1045 = vpop.f32.mrf.mxu0
        %v1046 = vadd.f32 0.0, %v1045
        %v1047 = vpop.f32.mrf.mxu0
        %v1048 = vadd.f32 0.0, %v1047
        %v1049 = vpop.f32.mrf.mxu0
        %v1050 = vadd.f32 0.0, %v1049
        %v1051 = vpop.f32.mrf.mxu0
        %v1052 = vadd.f32 0.0, %v1051
        %1053 = vmatprep.mubr.bf16.mxu0 %v454
        %1054 = vmatmul.mubr.bf16.gmra.mxu0 %v453
        %v1055 = vpop.f32.mrf.mxu0
        %v1056 = vadd.f32 0.0, %v1055
        %v1057 = vpop.f32.mrf.mxu0
        %v1058 = vadd.f32 0.0, %v1057
        %v1059 = vpop.f32.mrf.mxu0
        %v1060 = vadd.f32 0.0, %v1059
        %v1061 = vpop.f32.mrf.mxu0
        %v1062 = vadd.f32 0.0, %v1061
        %1063 = vdwg.mxu0
        %1064 = vmatprep.subr.bf16.mxu0 %v804
        %1065 = vmatpush1.bf16.msra.mxu0 %v803
        %1066 = vmatprep.subr.bf16.mxu0 %v798
        %1067 = vmatpush1.bf16.msra.mxu0 %v797
        %1068 = vmatprep.subr.bf16.mxu0 %v792
        %1069 = vmatpush1.bf16.msra.mxu0 %v791
        %1070 = vmatprep.subr.bf16.mxu0 %v786
        %1071 = vmatpush1.bf16.msra.mxu0 %v785
        %1072 = vmatprep.subr.bf16.mxu0 %v780
        %1073 = vmatpush1.bf16.msra.mxu0 %v779
        %1074 = vmatprep.subr.bf16.mxu0 %v774
        %1075 = vmatpush1.bf16.msra.mxu0 %v773
        %1076 = vmatprep.subr.bf16.mxu0 %v768
        %1077 = vmatpush1.bf16.msra.mxu0 %v767
        %1078 = vmatprep.subr.bf16.mxu0 %v762
        %1079 = vmatpush1.bf16.msra.mxu0 %v761
        %1080 = vmatprep.subr.bf16.mxu0 %v852
        %1081 = vmatpush2.bf16.msra.mxu0 %v851
        %1082 = vmatprep.subr.bf16.mxu0 %v846
        %1083 = vmatpush2.bf16.msra.mxu0 %v845
        %1084 = vmatprep.subr.bf16.mxu0 %v840
        %1085 = vmatpush2.bf16.msra.mxu0 %v839
        %1086 = vmatprep.subr.bf16.mxu0 %v834
        %1087 = vmatpush2.bf16.msra.mxu0 %v833
        %1088 = vmatprep.subr.bf16.mxu0 %v828
        %1089 = vmatpush2.bf16.msra.mxu0 %v827
        %1090 = vmatprep.subr.bf16.mxu0 %v822
        %1091 = vmatpush2.bf16.msra.mxu0 %v821
        %1092 = vmatprep.subr.bf16.mxu0 %v816
        %1093 = vmatpush2.bf16.msra.mxu0 %v815
        %1094 = vmatprep.subr.bf16.mxu0 %v810
        %1095 = vmatpush2.bf16.msra.mxu0 %v809
        %1096 = vmatprep.mubr.bf16.mxu0 %v440
        %1097 = vmatmul.mubr.bf16.gmra.mxu0 %v439
        %v1098 = vpop.f32.mrf.mxu0
        %v1099 = vadd.f32 0.0, %v1098
        %v1100 = vpop.f32.mrf.mxu0
        %v1101 = vadd.f32 0.0, %v1100
        %v1102 = vpop.f32.mrf.mxu0
        %v1103 = vadd.f32 0.0, %v1102
        %v1104 = vpop.f32.mrf.mxu0
        %v1105 = vadd.f32 0.0, %v1104
        %1106 = vmatprep.mubr.bf16.mxu0 %v442
        %1107 = vmatmul.mubr.bf16.gmra.mxu0 %v441
        %v1108 = vpop.f32.mrf.mxu0
        %v1109 = vadd.f32 0.0, %v1108
        %v1110 = vpop.f32.mrf.mxu0
        %v1111 = vadd.f32 0.0, %v1110
        %v1112 = vpop.f32.mrf.mxu0
        %v1113 = vadd.f32 0.0, %v1112
        %v1114 = vpop.f32.mrf.mxu0
        %v1115 = vadd.f32 0.0, %v1114
        %1116 = vmatprep.mubr.bf16.mxu0 %v444
        %1117 = vmatmul.mubr.bf16.gmra.mxu0 %v443
        %v1118 = vpop.f32.mrf.mxu0
        %v1119 = vadd.f32 0.0, %v1118
        %v1120 = vpop.f32.mrf.mxu0
        %v1121 = vadd.f32 0.0, %v1120
        %v1122 = vpop.f32.mrf.mxu0
        %v1123 = vadd.f32 0.0, %v1122
        %v1124 = vpop.f32.mrf.mxu0
        %v1125 = vadd.f32 0.0, %v1124
        %1126 = vmatprep.mubr.bf16.mxu0 %v446
        %1127 = vmatmul.mubr.bf16.gmra.mxu0 %v445
        %v1128 = vpop.f32.mrf.mxu0
        %v1129 = vadd.f32 0.0, %v1128
        %v1130 = vpop.f32.mrf.mxu0
        %v1131 = vadd.f32 0.0, %v1130
        %v1132 = vpop.f32.mrf.mxu0
        %v1133 = vadd.f32 0.0, %v1132
        %v1134 = vpop.f32.mrf.mxu0
        %v1135 = vadd.f32 0.0, %v1134
        %1136 = vmatprep.mubr.bf16.mxu0 %v448
        %1137 = vmatmul.mubr.bf16.gmra.mxu0 %v447
        %v1138 = vpop.f32.mrf.mxu0
        %v1139 = vadd.f32 0.0, %v1138
        %v1140 = vpop.f32.mrf.mxu0
        %v1141 = vadd.f32 0.0, %v1140
        %v1142 = vpop.f32.mrf.mxu0
        %v1143 = vadd.f32 0.0, %v1142
        %v1144 = vpop.f32.mrf.mxu0
        %v1145 = vadd.f32 0.0, %v1144
        %1146 = vmatprep.mubr.bf16.mxu0 %v450
        %1147 = vmatmul.mubr.bf16.gmra.mxu0 %v449
        %v1148 = vpop.f32.mrf.mxu0
        %v1149 = vadd.f32 0.0, %v1148
        %v1150 = vpop.f32.mrf.mxu0
        %v1151 = vadd.f32 0.0, %v1150
        %v1152 = vpop.f32.mrf.mxu0
        %v1153 = vadd.f32 0.0, %v1152
        %v1154 = vpop.f32.mrf.mxu0
        %v1155 = vadd.f32 0.0, %v1154
        %1156 = vmatprep.mubr.bf16.mxu0 %v452
        %1157 = vmatmul.mubr.bf16.gmra.mxu0 %v451
        %v1158 = vpop.f32.mrf.mxu0
        %v1159 = vadd.f32 0.0, %v1158
        %v1160 = vpop.f32.mrf.mxu0
        %v1161 = vadd.f32 0.0, %v1160
        %v1162 = vpop.f32.mrf.mxu0
        %v1163 = vadd.f32 0.0, %v1162
        %v1164 = vpop.f32.mrf.mxu0
        %v1165 = vadd.f32 0.0, %v1164
        %1166 = vmatprep.mubr.bf16.mxu0 %v454
        %1167 = vmatmul.mubr.bf16.gmra.mxu0 %v453
        %v1168 = vpop.f32.mrf.mxu0
        %v1169 = vadd.f32 0.0, %v1168
        %v1170 = vpop.f32.mrf.mxu0
        %v1171 = vadd.f32 0.0, %v1170
        %v1172 = vpop.f32.mrf.mxu0
        %v1173 = vadd.f32 0.0, %v1172
        %v1174 = vpop.f32.mrf.mxu0
        %v1175 = vadd.f32 0.0, %v1174
        %1176 = vdwg.mxu0
        %1177 = vmatprep.subr.bf16.mxu0 %v806
        %1178 = vmatpush1.bf16.msra.mxu0 %v805
        %1179 = vmatprep.subr.bf16.mxu0 %v800
        %1180 = vmatpush1.bf16.msra.mxu0 %v799
        %1181 = vmatprep.subr.bf16.mxu0 %v794
        %1182 = vmatpush1.bf16.msra.mxu0 %v793
        %1183 = vmatprep.subr.bf16.mxu0 %v788
        %1184 = vmatpush1.bf16.msra.mxu0 %v787
        %1185 = vmatprep.subr.bf16.mxu0 %v782
        %1186 = vmatpush1.bf16.msra.mxu0 %v781
        %1187 = vmatprep.subr.bf16.mxu0 %v776
        %1188 = vmatpush1.bf16.msra.mxu0 %v775
        %1189 = vmatprep.subr.bf16.mxu0 %v770
        %1190 = vmatpush1.bf16.msra.mxu0 %v769
        %1191 = vmatprep.subr.bf16.mxu0 %v764
        %1192 = vmatpush1.bf16.msra.mxu0 %v763
        %1193 = vmatprep.subr.bf16.mxu0 %v854
        %1194 = vmatpush2.bf16.msra.mxu0 %v853
        %1195 = vmatprep.subr.bf16.mxu0 %v848
        %1196 = vmatpush2.bf16.msra.mxu0 %v847
        %1197 = vmatprep.subr.bf16.mxu0 %v842
        %1198 = vmatpush2.bf16.msra.mxu0 %v841
        %1199 = vmatprep.subr.bf16.mxu0 %v836
        %1200 = vmatpush2.bf16.msra.mxu0 %v835
        %1201 = vmatprep.subr.bf16.mxu0 %v830
        %1202 = vmatpush2.bf16.msra.mxu0 %v829
        %1203 = vmatprep.subr.bf16.mxu0 %v824
        %1204 = vmatpush2.bf16.msra.mxu0 %v823
        %1205 = vmatprep.subr.bf16.mxu0 %v818
        %1206 = vmatpush2.bf16.msra.mxu0 %v817
        %1207 = vmatprep.subr.bf16.mxu0 %v812
        %1208 = vmatpush2.bf16.msra.mxu0 %v811
        %1209 = vmatprep.mubr.bf16.mxu0 %v440
        %1210 = vmatmul.mubr.bf16.gmra.mxu0 %v439
        %v1211 = vpop.f32.mrf.mxu0
        %v1212 = vadd.f32 0.0, %v1211
        %v1213 = vpop.f32.mrf.mxu0
        %v1214 = vadd.f32 0.0, %v1213
        %v1215 = vpop.f32.mrf.mxu0
        %v1216 = vadd.f32 0.0, %v1215
        %v1217 = vpop.f32.mrf.mxu0
        %v1218 = vadd.f32 0.0, %v1217
        %1219 = vmatprep.mubr.bf16.mxu0 %v442
        %1220 = vmatmul.mubr.bf16.gmra.mxu0 %v441
        %v1221 = vpop.f32.mrf.mxu0
        %v1222 = vadd.f32 0.0, %v1221
        %v1223 = vpop.f32.mrf.mxu0
        %v1224 = vadd.f32 0.0, %v1223
        %v1225 = vpop.f32.mrf.mxu0
        %v1226 = vadd.f32 0.0, %v1225
        %v1227 = vpop.f32.mrf.mxu0
        %v1228 = vadd.f32 0.0, %v1227
        %1229 = vmatprep.mubr.bf16.mxu0 %v444
        %1230 = vmatmul.mubr.bf16.gmra.mxu0 %v443
        %v1231 = vpop.f32.mrf.mxu0
        %v1232 = vadd.f32 0.0, %v1231
        %v1233 = vpop.f32.mrf.mxu0
        %v1234 = vadd.f32 0.0, %v1233
        %v1235 = vpop.f32.mrf.mxu0
        %v1236 = vadd.f32 0.0, %v1235
        %v1237 = vpop.f32.mrf.mxu0
        %v1238 = vadd.f32 0.0, %v1237
        %1239 = vmatprep.mubr.bf16.mxu0 %v446
        %1240 = vmatmul.mubr.bf16.gmra.mxu0 %v445
        %v1241 = vpop.f32.mrf.mxu0
        %v1242 = vadd.f32 0.0, %v1241
        %v1243 = vpop.f32.mrf.mxu0
        %v1244 = vadd.f32 0.0, %v1243
        %v1245 = vpop.f32.mrf.mxu0
        %v1246 = vadd.f32 0.0, %v1245
        %v1247 = vpop.f32.mrf.mxu0
        %v1248 = vadd.f32 0.0, %v1247
        %1249 = vmatprep.mubr.bf16.mxu0 %v448
        %1250 = vmatmul.mubr.bf16.gmra.mxu0 %v447
        %v1251 = vpop.f32.mrf.mxu0
        %v1252 = vadd.f32 0.0, %v1251
        %v1253 = vpop.f32.mrf.mxu0
        %v1254 = vadd.f32 0.0, %v1253
        %v1255 = vpop.f32.mrf.mxu0
        %v1256 = vadd.f32 0.0, %v1255
        %v1257 = vpop.f32.mrf.mxu0
        %v1258 = vadd.f32 0.0, %v1257
        %1259 = vmatprep.mubr.bf16.mxu0 %v450
        %1260 = vmatmul.mubr.bf16.gmra.mxu0 %v449
        %v1261 = vpop.f32.mrf.mxu0
        %v1262 = vadd.f32 0.0, %v1261
        %v1263 = vpop.f32.mrf.mxu0
        %v1264 = vadd.f32 0.0, %v1263
        %v1265 = vpop.f32.mrf.mxu0
        %v1266 = vadd.f32 0.0, %v1265
        %v1267 = vpop.f32.mrf.mxu0
        %v1268 = vadd.f32 0.0, %v1267
        %1269 = vmatprep.mubr.bf16.mxu0 %v452
        %1270 = vmatmul.mubr.bf16.gmra.mxu0 %v451
        %v1271 = vpop.f32.mrf.mxu0
        %v1272 = vadd.f32 0.0, %v1271
        %v1273 = vpop.f32.mrf.mxu0
        %v1274 = vadd.f32 0.0, %v1273
        %v1275 = vpop.f32.mrf.mxu0
        %v1276 = vadd.f32 0.0, %v1275
        %v1277 = vpop.f32.mrf.mxu0
        %v1278 = vadd.f32 0.0, %v1277
        %1279 = vmatprep.mubr.bf16.mxu0 %v454
        %1280 = vmatmul.mubr.bf16.gmra.mxu0 %v453
        %v1281 = vpop.f32.mrf.mxu0
        %v1282 = vadd.f32 0.0, %v1281
        %v1283 = vpop.f32.mrf.mxu0
        %v1284 = vadd.f32 0.0, %v1283
        %v1285 = vpop.f32.mrf.mxu0
        %v1286 = vadd.f32 0.0, %v1285
        %v1287 = vpop.f32.mrf.mxu0
        %v1288 = vadd.f32 0.0, %v1287
        %1289 = vdwg.mxu0
        %v1290 = vmul.f32 %v986, 0.125
        %v1291 = vmul.f32 %v988, 0.125
        %v1292 = vmul.f32 %v990, 0.125
        %v1293 = vmul.f32 %v992, 0.125
        %v1294 = vmul.f32 %v996, 0.125
        %v1295 = vmul.f32 %v998, 0.125
        %v1296 = vmul.f32 %v1000, 0.125
        %v1297 = vmul.f32 %v1002, 0.125
        %v1298 = vmul.f32 %v1006, 0.125
        %v1299 = vmul.f32 %v1008, 0.125
        %v1300 = vmul.f32 %v1010, 0.125
        %v1301 = vmul.f32 %v1012, 0.125
        %v1302 = vmul.f32 %v1016, 0.125
        %v1303 = vmul.f32 %v1018, 0.125
        %v1304 = vmul.f32 %v1020, 0.125
        %v1305 = vmul.f32 %v1022, 0.125
        %v1306 = vmul.f32 %v1026, 0.125
        %v1307 = vmul.f32 %v1028, 0.125
        %v1308 = vmul.f32 %v1030, 0.125
        %v1309 = vmul.f32 %v1032, 0.125
        %v1310 = vmul.f32 %v1036, 0.125
        %v1311 = vmul.f32 %v1038, 0.125
        %v1312 = vmul.f32 %v1040, 0.125
        %v1313 = vmul.f32 %v1042, 0.125
        %v1314 = vmul.f32 %v1046, 0.125
        %v1315 = vmul.f32 %v1048, 0.125
        %v1316 = vmul.f32 %v1050, 0.125
        %v1317 = vmul.f32 %v1052, 0.125
        %v1318 = vmul.f32 %v1056, 0.125
        %v1319 = vmul.f32 %v1058, 0.125
        %v1320 = vmul.f32 %v1060, 0.125
        %v1321 = vmul.f32 %v1062, 0.125
        %v1322 = vpack.c.bf16 %v1292, %v1290
        %v1323 = vpack.c.bf16 %v1293, %v1291
        %v1324 = vpack.c.bf16 %v1296, %v1294
        %v1325 = vpack.c.bf16 %v1297, %v1295
        %v1326 = vpack.c.bf16 %v1300, %v1298
        %v1327 = vpack.c.bf16 %v1301, %v1299
        %v1328 = vpack.c.bf16 %v1304, %v1302
        %v1329 = vpack.c.bf16 %v1305, %v1303
        %v1330 = vpack.c.bf16 %v1308, %v1306
        %v1331 = vpack.c.bf16 %v1309, %v1307
        %v1332 = vpack.c.bf16 %v1312, %v1310
        %v1333 = vpack.c.bf16 %v1313, %v1311
        %v1334 = vpack.c.bf16 %v1316, %v1314
        %v1335 = vpack.c.bf16 %v1317, %v1315
        %v1336 = vpack.c.bf16 %v1320, %v1318
        %v1337 = vpack.c.bf16 %v1321, %v1319
        %v1338 = vpack.c.bf16 %v1103, %v1099
        %v1339 = vpack.c.bf16 %v1105, %v1101
        %v1340 = vpack.c.bf16 %v1113, %v1109
        %v1341 = vpack.c.bf16 %v1115, %v1111
        %v1342 = vpack.c.bf16 %v1123, %v1119
        %v1343 = vpack.c.bf16 %v1125, %v1121
        %v1344 = vpack.c.bf16 %v1133, %v1129
        %v1345 = vpack.c.bf16 %v1135, %v1131
        %v1346 = vpack.c.bf16 %v1143, %v1139
        %v1347 = vpack.c.bf16 %v1145, %v1141
        %v1348 = vpack.c.bf16 %v1153, %v1149
        %v1349 = vpack.c.bf16 %v1155, %v1151
        %v1350 = vpack.c.bf16 %v1163, %v1159
        %v1351 = vpack.c.bf16 %v1165, %v1161
        %v1352 = vpack.c.bf16 %v1173, %v1169
        %v1353 = vpack.c.bf16 %v1175, %v1171
        %v1354 = vpack.c.bf16 %v1216, %v1212
        %v1355 = vpack.c.bf16 %v1218, %v1214
        %v1356 = vpack.c.bf16 %v1226, %v1222
        %v1357 = vpack.c.bf16 %v1228, %v1224
        %v1358 = vpack.c.bf16 %v1236, %v1232
        %v1359 = vpack.c.bf16 %v1238, %v1234
        %v1360 = vpack.c.bf16 %v1246, %v1242
        %v1361 = vpack.c.bf16 %v1248, %v1244
        %v1362 = vpack.c.bf16 %v1256, %v1252
        %v1363 = vpack.c.bf16 %v1258, %v1254
        %v1364 = vpack.c.bf16 %v1266, %v1262
        %v1365 = vpack.c.bf16 %v1268, %v1264
        %v1366 = vpack.c.bf16 %v1276, %v1272
        %v1367 = vpack.c.bf16 %v1278, %v1274
        %v1368 = vpack.c.bf16 %v1286, %v1282
        %v1369 = vpack.c.bf16 %v1288, %v1284
        %v1370 = vlaneseq
        %v1371 = vshrl.u32 %v1370, 7
        %v1372 = vadd.s32 %v1371, 8
        %v1373 = vadd.s32 %v1371, 16
        %v1374 = vadd.s32 %v1371, 24
        %v1375 = vadd.s32 %v1371, 32
        %v1376 = vadd.s32 %v1371, 40
        %v1377 = vadd.s32 %v1371, 48
        %v1378 = vadd.s32 %v1371, 56
        %v1379 = vadd.s32 %v1371, 64
        %v1380 = vadd.s32 %v1371, 72
        %v1381 = vadd.s32 %v1371, 80
        %v1382 = vadd.s32 %v1371, 88
        %v1383 = vadd.s32 %v1371, 96
        %v1384 = vadd.s32 %v1371, 104
        %v1385 = vadd.s32 %v1371, 112
        %v1386 = vadd.s32 %v1371, 120
        %v1387 = vlaneseq
        %v1388 = vand.u32 %v1387, 127
        %vm1389 = vcmp.le.s32.totalorder %v1388, %v1371
        %vm1390 = vcmp.le.s32.totalorder %v1388, %v1372
        %vm1391 = vcmp.le.s32.totalorder %v1388, %v1373
        %vm1392 = vcmp.le.s32.totalorder %v1388, %v1374
        %vm1393 = vcmp.le.s32.totalorder %v1388, %v1375
        %vm1394 = vcmp.le.s32.totalorder %v1388, %v1376
        %vm1395 = vcmp.le.s32.totalorder %v1388, %v1377
        %vm1396 = vcmp.le.s32.totalorder %v1388, %v1378
        %vm1397 = vcmp.le.s32.totalorder %v1388, %v1379
        %vm1398 = vcmp.le.s32.totalorder %v1388, %v1380
        %vm1399 = vcmp.le.s32.totalorder %v1388, %v1381
        %vm1400 = vcmp.le.s32.totalorder %v1388, %v1382
        %vm1401 = vcmp.le.s32.totalorder %v1388, %v1383
        %vm1402 = vcmp.le.s32.totalorder %v1388, %v1384
        %vm1403 = vcmp.le.s32.totalorder %v1388, %v1385
        %vm1404 = vcmp.le.s32.totalorder %v1388, %v1386
        %v1405 = vsel %vm1389, 0.0, -1e+30
        %v1406 = vsel %vm1390, 0.0, -1e+30
        %v1407 = vsel %vm1391, 0.0, -1e+30
        %v1408 = vsel %vm1392, 0.0, -1e+30
        %v1409 = vsel %vm1393, 0.0, -1e+30
        %v1410 = vsel %vm1394, 0.0, -1e+30
        %v1411 = vsel %vm1395, 0.0, -1e+30
        %v1412 = vsel %vm1396, 0.0, -1e+30
        %v1413 = vsel %vm1397, 0.0, -1e+30
        %v1414 = vsel %vm1398, 0.0, -1e+30
        %v1415 = vsel %vm1399, 0.0, -1e+30
        %v1416 = vsel %vm1400, 0.0, -1e+30
        %v1417 = vsel %vm1401, 0.0, -1e+30
        %v1418 = vsel %vm1402, 0.0, -1e+30
        %v1419 = vsel %vm1403, 0.0, -1e+30
        %v1420 = vsel %vm1404, 0.0, -1e+30
        %vm1421 = vcmask 523264
        %v1423 = vsel %vm1421, %v1322, 0
        %v1426 = vsel %vm1421, %v1324, 0
        %v1429 = vsel %vm1421, %v1326, 0
        %v1432 = vsel %vm1421, %v1328, 0
        %v1435 = vsel %vm1421, %v1330, 0
        %v1438 = vsel %vm1421, %v1332, 0
        %v1441 = vsel %vm1421, %v1334, 0
        %v1444 = vsel %vm1421, %v1336, 0
        %v1447 = vsel %vm1421, %v1338, 0
        %v1450 = vsel %vm1421, %v1340, 0
        %v1453 = vsel %vm1421, %v1342, 0
        %v1456 = vsel %vm1421, %v1344, 0
        %v1459 = vsel %vm1421, %v1346, 0
        %v1462 = vsel %vm1421, %v1348, 0
        %v1465 = vsel %vm1421, %v1350, 0
        %v1468 = vsel %vm1421, %v1352, 0
        %1470 = vmatprep.subr.bf16.mxu0 0
        %1471 = vmatpush1.bf16.xpose.msra.mxu0 %v1468
        %1472 = vmatprep.subr.bf16.mxu0 0
        %1473 = vmatpush1.bf16.xpose.msra.mxu0 %v1465
        %1474 = vmatprep.subr.bf16.mxu0 0
        %1475 = vmatpush1.bf16.xpose.msra.mxu0 %v1462
        %1476 = vmatprep.subr.bf16.mxu0 0
        %1477 = vmatpush1.bf16.xpose.msra.mxu0 %v1459
        %1478 = vmatprep.subr.bf16.mxu0 0
        %1479 = vmatpush1.bf16.xpose.msra.mxu0 %v1456
        %1480 = vmatprep.subr.bf16.mxu0 0
        %1481 = vmatpush1.bf16.xpose.msra.mxu0 %v1453
        %1482 = vmatprep.subr.bf16.mxu0 0
        %1483 = vmatpush1.bf16.xpose.msra.mxu0 %v1450
        %1484 = vmatprep.subr.bf16.mxu0 0
        %1485 = vmatpush1.bf16.xpose.msra.mxu0 %v1447
        %1486 = vmatprep.subr.bf16.mxu0 0
        %1487 = vmatpush2.bf16.xpose.msra.mxu0 0
        %1488 = vmatprep.subr.bf16.mxu0 0
        %1489 = vmatpush2.bf16.xpose.msra.mxu0 0
        %1490 = vmatprep.subr.bf16.mxu0 0
        %1491 = vmatpush2.bf16.xpose.msra.mxu0 0
        %1492 = vmatprep.subr.bf16.mxu0 0
        %1493 = vmatpush2.bf16.xpose.msra.mxu0 0
        %1494 = vmatprep.subr.bf16.mxu0 0
        %1495 = vmatpush2.bf16.xpose.msra.mxu0 0
        %1496 = vmatprep.subr.bf16.mxu0 0
        %1497 = vmatpush2.bf16.xpose.msra.mxu0 0
        %1498 = vmatprep.subr.bf16.mxu0 0
        %1499 = vmatpush2.bf16.xpose.msra.mxu0 0
        %1500 = vmatprep.subr.bf16.mxu0 0
        %1501 = vmatpush2.bf16.xpose.msra.mxu0 0
        %1502 = vmatprep.mubr.bf16.mxu0 0
        %1503 = vmatmul.mubr.bf16.gmra.mxu0 %v1423
        %v1504 = vpop.f32.mrf.mxu0
        %v1505 = vadd.f32 %v1405, %v1504
        %v1506 = vpop.f32.mrf.mxu0
        %v1507 = vpop.f32.mrf.mxu0
        %v1508 = vadd.f32 %v1406, %v1507
        %v1509 = vpop.f32.mrf.mxu0
        %1510 = vmatprep.mubr.bf16.mxu0 0
        %1511 = vmatmul.mubr.bf16.gmra.mxu0 %v1426
        %v1512 = vpop.f32.mrf.mxu0
        %v1513 = vadd.f32 %v1407, %v1512
        %v1514 = vpop.f32.mrf.mxu0
        %v1515 = vpop.f32.mrf.mxu0
        %v1516 = vadd.f32 %v1408, %v1515
        %v1517 = vpop.f32.mrf.mxu0
        %1518 = vmatprep.mubr.bf16.mxu0 0
        %1519 = vmatmul.mubr.bf16.gmra.mxu0 %v1429
        %v1520 = vpop.f32.mrf.mxu0
        %v1521 = vadd.f32 %v1409, %v1520
        %v1522 = vpop.f32.mrf.mxu0
        %v1523 = vpop.f32.mrf.mxu0
        %v1524 = vadd.f32 %v1410, %v1523
        %v1525 = vpop.f32.mrf.mxu0
        %1526 = vmatprep.mubr.bf16.mxu0 0
        %1527 = vmatmul.mubr.bf16.gmra.mxu0 %v1432
        %v1528 = vpop.f32.mrf.mxu0
        %v1529 = vadd.f32 %v1411, %v1528
        %v1530 = vpop.f32.mrf.mxu0
        %v1531 = vpop.f32.mrf.mxu0
        %v1532 = vadd.f32 %v1412, %v1531
        %v1533 = vpop.f32.mrf.mxu0
        %1534 = vmatprep.mubr.bf16.mxu0 0
        %1535 = vmatmul.mubr.bf16.gmra.mxu0 %v1435
        %v1536 = vpop.f32.mrf.mxu0
        %v1537 = vadd.f32 %v1413, %v1536
        %v1538 = vpop.f32.mrf.mxu0
        %v1539 = vpop.f32.mrf.mxu0
        %v1540 = vadd.f32 %v1414, %v1539
        %v1541 = vpop.f32.mrf.mxu0
        %1542 = vmatprep.mubr.bf16.mxu0 0
        %1543 = vmatmul.mubr.bf16.gmra.mxu0 %v1438
        %v1544 = vpop.f32.mrf.mxu0
        %v1545 = vadd.f32 %v1415, %v1544
        %v1546 = vpop.f32.mrf.mxu0
        %v1547 = vpop.f32.mrf.mxu0
        %v1548 = vadd.f32 %v1416, %v1547
        %v1549 = vpop.f32.mrf.mxu0
        %1550 = vmatprep.mubr.bf16.mxu0 0
        %1551 = vmatmul.mubr.bf16.gmra.mxu0 %v1441
        %v1552 = vpop.f32.mrf.mxu0
        %v1553 = vadd.f32 %v1417, %v1552
        %v1554 = vpop.f32.mrf.mxu0
        %v1555 = vpop.f32.mrf.mxu0
        %v1556 = vadd.f32 %v1418, %v1555
        %v1557 = vpop.f32.mrf.mxu0
        %1558 = vmatprep.mubr.bf16.mxu0 0
        %1559 = vmatmul.mubr.bf16.gmra.mxu0 %v1444
        %v1560 = vpop.f32.mrf.mxu0
        %v1561 = vadd.f32 %v1419, %v1560
        %v1562 = vpop.f32.mrf.mxu0
        %v1563 = vpop.f32.mrf.mxu0
        %v1564 = vadd.f32 %v1420, %v1563
        %v1565 = vpop.f32.mrf.mxu0
        %1566 = vdwg.mxu0
        %1567 = vmax.xlane.f32.xlu0 %v1505
        %v1568 = vpop.xlane.xlu0 %1567
        %1569 = vmax.xlane.f32.xlu0 %v1508
        %v1570 = vpop.xlane.xlu0 %1569
        %1571 = vmax.xlane.f32.xlu0 %v1513
        %v1572 = vpop.xlane.xlu0 %1571
        %1573 = vmax.xlane.f32.xlu0 %v1516
        %v1574 = vpop.xlane.xlu0 %1573
        %1575 = vmax.xlane.f32.xlu0 %v1521
        %v1576 = vpop.xlane.xlu0 %1575
        %1577 = vmax.xlane.f32.xlu0 %v1524
        %v1578 = vpop.xlane.xlu0 %1577
        %1579 = vmax.xlane.f32.xlu0 %v1529
        %v1580 = vpop.xlane.xlu0 %1579
        %1581 = vmax.xlane.f32.xlu0 %v1532
        %v1582 = vpop.xlane.xlu0 %1581
        %1583 = vmax.xlane.f32.xlu0 %v1537
        %v1584 = vpop.xlane.xlu0 %1583
        %1585 = vmax.xlane.f32.xlu0 %v1540
        %v1586 = vpop.xlane.xlu0 %1585
        %1587 = vmax.xlane.f32.xlu0 %v1545
        %v1588 = vpop.xlane.xlu0 %1587
        %1589 = vmax.xlane.f32.xlu0 %v1548
        %v1590 = vpop.xlane.xlu0 %1589
        %1591 = vmax.xlane.f32.xlu0 %v1553
        %v1592 = vpop.xlane.xlu0 %1591
        %1593 = vmax.xlane.f32.xlu0 %v1556
        %v1594 = vpop.xlane.xlu0 %1593
        %1595 = vmax.xlane.f32.xlu0 %v1561
        %v1596 = vpop.xlane.xlu0 %1595
        %1597 = vmax.xlane.f32.xlu0 %v1564
        %v1598 = vpop.xlane.xlu0 %1597
        %v1599 = vsub.f32 %v1505, %v1568
        %v1600 = vsub.f32 %v1508, %v1570
        %v1601 = vsub.f32 %v1513, %v1572
        %v1602 = vsub.f32 %v1516, %v1574
        %v1603 = vsub.f32 %v1521, %v1576
        %v1604 = vsub.f32 %v1524, %v1578
        %v1605 = vsub.f32 %v1529, %v1580
        %v1606 = vsub.f32 %v1532, %v1582
        %v1607 = vsub.f32 %v1537, %v1584
        %v1608 = vsub.f32 %v1540, %v1586
        %v1609 = vsub.f32 %v1545, %v1588
        %v1610 = vsub.f32 %v1548, %v1590
        %v1611 = vsub.f32 %v1553, %v1592
        %v1612 = vsub.f32 %v1556, %v1594
        %v1613 = vsub.f32 %v1561, %v1596
        %v1614 = vsub.f32 %v1564, %v1598
        %v1615 = vmul.f32 %v1599, 1.442695
        %v1616 = vpow.pop %v1615
        %v1617 = vmul.f32 %v1600, 1.442695
        %v1618 = vpow.pop %v1617
        %v1619 = vmul.f32 %v1601, 1.442695
        %v1620 = vpow.pop %v1619
        %v1621 = vmul.f32 %v1602, 1.442695
        %v1622 = vpow.pop %v1621
        %v1623 = vmul.f32 %v1603, 1.442695
        %v1624 = vpow.pop %v1623
        %v1625 = vmul.f32 %v1604, 1.442695
        %v1626 = vpow.pop %v1625
        %v1627 = vmul.f32 %v1605, 1.442695
        %v1628 = vpow.pop %v1627
        %v1629 = vmul.f32 %v1606, 1.442695
        %v1630 = vpow.pop %v1629
        %v1631 = vmul.f32 %v1607, 1.442695
        %v1632 = vpow.pop %v1631
        %v1633 = vmul.f32 %v1608, 1.442695
        %v1634 = vpow.pop %v1633
        %v1635 = vmul.f32 %v1609, 1.442695
        %v1636 = vpow.pop %v1635
        %v1637 = vmul.f32 %v1610, 1.442695
        %v1638 = vpow.pop %v1637
        %v1639 = vmul.f32 %v1611, 1.442695
        %v1640 = vpow.pop %v1639
        %v1641 = vmul.f32 %v1612, 1.442695
        %v1642 = vpow.pop %v1641
        %v1643 = vmul.f32 %v1613, 1.442695
        %v1644 = vpow.pop %v1643
        %v1645 = vmul.f32 %v1614, 1.442695
        %v1646 = vpow.pop %v1645
        %1647 = vadd.xlane.f32.xlu0 %v1616
        %v1648 = vpop.xlane.xlu0 %1647
        %1649 = vadd.xlane.f32.xlu0 %v1618
        %v1650 = vpop.xlane.xlu0 %1649
        %1651 = vadd.xlane.f32.xlu0 %v1620
        %v1652 = vpop.xlane.xlu0 %1651
        %1653 = vadd.xlane.f32.xlu0 %v1622
        %v1654 = vpop.xlane.xlu0 %1653
        %1655 = vadd.xlane.f32.xlu0 %v1624
        %v1656 = vpop.xlane.xlu0 %1655
        %1657 = vadd.xlane.f32.xlu0 %v1626
        %v1658 = vpop.xlane.xlu0 %1657
        %1659 = vadd.xlane.f32.xlu0 %v1628
        %v1660 = vpop.xlane.xlu0 %1659
        %1661 = vadd.xlane.f32.xlu0 %v1630
        %v1662 = vpop.xlane.xlu0 %1661
        %1663 = vadd.xlane.f32.xlu0 %v1632
        %v1664 = vpop.xlane.xlu0 %1663
        %1665 = vadd.xlane.f32.xlu0 %v1634
        %v1666 = vpop.xlane.xlu0 %1665
        %1667 = vadd.xlane.f32.xlu0 %v1636
        %v1668 = vpop.xlane.xlu0 %1667
        %1669 = vadd.xlane.f32.xlu0 %v1638
        %v1670 = vpop.xlane.xlu0 %1669
        %1671 = vadd.xlane.f32.xlu0 %v1640
        %v1672 = vpop.xlane.xlu0 %1671
        %1673 = vadd.xlane.f32.xlu0 %v1642
        %v1674 = vpop.xlane.xlu0 %1673
        %1675 = vadd.xlane.f32.xlu0 %v1644
        %v1676 = vpop.xlane.xlu0 %1675
        %1677 = vadd.xlane.f32.xlu0 %v1646
        %v1678 = vpop.xlane.xlu0 %1677
        %v1679 = vpack.c.bf16 %v1618, %v1616
        %v1680 = vpack.c.bf16 %v1622, %v1620
        %v1681 = vpack.c.bf16 %v1626, %v1624
        %v1682 = vpack.c.bf16 %v1630, %v1628
        %v1683 = vpack.c.bf16 %v1634, %v1632
        %v1684 = vpack.c.bf16 %v1638, %v1636
        %v1685 = vpack.c.bf16 %v1642, %v1640
        %v1686 = vpack.c.bf16 %v1646, %v1644
        %1687 = vmatprep.subr.bf16.mxu0 0
        %1688 = vmatpush1.bf16.msra.mxu0 %v1368
        %1689 = vmatprep.subr.bf16.mxu0 0
        %1690 = vmatpush1.bf16.msra.mxu0 %v1366
        %1691 = vmatprep.subr.bf16.mxu0 0
        %1692 = vmatpush1.bf16.msra.mxu0 %v1364
        %1693 = vmatprep.subr.bf16.mxu0 0
        %1694 = vmatpush1.bf16.msra.mxu0 %v1362
        %1695 = vmatprep.subr.bf16.mxu0 0
        %1696 = vmatpush1.bf16.msra.mxu0 %v1360
        %1697 = vmatprep.subr.bf16.mxu0 0
        %1698 = vmatpush1.bf16.msra.mxu0 %v1358
        %1699 = vmatprep.subr.bf16.mxu0 0
        %1700 = vmatpush1.bf16.msra.mxu0 %v1356
        %1701 = vmatprep.subr.bf16.mxu0 0
        %1702 = vmatpush1.bf16.msra.mxu0 %v1354
        %1703 = vmatprep.subr.bf16.mxu0 0
        %1704 = vmatpush2.bf16.msra.mxu0 0
        %1705 = vmatprep.subr.bf16.mxu0 0
        %1706 = vmatpush2.bf16.msra.mxu0 0
        %1707 = vmatprep.subr.bf16.mxu0 0
        %1708 = vmatpush2.bf16.msra.mxu0 0
        %1709 = vmatprep.subr.bf16.mxu0 0
        %1710 = vmatpush2.bf16.msra.mxu0 0
        %1711 = vmatprep.subr.bf16.mxu0 0
        %1712 = vmatpush2.bf16.msra.mxu0 0
        %1713 = vmatprep.subr.bf16.mxu0 0
        %1714 = vmatpush2.bf16.msra.mxu0 0
        %1715 = vmatprep.subr.bf16.mxu0 0
        %1716 = vmatpush2.bf16.msra.mxu0 0
        %1717 = vmatprep.subr.bf16.mxu0 0
        %1718 = vmatpush2.bf16.msra.mxu0 0
        %1719 = vmatprep.mubr.bf16.mxu0 0
        %1720 = vmatmul.mubr.bf16.gmra.mxu0 %v1679
        %v1721 = vpop.f32.mrf.mxu0
        %v1722 = vadd.f32 0.0, %v1721
        %v1723 = vpop.f32.mrf.mxu0
        %v1724 = vpop.f32.mrf.mxu0
        %v1725 = vadd.f32 0.0, %v1724
        %v1726 = vpop.f32.mrf.mxu0
        %1727 = vmatprep.mubr.bf16.mxu0 0
        %1728 = vmatmul.mubr.bf16.gmra.mxu0 %v1680
        %v1729 = vpop.f32.mrf.mxu0
        %v1730 = vadd.f32 0.0, %v1729
        %v1731 = vpop.f32.mrf.mxu0
        %v1732 = vpop.f32.mrf.mxu0
        %v1733 = vadd.f32 0.0, %v1732
        %v1734 = vpop.f32.mrf.mxu0
        %1735 = vmatprep.mubr.bf16.mxu0 0
        %1736 = vmatmul.mubr.bf16.gmra.mxu0 %v1681
        %v1737 = vpop.f32.mrf.mxu0
        %v1738 = vadd.f32 0.0, %v1737
        %v1739 = vpop.f32.mrf.mxu0
        %v1740 = vpop.f32.mrf.mxu0
        %v1741 = vadd.f32 0.0, %v1740
        %v1742 = vpop.f32.mrf.mxu0
        %1743 = vmatprep.mubr.bf16.mxu0 0
        %1744 = vmatmul.mubr.bf16.gmra.mxu0 %v1682
        %v1745 = vpop.f32.mrf.mxu0
        %v1746 = vadd.f32 0.0, %v1745
        %v1747 = vpop.f32.mrf.mxu0
        %v1748 = vpop.f32.mrf.mxu0
        %v1749 = vadd.f32 0.0, %v1748
        %v1750 = vpop.f32.mrf.mxu0
        %1751 = vmatprep.mubr.bf16.mxu0 0
        %1752 = vmatmul.mubr.bf16.gmra.mxu0 %v1683
        %v1753 = vpop.f32.mrf.mxu0
        %v1754 = vadd.f32 0.0, %v1753
        %v1755 = vpop.f32.mrf.mxu0
        %v1756 = vpop.f32.mrf.mxu0
        %v1757 = vadd.f32 0.0, %v1756
        %v1758 = vpop.f32.mrf.mxu0
        %1759 = vmatprep.mubr.bf16.mxu0 0
        %1760 = vmatmul.mubr.bf16.gmra.mxu0 %v1684
        %v1761 = vpop.f32.mrf.mxu0
        %v1762 = vadd.f32 0.0, %v1761
        %v1763 = vpop.f32.mrf.mxu0
        %v1764 = vpop.f32.mrf.mxu0
        %v1765 = vadd.f32 0.0, %v1764
        %v1766 = vpop.f32.mrf.mxu0
        %1767 = vmatprep.mubr.bf16.mxu0 0
        %1768 = vmatmul.mubr.bf16.gmra.mxu0 %v1685
        %v1769 = vpop.f32.mrf.mxu0
        %v1770 = vadd.f32 0.0, %v1769
        %v1771 = vpop.f32.mrf.mxu0
        %v1772 = vpop.f32.mrf.mxu0
        %v1773 = vadd.f32 0.0, %v1772
        %v1774 = vpop.f32.mrf.mxu0
        %1775 = vmatprep.mubr.bf16.mxu0 0
        %1776 = vmatmul.mubr.bf16.gmra.mxu0 %v1686
        %v1777 = vpop.f32.mrf.mxu0
        %v1778 = vadd.f32 0.0, %v1777
        %v1779 = vpop.f32.mrf.mxu0
        %v1780 = vpop.f32.mrf.mxu0
        %v1781 = vadd.f32 0.0, %v1780
        %v1782 = vpop.f32.mrf.mxu0
        %1783 = vdwg.mxu0
        %v1784 = vrcp.pop %v1648
        %v1785 = vmul.f32 %v1722, %v1784
        %v1786 = vrcp.pop %v1650
        %v1787 = vmul.f32 %v1725, %v1786
        %v1788 = vrcp.pop %v1652
        %v1789 = vmul.f32 %v1730, %v1788
        %v1790 = vrcp.pop %v1654
        %v1791 = vmul.f32 %v1733, %v1790
        %v1792 = vrcp.pop %v1656
        %v1793 = vmul.f32 %v1738, %v1792
        %v1794 = vrcp.pop %v1658
        %v1795 = vmul.f32 %v1741, %v1794
        %v1796 = vrcp.pop %v1660
        %v1797 = vmul.f32 %v1746, %v1796
        %v1798 = vrcp.pop %v1662
        %v1799 = vmul.f32 %v1749, %v1798
        %v1800 = vrcp.pop %v1664
        %v1801 = vmul.f32 %v1754, %v1800
        %v1802 = vrcp.pop %v1666
        %v1803 = vmul.f32 %v1757, %v1802
        %v1804 = vrcp.pop %v1668
        %v1805 = vmul.f32 %v1762, %v1804
        %v1806 = vrcp.pop %v1670
        %v1807 = vmul.f32 %v1765, %v1806
        %v1808 = vrcp.pop %v1672
        %v1809 = vmul.f32 %v1770, %v1808
        %v1810 = vrcp.pop %v1674
        %v1811 = vmul.f32 %v1773, %v1810
        %v1812 = vrcp.pop %v1676
        %v1813 = vmul.f32 %v1778, %v1812
        %v1814 = vrcp.pop %v1678
        %v1815 = vmul.f32 %v1781, %v1814
        %v1816 = vpack.c.bf16 %v1787, %v1785
        %v1817 = vpack.c.bf16 %v1791, %v1789
        %v1818 = vpack.c.bf16 %v1795, %v1793
        %v1819 = vpack.c.bf16 %v1799, %v1797
        %v1820 = vpack.c.bf16 %v1803, %v1801
        %v1821 = vpack.c.bf16 %v1807, %v1805
        %v1822 = vpack.c.bf16 %v1811, %v1809
        %v1823 = vpack.c.bf16 %v1815, %v1813
        %1832 = vrot.lane.b32.xlu0 %v1322, 64
        %v1833 = vpop.permute.xlu0 %1832
        %1834 = vrot.lane.b32.xlu0 %v1324, 64
        %v1835 = vpop.permute.xlu0 %1834
        %1836 = vrot.lane.b32.xlu0 %v1326, 64
        %v1837 = vpop.permute.xlu0 %1836
        %1838 = vrot.lane.b32.xlu0 %v1328, 64
        %v1839 = vpop.permute.xlu0 %1838
        %1840 = vrot.lane.b32.xlu0 %v1330, 64
        %v1841 = vpop.permute.xlu0 %1840
        %1842 = vrot.lane.b32.xlu0 %v1332, 64
        %v1843 = vpop.permute.xlu0 %1842
        %1844 = vrot.lane.b32.xlu0 %v1334, 64
        %v1845 = vpop.permute.xlu0 %1844
        %1846 = vrot.lane.b32.xlu0 %v1336, 64
        %v1847 = vpop.permute.xlu0 %1846
        %1856 = vrot.lane.b32.xlu0 %v1338, 64
        %v1857 = vpop.permute.xlu0 %1856
        %1858 = vrot.lane.b32.xlu0 %v1340, 64
        %v1859 = vpop.permute.xlu0 %1858
        %1860 = vrot.lane.b32.xlu0 %v1342, 64
        %v1861 = vpop.permute.xlu0 %1860
        %1862 = vrot.lane.b32.xlu0 %v1344, 64
        %v1863 = vpop.permute.xlu0 %1862
        %1864 = vrot.lane.b32.xlu0 %v1346, 64
        %v1865 = vpop.permute.xlu0 %1864
        %1866 = vrot.lane.b32.xlu0 %v1348, 64
        %v1867 = vpop.permute.xlu0 %1866
        %1868 = vrot.lane.b32.xlu0 %v1350, 64
        %v1869 = vpop.permute.xlu0 %1868
        %1870 = vrot.lane.b32.xlu0 %v1352, 64
        %v1871 = vpop.permute.xlu0 %1870
        %v1873 = vsel %vm1421, %v1833, 0
        %v1876 = vsel %vm1421, %v1835, 0
        %v1879 = vsel %vm1421, %v1837, 0
        %v1882 = vsel %vm1421, %v1839, 0
        %v1885 = vsel %vm1421, %v1841, 0
        %v1888 = vsel %vm1421, %v1843, 0
        %v1891 = vsel %vm1421, %v1845, 0
        %v1894 = vsel %vm1421, %v1847, 0
        %v1897 = vsel %vm1421, %v1857, 0
        %v1900 = vsel %vm1421, %v1859, 0
        %v1903 = vsel %vm1421, %v1861, 0
        %v1906 = vsel %vm1421, %v1863, 0
        %v1909 = vsel %vm1421, %v1865, 0
        %v1912 = vsel %vm1421, %v1867, 0
        %v1915 = vsel %vm1421, %v1869, 0
        %v1918 = vsel %vm1421, %v1871, 0
        %1920 = vmatprep.subr.bf16.mxu0 0
        %1921 = vmatpush1.bf16.xpose.msra.mxu0 %v1918
        %1922 = vmatprep.subr.bf16.mxu0 0
        %1923 = vmatpush1.bf16.xpose.msra.mxu0 %v1915
        %1924 = vmatprep.subr.bf16.mxu0 0
        %1925 = vmatpush1.bf16.xpose.msra.mxu0 %v1912
        %1926 = vmatprep.subr.bf16.mxu0 0
        %1927 = vmatpush1.bf16.xpose.msra.mxu0 %v1909
        %1928 = vmatprep.subr.bf16.mxu0 0
        %1929 = vmatpush1.bf16.xpose.msra.mxu0 %v1906
        %1930 = vmatprep.subr.bf16.mxu0 0
        %1931 = vmatpush1.bf16.xpose.msra.mxu0 %v1903
        %1932 = vmatprep.subr.bf16.mxu0 0
        %1933 = vmatpush1.bf16.xpose.msra.mxu0 %v1900
        %1934 = vmatprep.subr.bf16.mxu0 0
        %1935 = vmatpush1.bf16.xpose.msra.mxu0 %v1897
        %1936 = vmatprep.subr.bf16.mxu0 0
        %1937 = vmatpush2.bf16.xpose.msra.mxu0 0
        %1938 = vmatprep.subr.bf16.mxu0 0
        %1939 = vmatpush2.bf16.xpose.msra.mxu0 0
        %1940 = vmatprep.subr.bf16.mxu0 0
        %1941 = vmatpush2.bf16.xpose.msra.mxu0 0
        %1942 = vmatprep.subr.bf16.mxu0 0
        %1943 = vmatpush2.bf16.xpose.msra.mxu0 0
        %1944 = vmatprep.subr.bf16.mxu0 0
        %1945 = vmatpush2.bf16.xpose.msra.mxu0 0
        %1946 = vmatprep.subr.bf16.mxu0 0
        %1947 = vmatpush2.bf16.xpose.msra.mxu0 0
        %1948 = vmatprep.subr.bf16.mxu0 0
        %1949 = vmatpush2.bf16.xpose.msra.mxu0 0
        %1950 = vmatprep.subr.bf16.mxu0 0
        %1951 = vmatpush2.bf16.xpose.msra.mxu0 0
        %1952 = vmatprep.mubr.bf16.mxu0 0
        %1953 = vmatmul.mubr.bf16.gmra.mxu0 %v1873
        %v1954 = vpop.f32.mrf.mxu0
        %v1955 = vadd.f32 %v1405, %v1954
        %v1956 = vpop.f32.mrf.mxu0
        %v1957 = vpop.f32.mrf.mxu0
        %v1958 = vadd.f32 %v1406, %v1957
        %v1959 = vpop.f32.mrf.mxu0
        %1960 = vmatprep.mubr.bf16.mxu0 0
        %1961 = vmatmul.mubr.bf16.gmra.mxu0 %v1876
        %v1962 = vpop.f32.mrf.mxu0
        %v1963 = vadd.f32 %v1407, %v1962
        %v1964 = vpop.f32.mrf.mxu0
        %v1965 = vpop.f32.mrf.mxu0
        %v1966 = vadd.f32 %v1408, %v1965
        %v1967 = vpop.f32.mrf.mxu0
        %1968 = vmatprep.mubr.bf16.mxu0 0
        %1969 = vmatmul.mubr.bf16.gmra.mxu0 %v1879
        %v1970 = vpop.f32.mrf.mxu0
        %v1971 = vadd.f32 %v1409, %v1970
        %v1972 = vpop.f32.mrf.mxu0
        %v1973 = vpop.f32.mrf.mxu0
        %v1974 = vadd.f32 %v1410, %v1973
        %v1975 = vpop.f32.mrf.mxu0
        %1976 = vmatprep.mubr.bf16.mxu0 0
        %1977 = vmatmul.mubr.bf16.gmra.mxu0 %v1882
        %v1978 = vpop.f32.mrf.mxu0
        %v1979 = vadd.f32 %v1411, %v1978
        %v1980 = vpop.f32.mrf.mxu0
        %v1981 = vpop.f32.mrf.mxu0
        %v1982 = vadd.f32 %v1412, %v1981
        %v1983 = vpop.f32.mrf.mxu0
        %1984 = vmatprep.mubr.bf16.mxu0 0
        %1985 = vmatmul.mubr.bf16.gmra.mxu0 %v1885
        %v1986 = vpop.f32.mrf.mxu0
        %v1987 = vadd.f32 %v1413, %v1986
        %v1988 = vpop.f32.mrf.mxu0
        %v1989 = vpop.f32.mrf.mxu0
        %v1990 = vadd.f32 %v1414, %v1989
        %v1991 = vpop.f32.mrf.mxu0
        %1992 = vmatprep.mubr.bf16.mxu0 0
        %1993 = vmatmul.mubr.bf16.gmra.mxu0 %v1888
        %v1994 = vpop.f32.mrf.mxu0
        %v1995 = vadd.f32 %v1415, %v1994
        %v1996 = vpop.f32.mrf.mxu0
        %v1997 = vpop.f32.mrf.mxu0
        %v1998 = vadd.f32 %v1416, %v1997
        %v1999 = vpop.f32.mrf.mxu0
        %2000 = vmatprep.mubr.bf16.mxu0 0
        %2001 = vmatmul.mubr.bf16.gmra.mxu0 %v1891
        %v2002 = vpop.f32.mrf.mxu0
        %v2003 = vadd.f32 %v1417, %v2002
        %v2004 = vpop.f32.mrf.mxu0
        %v2005 = vpop.f32.mrf.mxu0
        %v2006 = vadd.f32 %v1418, %v2005
        %v2007 = vpop.f32.mrf.mxu0
        %2008 = vmatprep.mubr.bf16.mxu0 0
        %2009 = vmatmul.mubr.bf16.gmra.mxu0 %v1894
        %v2010 = vpop.f32.mrf.mxu0
        %v2011 = vadd.f32 %v1419, %v2010
        %v2012 = vpop.f32.mrf.mxu0
        %v2013 = vpop.f32.mrf.mxu0
        %v2014 = vadd.f32 %v1420, %v2013
        %v2015 = vpop.f32.mrf.mxu0
        %2016 = vdwg.mxu0
        %2017 = vmax.xlane.f32.xlu0 %v1955
        %v2018 = vpop.xlane.xlu0 %2017
        %2019 = vmax.xlane.f32.xlu0 %v1958
        %v2020 = vpop.xlane.xlu0 %2019
        %2021 = vmax.xlane.f32.xlu0 %v1963
        %v2022 = vpop.xlane.xlu0 %2021
        %2023 = vmax.xlane.f32.xlu0 %v1966
        %v2024 = vpop.xlane.xlu0 %2023
        %2025 = vmax.xlane.f32.xlu0 %v1971
        %v2026 = vpop.xlane.xlu0 %2025
        %2027 = vmax.xlane.f32.xlu0 %v1974
        %v2028 = vpop.xlane.xlu0 %2027
        %2029 = vmax.xlane.f32.xlu0 %v1979
        %v2030 = vpop.xlane.xlu0 %2029
        %2031 = vmax.xlane.f32.xlu0 %v1982
        %v2032 = vpop.xlane.xlu0 %2031
        %2033 = vmax.xlane.f32.xlu0 %v1987
        %v2034 = vpop.xlane.xlu0 %2033
        %2035 = vmax.xlane.f32.xlu0 %v1990
        %v2036 = vpop.xlane.xlu0 %2035
        %2037 = vmax.xlane.f32.xlu0 %v1995
        %v2038 = vpop.xlane.xlu0 %2037
        %2039 = vmax.xlane.f32.xlu0 %v1998
        %v2040 = vpop.xlane.xlu0 %2039
        %2041 = vmax.xlane.f32.xlu0 %v2003
        %v2042 = vpop.xlane.xlu0 %2041
        %2043 = vmax.xlane.f32.xlu0 %v2006
        %v2044 = vpop.xlane.xlu0 %2043
        %2045 = vmax.xlane.f32.xlu0 %v2011
        %v2046 = vpop.xlane.xlu0 %2045
        %2047 = vmax.xlane.f32.xlu0 %v2014
        %v2048 = vpop.xlane.xlu0 %2047
        %v2049 = vsub.f32 %v1955, %v2018
        %v2050 = vsub.f32 %v1958, %v2020
        %v2051 = vsub.f32 %v1963, %v2022
        %v2052 = vsub.f32 %v1966, %v2024
        %v2053 = vsub.f32 %v1971, %v2026
        %v2054 = vsub.f32 %v1974, %v2028
        %v2055 = vsub.f32 %v1979, %v2030
        %v2056 = vsub.f32 %v1982, %v2032
        %v2057 = vsub.f32 %v1987, %v2034
        %v2058 = vsub.f32 %v1990, %v2036
        %v2059 = vsub.f32 %v1995, %v2038
        %v2060 = vsub.f32 %v1998, %v2040
        %v2061 = vsub.f32 %v2003, %v2042
        %v2062 = vsub.f32 %v2006, %v2044
        %v2063 = vsub.f32 %v2011, %v2046
        %v2064 = vsub.f32 %v2014, %v2048
        %v2065 = vmul.f32 %v2049, 1.442695
        %v2066 = vpow.pop %v2065
        %v2067 = vmul.f32 %v2050, 1.442695
        %v2068 = vpow.pop %v2067
        %v2069 = vmul.f32 %v2051, 1.442695
        %v2070 = vpow.pop %v2069
        %v2071 = vmul.f32 %v2052, 1.442695
        %v2072 = vpow.pop %v2071
        %v2073 = vmul.f32 %v2053, 1.442695
        %v2074 = vpow.pop %v2073
        %v2075 = vmul.f32 %v2054, 1.442695
        %v2076 = vpow.pop %v2075
        %v2077 = vmul.f32 %v2055, 1.442695
        %v2078 = vpow.pop %v2077
        %v2079 = vmul.f32 %v2056, 1.442695
        %v2080 = vpow.pop %v2079
        %v2081 = vmul.f32 %v2057, 1.442695
        %v2082 = vpow.pop %v2081
        %v2083 = vmul.f32 %v2058, 1.442695
        %v2084 = vpow.pop %v2083
        %v2085 = vmul.f32 %v2059, 1.442695
        %v2086 = vpow.pop %v2085
        %v2087 = vmul.f32 %v2060, 1.442695
        %v2088 = vpow.pop %v2087
        %v2089 = vmul.f32 %v2061, 1.442695
        %v2090 = vpow.pop %v2089
        %v2091 = vmul.f32 %v2062, 1.442695
        %v2092 = vpow.pop %v2091
        %v2093 = vmul.f32 %v2063, 1.442695
        %v2094 = vpow.pop %v2093
        %v2095 = vmul.f32 %v2064, 1.442695
        %v2096 = vpow.pop %v2095
        %2097 = vadd.xlane.f32.xlu0 %v2066
        %v2098 = vpop.xlane.xlu0 %2097
        %2099 = vadd.xlane.f32.xlu0 %v2068
        %v2100 = vpop.xlane.xlu0 %2099
        %2101 = vadd.xlane.f32.xlu0 %v2070
        %v2102 = vpop.xlane.xlu0 %2101
        %2103 = vadd.xlane.f32.xlu0 %v2072
        %v2104 = vpop.xlane.xlu0 %2103
        %2105 = vadd.xlane.f32.xlu0 %v2074
        %v2106 = vpop.xlane.xlu0 %2105
        %2107 = vadd.xlane.f32.xlu0 %v2076
        %v2108 = vpop.xlane.xlu0 %2107
        %2109 = vadd.xlane.f32.xlu0 %v2078
        %v2110 = vpop.xlane.xlu0 %2109
        %2111 = vadd.xlane.f32.xlu0 %v2080
        %v2112 = vpop.xlane.xlu0 %2111
        %2113 = vadd.xlane.f32.xlu0 %v2082
        %v2114 = vpop.xlane.xlu0 %2113
        %2115 = vadd.xlane.f32.xlu0 %v2084
        %v2116 = vpop.xlane.xlu0 %2115
        %2117 = vadd.xlane.f32.xlu0 %v2086
        %v2118 = vpop.xlane.xlu0 %2117
        %2119 = vadd.xlane.f32.xlu0 %v2088
        %v2120 = vpop.xlane.xlu0 %2119
        %2121 = vadd.xlane.f32.xlu0 %v2090
        %v2122 = vpop.xlane.xlu0 %2121
        %2123 = vadd.xlane.f32.xlu0 %v2092
        %v2124 = vpop.xlane.xlu0 %2123
        %2125 = vadd.xlane.f32.xlu0 %v2094
        %v2126 = vpop.xlane.xlu0 %2125
        %2127 = vadd.xlane.f32.xlu0 %v2096
        %v2128 = vpop.xlane.xlu0 %2127
        %v2129 = vpack.c.bf16 %v2068, %v2066
        %v2130 = vpack.c.bf16 %v2072, %v2070
        %v2131 = vpack.c.bf16 %v2076, %v2074
        %v2132 = vpack.c.bf16 %v2080, %v2078
        %v2133 = vpack.c.bf16 %v2084, %v2082
        %v2134 = vpack.c.bf16 %v2088, %v2086
        %v2135 = vpack.c.bf16 %v2092, %v2090
        %v2136 = vpack.c.bf16 %v2096, %v2094
        %2145 = vrot.lane.b32.xlu0 %v1354, 64
        %v2146 = vpop.permute.xlu0 %2145
        %2147 = vrot.lane.b32.xlu0 %v1356, 64
        %v2148 = vpop.permute.xlu0 %2147
        %2149 = vrot.lane.b32.xlu0 %v1358, 64
        %v2150 = vpop.permute.xlu0 %2149
        %2151 = vrot.lane.b32.xlu0 %v1360, 64
        %v2152 = vpop.permute.xlu0 %2151
        %2153 = vrot.lane.b32.xlu0 %v1362, 64
        %v2154 = vpop.permute.xlu0 %2153
        %2155 = vrot.lane.b32.xlu0 %v1364, 64
        %v2156 = vpop.permute.xlu0 %2155
        %2157 = vrot.lane.b32.xlu0 %v1366, 64
        %v2158 = vpop.permute.xlu0 %2157
        %2159 = vrot.lane.b32.xlu0 %v1368, 64
        %v2160 = vpop.permute.xlu0 %2159
        %2169 = vmatprep.subr.bf16.mxu0 0
        %2170 = vmatpush1.bf16.msra.mxu0 %v2160
        %2171 = vmatprep.subr.bf16.mxu0 0
        %2172 = vmatpush1.bf16.msra.mxu0 %v2158
        %2173 = vmatprep.subr.bf16.mxu0 0
        %2174 = vmatpush1.bf16.msra.mxu0 %v2156
        %2175 = vmatprep.subr.bf16.mxu0 0
        %2176 = vmatpush1.bf16.msra.mxu0 %v2154
        %2177 = vmatprep.subr.bf16.mxu0 0
        %2178 = vmatpush1.bf16.msra.mxu0 %v2152
        %2179 = vmatprep.subr.bf16.mxu0 0
        %2180 = vmatpush1.bf16.msra.mxu0 %v2150
        %2181 = vmatprep.subr.bf16.mxu0 0
        %2182 = vmatpush1.bf16.msra.mxu0 %v2148
        %2183 = vmatprep.subr.bf16.mxu0 0
        %2184 = vmatpush1.bf16.msra.mxu0 %v2146
        %2185 = vmatprep.subr.bf16.mxu0 0
        %2186 = vmatpush2.bf16.msra.mxu0 0
        %2187 = vmatprep.subr.bf16.mxu0 0
        %2188 = vmatpush2.bf16.msra.mxu0 0
        %2189 = vmatprep.subr.bf16.mxu0 0
        %2190 = vmatpush2.bf16.msra.mxu0 0
        %2191 = vmatprep.subr.bf16.mxu0 0
        %2192 = vmatpush2.bf16.msra.mxu0 0
        %2193 = vmatprep.subr.bf16.mxu0 0
        %2194 = vmatpush2.bf16.msra.mxu0 0
        %2195 = vmatprep.subr.bf16.mxu0 0
        %2196 = vmatpush2.bf16.msra.mxu0 0
        %2197 = vmatprep.subr.bf16.mxu0 0
        %2198 = vmatpush2.bf16.msra.mxu0 0
        %2199 = vmatprep.subr.bf16.mxu0 0
        %2200 = vmatpush2.bf16.msra.mxu0 0
        %2201 = vmatprep.mubr.bf16.mxu0 0
        %2202 = vmatmul.mubr.bf16.gmra.mxu0 %v2129
        %v2203 = vpop.f32.mrf.mxu0
        %v2204 = vadd.f32 0.0, %v2203
        %v2205 = vpop.f32.mrf.mxu0
        %v2206 = vpop.f32.mrf.mxu0
        %v2207 = vadd.f32 0.0, %v2206
        %v2208 = vpop.f32.mrf.mxu0
        %2209 = vmatprep.mubr.bf16.mxu0 0
        %2210 = vmatmul.mubr.bf16.gmra.mxu0 %v2130
        %v2211 = vpop.f32.mrf.mxu0
        %v2212 = vadd.f32 0.0, %v2211
        %v2213 = vpop.f32.mrf.mxu0
        %v2214 = vpop.f32.mrf.mxu0
        %v2215 = vadd.f32 0.0, %v2214
        %v2216 = vpop.f32.mrf.mxu0
        %2217 = vmatprep.mubr.bf16.mxu0 0
        %2218 = vmatmul.mubr.bf16.gmra.mxu0 %v2131
        %v2219 = vpop.f32.mrf.mxu0
        %v2220 = vadd.f32 0.0, %v2219
        %v2221 = vpop.f32.mrf.mxu0
        %v2222 = vpop.f32.mrf.mxu0
        %v2223 = vadd.f32 0.0, %v2222
        %v2224 = vpop.f32.mrf.mxu0
        %2225 = vmatprep.mubr.bf16.mxu0 0
        %2226 = vmatmul.mubr.bf16.gmra.mxu0 %v2132
        %v2227 = vpop.f32.mrf.mxu0
        %v2228 = vadd.f32 0.0, %v2227
        %v2229 = vpop.f32.mrf.mxu0
        %v2230 = vpop.f32.mrf.mxu0
        %v2231 = vadd.f32 0.0, %v2230
        %v2232 = vpop.f32.mrf.mxu0
        %2233 = vmatprep.mubr.bf16.mxu0 0
        %2234 = vmatmul.mubr.bf16.gmra.mxu0 %v2133
        %v2235 = vpop.f32.mrf.mxu0
        %v2236 = vadd.f32 0.0, %v2235
        %v2237 = vpop.f32.mrf.mxu0
        %v2238 = vpop.f32.mrf.mxu0
        %v2239 = vadd.f32 0.0, %v2238
        %v2240 = vpop.f32.mrf.mxu0
        %2241 = vmatprep.mubr.bf16.mxu0 0
        %2242 = vmatmul.mubr.bf16.gmra.mxu0 %v2134
        %v2243 = vpop.f32.mrf.mxu0
        %v2244 = vadd.f32 0.0, %v2243
        %v2245 = vpop.f32.mrf.mxu0
        %v2246 = vpop.f32.mrf.mxu0
        %v2247 = vadd.f32 0.0, %v2246
        %v2248 = vpop.f32.mrf.mxu0
        %2249 = vmatprep.mubr.bf16.mxu0 0
        %2250 = vmatmul.mubr.bf16.gmra.mxu0 %v2135
        %v2251 = vpop.f32.mrf.mxu0
        %v2252 = vadd.f32 0.0, %v2251
        %v2253 = vpop.f32.mrf.mxu0
        %v2254 = vpop.f32.mrf.mxu0
        %v2255 = vadd.f32 0.0, %v2254
        %v2256 = vpop.f32.mrf.mxu0
        %2257 = vmatprep.mubr.bf16.mxu0 0
        %2258 = vmatmul.mubr.bf16.gmra.mxu0 %v2136
        %v2259 = vpop.f32.mrf.mxu0
        %v2260 = vadd.f32 0.0, %v2259
        %v2261 = vpop.f32.mrf.mxu0
        %v2262 = vpop.f32.mrf.mxu0
        %v2263 = vadd.f32 0.0, %v2262
        %v2264 = vpop.f32.mrf.mxu0
        %2265 = vdwg.mxu0
        %v2266 = vrcp.pop %v2098
        %v2267 = vmul.f32 %v2204, %v2266
        %v2268 = vrcp.pop %v2100
        %v2269 = vmul.f32 %v2207, %v2268
        %v2270 = vrcp.pop %v2102
        %v2271 = vmul.f32 %v2212, %v2270
        %v2272 = vrcp.pop %v2104
        %v2273 = vmul.f32 %v2215, %v2272
        %v2274 = vrcp.pop %v2106
        %v2275 = vmul.f32 %v2220, %v2274
        %v2276 = vrcp.pop %v2108
        %v2277 = vmul.f32 %v2223, %v2276
        %v2278 = vrcp.pop %v2110
        %v2279 = vmul.f32 %v2228, %v2278
        %v2280 = vrcp.pop %v2112
        %v2281 = vmul.f32 %v2231, %v2280
        %v2282 = vrcp.pop %v2114
        %v2283 = vmul.f32 %v2236, %v2282
        %v2284 = vrcp.pop %v2116
        %v2285 = vmul.f32 %v2239, %v2284
        %v2286 = vrcp.pop %v2118
        %v2287 = vmul.f32 %v2244, %v2286
        %v2288 = vrcp.pop %v2120
        %v2289 = vmul.f32 %v2247, %v2288
        %v2290 = vrcp.pop %v2122
        %v2291 = vmul.f32 %v2252, %v2290
        %v2292 = vrcp.pop %v2124
        %v2293 = vmul.f32 %v2255, %v2292
        %v2294 = vrcp.pop %v2126
        %v2295 = vmul.f32 %v2260, %v2294
        %v2296 = vrcp.pop %v2128
        %v2297 = vmul.f32 %v2263, %v2296
        %v2298 = vpack.c.bf16 %v2269, %v2267
        %v2299 = vpack.c.bf16 %v2273, %v2271
        %v2300 = vpack.c.bf16 %v2277, %v2275
        %v2301 = vpack.c.bf16 %v2281, %v2279
        %v2302 = vpack.c.bf16 %v2285, %v2283
        %v2303 = vpack.c.bf16 %v2289, %v2287
        %v2304 = vpack.c.bf16 %v2293, %v2291
        %v2305 = vpack.c.bf16 %v2297, %v2295
        %v2314 = vunpack.c.l.b16 %v366
        %v2315 = vunpack.c.h.b16 %v366
        %v2316 = vunpack.c.l.b16 %v367
        %v2317 = vunpack.c.h.b16 %v367
        %v2318 = vunpack.c.l.b16 %v368
        %v2319 = vunpack.c.h.b16 %v368
        %v2320 = vunpack.c.l.b16 %v369
        %v2321 = vunpack.c.h.b16 %v369
        %v2322 = vunpack.c.l.b16 %v370
        %v2323 = vunpack.c.h.b16 %v370
        %v2324 = vunpack.c.l.b16 %v371
        %v2325 = vunpack.c.h.b16 %v371
        %v2326 = vunpack.c.l.b16 %v372
        %v2327 = vunpack.c.h.b16 %v372
        %v2328 = vunpack.c.l.b16 %v373
        %v2329 = vunpack.c.h.b16 %v373
        %v2330 = vpack.c.b16 %v2316, %v2314
        %v2331 = vpack.c.b16 %v2317, %v2315
        %v2332 = vpack.c.b16 %v2320, %v2318
        %v2333 = vpack.c.b16 %v2321, %v2319
        %v2334 = vpack.c.b16 %v2324, %v2322
        %v2335 = vpack.c.b16 %v2325, %v2323
        %v2336 = vpack.c.b16 %v2328, %v2326
        %v2337 = vpack.c.b16 %v2329, %v2327
        %v2347 = vsel %vm1421, %v2298, 0
        %v2350 = vsel %vm1421, %v2299, 0
        %v2353 = vsel %vm1421, %v2300, 0
        %v2356 = vsel %vm1421, %v2301, 0
        %v2359 = vsel %vm1421, %v2302, 0
        %v2362 = vsel %vm1421, %v2303, 0
        %v2365 = vsel %vm1421, %v2304, 0
        %v2368 = vsel %vm1421, %v2305, 0
        %2370 = vmatprep.subr.bf16.mxu0 0
        %2371 = vmatpush1.bf16.msra.mxu0 0
        %2372 = vmatprep.subr.bf16.mxu0 0
        %2373 = vmatpush1.bf16.msra.mxu0 0
        %2374 = vmatprep.subr.bf16.mxu0 0
        %2375 = vmatpush1.bf16.msra.mxu0 0
        %2376 = vmatprep.subr.bf16.mxu0 0
        %2377 = vmatpush1.bf16.msra.mxu0 0
        %2378 = vmatprep.subr.bf16.mxu0 %v2337
        %2379 = vmatpush1.bf16.msra.mxu0 %v2336
        %2380 = vmatprep.subr.bf16.mxu0 %v2335
        %2381 = vmatpush1.bf16.msra.mxu0 %v2334
        %2382 = vmatprep.subr.bf16.mxu0 %v2333
        %2383 = vmatpush1.bf16.msra.mxu0 %v2332
        %2384 = vmatprep.subr.bf16.mxu0 %v2331
        %2385 = vmatpush1.bf16.msra.mxu0 %v2330
        %2386 = vmatprep.subr.bf16.mxu0 0
        %2387 = vmatpush2.bf16.msra.mxu0 0
        %2388 = vmatprep.subr.bf16.mxu0 0
        %2389 = vmatpush2.bf16.msra.mxu0 0
        %2390 = vmatprep.subr.bf16.mxu0 0
        %2391 = vmatpush2.bf16.msra.mxu0 0
        %2392 = vmatprep.subr.bf16.mxu0 0
        %2393 = vmatpush2.bf16.msra.mxu0 0
        %2394 = vmatprep.subr.bf16.mxu0 0
        %2395 = vmatpush2.bf16.msra.mxu0 0
        %2396 = vmatprep.subr.bf16.mxu0 0
        %2397 = vmatpush2.bf16.msra.mxu0 0
        %2398 = vmatprep.subr.bf16.mxu0 0
        %2399 = vmatpush2.bf16.msra.mxu0 0
        %2400 = vmatprep.subr.bf16.mxu0 0
        %2401 = vmatpush2.bf16.msra.mxu0 0
        %2402 = vmatprep.mubr.bf16.mxu0 0
        %2403 = vmatmul.mubr.bf16.gmra.mxu0 %v2347
        %v2404 = vpop.f32.mrf.mxu0
        %v2405 = vadd.f32 0.0, %v2404
        %v2406 = vpop.f32.mrf.mxu0
        %v2407 = vadd.f32 0.0, %v2406
        %v2408 = vpop.f32.mrf.mxu0
        %v2409 = vadd.f32 0.0, %v2408
        %v2410 = vpop.f32.mrf.mxu0
        %v2411 = vadd.f32 0.0, %v2410
        %2412 = vmatprep.mubr.bf16.mxu0 0
        %2413 = vmatmul.mubr.bf16.gmra.mxu0 %v2350
        %v2414 = vpop.f32.mrf.mxu0
        %v2415 = vadd.f32 0.0, %v2414
        %v2416 = vpop.f32.mrf.mxu0
        %v2417 = vadd.f32 0.0, %v2416
        %v2418 = vpop.f32.mrf.mxu0
        %v2419 = vadd.f32 0.0, %v2418
        %v2420 = vpop.f32.mrf.mxu0
        %v2421 = vadd.f32 0.0, %v2420
        %2422 = vmatprep.mubr.bf16.mxu0 0
        %2423 = vmatmul.mubr.bf16.gmra.mxu0 %v2353
        %v2424 = vpop.f32.mrf.mxu0
        %v2425 = vadd.f32 0.0, %v2424
        %v2426 = vpop.f32.mrf.mxu0
        %v2427 = vadd.f32 0.0, %v2426
        %v2428 = vpop.f32.mrf.mxu0
        %v2429 = vadd.f32 0.0, %v2428
        %v2430 = vpop.f32.mrf.mxu0
        %v2431 = vadd.f32 0.0, %v2430
        %2432 = vmatprep.mubr.bf16.mxu0 0
        %2433 = vmatmul.mubr.bf16.gmra.mxu0 %v2356
        %v2434 = vpop.f32.mrf.mxu0
        %v2435 = vadd.f32 0.0, %v2434
        %v2436 = vpop.f32.mrf.mxu0
        %v2437 = vadd.f32 0.0, %v2436
        %v2438 = vpop.f32.mrf.mxu0
        %v2439 = vadd.f32 0.0, %v2438
        %v2440 = vpop.f32.mrf.mxu0
        %v2441 = vadd.f32 0.0, %v2440
        %2442 = vmatprep.mubr.bf16.mxu0 0
        %2443 = vmatmul.mubr.bf16.gmra.mxu0 %v2359
        %v2444 = vpop.f32.mrf.mxu0
        %v2445 = vadd.f32 0.0, %v2444
        %v2446 = vpop.f32.mrf.mxu0
        %v2447 = vadd.f32 0.0, %v2446
        %v2448 = vpop.f32.mrf.mxu0
        %v2449 = vadd.f32 0.0, %v2448
        %v2450 = vpop.f32.mrf.mxu0
        %v2451 = vadd.f32 0.0, %v2450
        %2452 = vmatprep.mubr.bf16.mxu0 0
        %2453 = vmatmul.mubr.bf16.gmra.mxu0 %v2362
        %v2454 = vpop.f32.mrf.mxu0
        %v2455 = vadd.f32 0.0, %v2454
        %v2456 = vpop.f32.mrf.mxu0
        %v2457 = vadd.f32 0.0, %v2456
        %v2458 = vpop.f32.mrf.mxu0
        %v2459 = vadd.f32 0.0, %v2458
        %v2460 = vpop.f32.mrf.mxu0
        %v2461 = vadd.f32 0.0, %v2460
        %2462 = vmatprep.mubr.bf16.mxu0 0
        %2463 = vmatmul.mubr.bf16.gmra.mxu0 %v2365
        %v2464 = vpop.f32.mrf.mxu0
        %v2465 = vadd.f32 0.0, %v2464
        %v2466 = vpop.f32.mrf.mxu0
        %v2467 = vadd.f32 0.0, %v2466
        %v2468 = vpop.f32.mrf.mxu0
        %v2469 = vadd.f32 0.0, %v2468
        %v2470 = vpop.f32.mrf.mxu0
        %v2471 = vadd.f32 0.0, %v2470
        %2472 = vmatprep.mubr.bf16.mxu0 0
        %2473 = vmatmul.mubr.bf16.gmra.mxu0 %v2368
        %v2474 = vpop.f32.mrf.mxu0
        %v2475 = vadd.f32 0.0, %v2474
        %v2476 = vpop.f32.mrf.mxu0
        %v2477 = vadd.f32 0.0, %v2476
        %v2478 = vpop.f32.mrf.mxu0
        %v2479 = vadd.f32 0.0, %v2478
        %v2480 = vpop.f32.mrf.mxu0
        %v2481 = vadd.f32 0.0, %v2480
        %2482 = vdwg.mxu0
        %v2491 = vunpack.c.l.b16 %v358
        %v2492 = vunpack.c.h.b16 %v358
        %v2493 = vunpack.c.l.b16 %v359
        %v2494 = vunpack.c.h.b16 %v359
        %v2495 = vunpack.c.l.b16 %v360
        %v2496 = vunpack.c.h.b16 %v360
        %v2497 = vunpack.c.l.b16 %v361
        %v2498 = vunpack.c.h.b16 %v361
        %v2499 = vunpack.c.l.b16 %v362
        %v2500 = vunpack.c.h.b16 %v362
        %v2501 = vunpack.c.l.b16 %v363
        %v2502 = vunpack.c.h.b16 %v363
        %v2503 = vunpack.c.l.b16 %v364
        %v2504 = vunpack.c.h.b16 %v364
        %v2505 = vunpack.c.l.b16 %v365
        %v2506 = vunpack.c.h.b16 %v365
        %v2507 = vpack.c.b16 %v2493, %v2491
        %v2508 = vpack.c.b16 %v2494, %v2492
        %v2509 = vpack.c.b16 %v2497, %v2495
        %v2510 = vpack.c.b16 %v2498, %v2496
        %v2511 = vpack.c.b16 %v2501, %v2499
        %v2512 = vpack.c.b16 %v2502, %v2500
        %v2513 = vpack.c.b16 %v2505, %v2503
        %v2514 = vpack.c.b16 %v2506, %v2504
        %v2524 = vsel %vm1421, %v1816, 0
        %v2527 = vsel %vm1421, %v1817, 0
        %v2530 = vsel %vm1421, %v1818, 0
        %v2533 = vsel %vm1421, %v1819, 0
        %v2536 = vsel %vm1421, %v1820, 0
        %v2539 = vsel %vm1421, %v1821, 0
        %v2542 = vsel %vm1421, %v1822, 0
        %v2545 = vsel %vm1421, %v1823, 0
        %2547 = vmatprep.subr.bf16.mxu0 0
        %2548 = vmatpush1.bf16.msra.mxu0 0
        %2549 = vmatprep.subr.bf16.mxu0 0
        %2550 = vmatpush1.bf16.msra.mxu0 0
        %2551 = vmatprep.subr.bf16.mxu0 0
        %2552 = vmatpush1.bf16.msra.mxu0 0
        %2553 = vmatprep.subr.bf16.mxu0 0
        %2554 = vmatpush1.bf16.msra.mxu0 0
        %2555 = vmatprep.subr.bf16.mxu0 %v2514
        %2556 = vmatpush1.bf16.msra.mxu0 %v2513
        %2557 = vmatprep.subr.bf16.mxu0 %v2512
        %2558 = vmatpush1.bf16.msra.mxu0 %v2511
        %2559 = vmatprep.subr.bf16.mxu0 %v2510
        %2560 = vmatpush1.bf16.msra.mxu0 %v2509
        %2561 = vmatprep.subr.bf16.mxu0 %v2508
        %2562 = vmatpush1.bf16.msra.mxu0 %v2507
        %2563 = vmatprep.subr.bf16.mxu0 0
        %2564 = vmatpush2.bf16.msra.mxu0 0
        %2565 = vmatprep.subr.bf16.mxu0 0
        %2566 = vmatpush2.bf16.msra.mxu0 0
        %2567 = vmatprep.subr.bf16.mxu0 0
        %2568 = vmatpush2.bf16.msra.mxu0 0
        %2569 = vmatprep.subr.bf16.mxu0 0
        %2570 = vmatpush2.bf16.msra.mxu0 0
        %2571 = vmatprep.subr.bf16.mxu0 0
        %2572 = vmatpush2.bf16.msra.mxu0 0
        %2573 = vmatprep.subr.bf16.mxu0 0
        %2574 = vmatpush2.bf16.msra.mxu0 0
        %2575 = vmatprep.subr.bf16.mxu0 0
        %2576 = vmatpush2.bf16.msra.mxu0 0
        %2577 = vmatprep.subr.bf16.mxu0 0
        %2578 = vmatpush2.bf16.msra.mxu0 0
        %2579 = vmatprep.mubr.bf16.mxu0 0
        %2580 = vmatmul.mubr.bf16.gmra.mxu0 %v2524
        %v2581 = vpop.f32.mrf.mxu0
        %v2582 = vadd.f32 %v2405, %v2581
        %v2583 = vpop.f32.mrf.mxu0
        %v2584 = vadd.f32 %v2407, %v2583
        %v2585 = vpop.f32.mrf.mxu0
        %v2586 = vadd.f32 %v2409, %v2585
        %v2587 = vpop.f32.mrf.mxu0
        %v2588 = vadd.f32 %v2411, %v2587
        %2589 = vmatprep.mubr.bf16.mxu0 0
        %2590 = vmatmul.mubr.bf16.gmra.mxu0 %v2527
        %v2591 = vpop.f32.mrf.mxu0
        %v2592 = vadd.f32 %v2415, %v2591
        %v2593 = vpop.f32.mrf.mxu0
        %v2594 = vadd.f32 %v2417, %v2593
        %v2595 = vpop.f32.mrf.mxu0
        %v2596 = vadd.f32 %v2419, %v2595
        %v2597 = vpop.f32.mrf.mxu0
        %v2598 = vadd.f32 %v2421, %v2597
        %2599 = vmatprep.mubr.bf16.mxu0 0
        %2600 = vmatmul.mubr.bf16.gmra.mxu0 %v2530
        %v2601 = vpop.f32.mrf.mxu0
        %v2602 = vadd.f32 %v2425, %v2601
        %v2603 = vpop.f32.mrf.mxu0
        %v2604 = vadd.f32 %v2427, %v2603
        %v2605 = vpop.f32.mrf.mxu0
        %v2606 = vadd.f32 %v2429, %v2605
        %v2607 = vpop.f32.mrf.mxu0
        %v2608 = vadd.f32 %v2431, %v2607
        %2609 = vmatprep.mubr.bf16.mxu0 0
        %2610 = vmatmul.mubr.bf16.gmra.mxu0 %v2533
        %v2611 = vpop.f32.mrf.mxu0
        %v2612 = vadd.f32 %v2435, %v2611
        %v2613 = vpop.f32.mrf.mxu0
        %v2614 = vadd.f32 %v2437, %v2613
        %v2615 = vpop.f32.mrf.mxu0
        %v2616 = vadd.f32 %v2439, %v2615
        %v2617 = vpop.f32.mrf.mxu0
        %v2618 = vadd.f32 %v2441, %v2617
        %2619 = vmatprep.mubr.bf16.mxu0 0
        %2620 = vmatmul.mubr.bf16.gmra.mxu0 %v2536
        %v2621 = vpop.f32.mrf.mxu0
        %v2622 = vadd.f32 %v2445, %v2621
        %v2623 = vpop.f32.mrf.mxu0
        %v2624 = vadd.f32 %v2447, %v2623
        %v2625 = vpop.f32.mrf.mxu0
        %v2626 = vadd.f32 %v2449, %v2625
        %v2627 = vpop.f32.mrf.mxu0
        %v2628 = vadd.f32 %v2451, %v2627
        %2629 = vmatprep.mubr.bf16.mxu0 0
        %2630 = vmatmul.mubr.bf16.gmra.mxu0 %v2539
        %v2631 = vpop.f32.mrf.mxu0
        %v2632 = vadd.f32 %v2455, %v2631
        %v2633 = vpop.f32.mrf.mxu0
        %v2634 = vadd.f32 %v2457, %v2633
        %v2635 = vpop.f32.mrf.mxu0
        %v2636 = vadd.f32 %v2459, %v2635
        %v2637 = vpop.f32.mrf.mxu0
        %v2638 = vadd.f32 %v2461, %v2637
        %2639 = vmatprep.mubr.bf16.mxu0 0
        %2640 = vmatmul.mubr.bf16.gmra.mxu0 %v2542
        %v2641 = vpop.f32.mrf.mxu0
        %v2642 = vadd.f32 %v2465, %v2641
        %v2643 = vpop.f32.mrf.mxu0
        %v2644 = vadd.f32 %v2467, %v2643
        %v2645 = vpop.f32.mrf.mxu0
        %v2646 = vadd.f32 %v2469, %v2645
        %v2647 = vpop.f32.mrf.mxu0
        %v2648 = vadd.f32 %v2471, %v2647
        %2649 = vmatprep.mubr.bf16.mxu0 0
        %2650 = vmatmul.mubr.bf16.gmra.mxu0 %v2545
        %v2651 = vpop.f32.mrf.mxu0
        %v2652 = vadd.f32 %v2475, %v2651
        %v2653 = vpop.f32.mrf.mxu0
        %v2654 = vadd.f32 %v2477, %v2653
        %v2655 = vpop.f32.mrf.mxu0
        %v2656 = vadd.f32 %v2479, %v2655
        %v2657 = vpop.f32.mrf.mxu0
        %v2658 = vadd.f32 %v2481, %v2657
        %2659 = vdwg.mxu0
        %v2661 = vsel %vm1421, %v1323, 0
        %v2664 = vsel %vm1421, %v1325, 0
        %v2667 = vsel %vm1421, %v1327, 0
        %v2670 = vsel %vm1421, %v1329, 0
        %v2673 = vsel %vm1421, %v1331, 0
        %v2676 = vsel %vm1421, %v1333, 0
        %v2679 = vsel %vm1421, %v1335, 0
        %v2682 = vsel %vm1421, %v1337, 0
        %v2685 = vsel %vm1421, %v1339, 0
        %v2688 = vsel %vm1421, %v1341, 0
        %v2691 = vsel %vm1421, %v1343, 0
        %v2694 = vsel %vm1421, %v1345, 0
        %v2697 = vsel %vm1421, %v1347, 0
        %v2700 = vsel %vm1421, %v1349, 0
        %v2703 = vsel %vm1421, %v1351, 0
        %v2706 = vsel %vm1421, %v1353, 0
        %2708 = vmatprep.subr.bf16.mxu0 0
        %2709 = vmatpush1.bf16.xpose.msra.mxu0 %v2706
        %2710 = vmatprep.subr.bf16.mxu0 0
        %2711 = vmatpush1.bf16.xpose.msra.mxu0 %v2703
        %2712 = vmatprep.subr.bf16.mxu0 0
        %2713 = vmatpush1.bf16.xpose.msra.mxu0 %v2700
        %2714 = vmatprep.subr.bf16.mxu0 0
        %2715 = vmatpush1.bf16.xpose.msra.mxu0 %v2697
        %2716 = vmatprep.subr.bf16.mxu0 0
        %2717 = vmatpush1.bf16.xpose.msra.mxu0 %v2694
        %2718 = vmatprep.subr.bf16.mxu0 0
        %2719 = vmatpush1.bf16.xpose.msra.mxu0 %v2691
        %2720 = vmatprep.subr.bf16.mxu0 0
        %2721 = vmatpush1.bf16.xpose.msra.mxu0 %v2688
        %2722 = vmatprep.subr.bf16.mxu0 0
        %2723 = vmatpush1.bf16.xpose.msra.mxu0 %v2685
        %2724 = vmatprep.subr.bf16.mxu0 0
        %2725 = vmatpush2.bf16.xpose.msra.mxu0 0
        %2726 = vmatprep.subr.bf16.mxu0 0
        %2727 = vmatpush2.bf16.xpose.msra.mxu0 0
        %2728 = vmatprep.subr.bf16.mxu0 0
        %2729 = vmatpush2.bf16.xpose.msra.mxu0 0
        %2730 = vmatprep.subr.bf16.mxu0 0
        %2731 = vmatpush2.bf16.xpose.msra.mxu0 0
        %2732 = vmatprep.subr.bf16.mxu0 0
        %2733 = vmatpush2.bf16.xpose.msra.mxu0 0
        %2734 = vmatprep.subr.bf16.mxu0 0
        %2735 = vmatpush2.bf16.xpose.msra.mxu0 0
        %2736 = vmatprep.subr.bf16.mxu0 0
        %2737 = vmatpush2.bf16.xpose.msra.mxu0 0
        %2738 = vmatprep.subr.bf16.mxu0 0
        %2739 = vmatpush2.bf16.xpose.msra.mxu0 0
        %2740 = vmatprep.mubr.bf16.mxu0 0
        %2741 = vmatmul.mubr.bf16.gmra.mxu0 %v2661
        %v2742 = vpop.f32.mrf.mxu0
        %v2743 = vadd.f32 %v1405, %v2742
        %v2744 = vpop.f32.mrf.mxu0
        %v2745 = vpop.f32.mrf.mxu0
        %v2746 = vadd.f32 %v1406, %v2745
        %v2747 = vpop.f32.mrf.mxu0
        %2748 = vmatprep.mubr.bf16.mxu0 0
        %2749 = vmatmul.mubr.bf16.gmra.mxu0 %v2664
        %v2750 = vpop.f32.mrf.mxu0
        %v2751 = vadd.f32 %v1407, %v2750
        %v2752 = vpop.f32.mrf.mxu0
        %v2753 = vpop.f32.mrf.mxu0
        %v2754 = vadd.f32 %v1408, %v2753
        %v2755 = vpop.f32.mrf.mxu0
        %2756 = vmatprep.mubr.bf16.mxu0 0
        %2757 = vmatmul.mubr.bf16.gmra.mxu0 %v2667
        %v2758 = vpop.f32.mrf.mxu0
        %v2759 = vadd.f32 %v1409, %v2758
        %v2760 = vpop.f32.mrf.mxu0
        %v2761 = vpop.f32.mrf.mxu0
        %v2762 = vadd.f32 %v1410, %v2761
        %v2763 = vpop.f32.mrf.mxu0
        %2764 = vmatprep.mubr.bf16.mxu0 0
        %2765 = vmatmul.mubr.bf16.gmra.mxu0 %v2670
        %v2766 = vpop.f32.mrf.mxu0
        %v2767 = vadd.f32 %v1411, %v2766
        %v2768 = vpop.f32.mrf.mxu0
        %v2769 = vpop.f32.mrf.mxu0
        %v2770 = vadd.f32 %v1412, %v2769
        %v2771 = vpop.f32.mrf.mxu0
        %2772 = vmatprep.mubr.bf16.mxu0 0
        %2773 = vmatmul.mubr.bf16.gmra.mxu0 %v2673
        %v2774 = vpop.f32.mrf.mxu0
        %v2775 = vadd.f32 %v1413, %v2774
        %v2776 = vpop.f32.mrf.mxu0
        %v2777 = vpop.f32.mrf.mxu0
        %v2778 = vadd.f32 %v1414, %v2777
        %v2779 = vpop.f32.mrf.mxu0
        %2780 = vmatprep.mubr.bf16.mxu0 0
        %2781 = vmatmul.mubr.bf16.gmra.mxu0 %v2676
        %v2782 = vpop.f32.mrf.mxu0
        %v2783 = vadd.f32 %v1415, %v2782
        %v2784 = vpop.f32.mrf.mxu0
        %v2785 = vpop.f32.mrf.mxu0
        %v2786 = vadd.f32 %v1416, %v2785
        %v2787 = vpop.f32.mrf.mxu0
        %2788 = vmatprep.mubr.bf16.mxu0 0
        %2789 = vmatmul.mubr.bf16.gmra.mxu0 %v2679
        %v2790 = vpop.f32.mrf.mxu0
        %v2791 = vadd.f32 %v1417, %v2790
        %v2792 = vpop.f32.mrf.mxu0
        %v2793 = vpop.f32.mrf.mxu0
        %v2794 = vadd.f32 %v1418, %v2793
        %v2795 = vpop.f32.mrf.mxu0
        %2796 = vmatprep.mubr.bf16.mxu0 0
        %2797 = vmatmul.mubr.bf16.gmra.mxu0 %v2682
        %v2798 = vpop.f32.mrf.mxu0
        %v2799 = vadd.f32 %v1419, %v2798
        %v2800 = vpop.f32.mrf.mxu0
        %v2801 = vpop.f32.mrf.mxu0
        %v2802 = vadd.f32 %v1420, %v2801
        %v2803 = vpop.f32.mrf.mxu0
        %2804 = vdwg.mxu0
        %2805 = vmax.xlane.f32.xlu0 %v2743
        %v2806 = vpop.xlane.xlu0 %2805
        %2807 = vmax.xlane.f32.xlu0 %v2746
        %v2808 = vpop.xlane.xlu0 %2807
        %2809 = vmax.xlane.f32.xlu0 %v2751
        %v2810 = vpop.xlane.xlu0 %2809
        %2811 = vmax.xlane.f32.xlu0 %v2754
        %v2812 = vpop.xlane.xlu0 %2811
        %2813 = vmax.xlane.f32.xlu0 %v2759
        %v2814 = vpop.xlane.xlu0 %2813
        %2815 = vmax.xlane.f32.xlu0 %v2762
        %v2816 = vpop.xlane.xlu0 %2815
        %2817 = vmax.xlane.f32.xlu0 %v2767
        %v2818 = vpop.xlane.xlu0 %2817
        %2819 = vmax.xlane.f32.xlu0 %v2770
        %v2820 = vpop.xlane.xlu0 %2819
        %2821 = vmax.xlane.f32.xlu0 %v2775
        %v2822 = vpop.xlane.xlu0 %2821
        %2823 = vmax.xlane.f32.xlu0 %v2778
        %v2824 = vpop.xlane.xlu0 %2823
        %2825 = vmax.xlane.f32.xlu0 %v2783
        %v2826 = vpop.xlane.xlu0 %2825
        %2827 = vmax.xlane.f32.xlu0 %v2786
        %v2828 = vpop.xlane.xlu0 %2827
        %2829 = vmax.xlane.f32.xlu0 %v2791
        %v2830 = vpop.xlane.xlu0 %2829
        %2831 = vmax.xlane.f32.xlu0 %v2794
        %v2832 = vpop.xlane.xlu0 %2831
        %2833 = vmax.xlane.f32.xlu0 %v2799
        %v2834 = vpop.xlane.xlu0 %2833
        %2835 = vmax.xlane.f32.xlu0 %v2802
        %v2836 = vpop.xlane.xlu0 %2835
        %v2837 = vsub.f32 %v2743, %v2806
        %v2838 = vsub.f32 %v2746, %v2808
        %v2839 = vsub.f32 %v2751, %v2810
        %v2840 = vsub.f32 %v2754, %v2812
        %v2841 = vsub.f32 %v2759, %v2814
        %v2842 = vsub.f32 %v2762, %v2816
        %v2843 = vsub.f32 %v2767, %v2818
        %v2844 = vsub.f32 %v2770, %v2820
        %v2845 = vsub.f32 %v2775, %v2822
        %v2846 = vsub.f32 %v2778, %v2824
        %v2847 = vsub.f32 %v2783, %v2826
        %v2848 = vsub.f32 %v2786, %v2828
        %v2849 = vsub.f32 %v2791, %v2830
        %v2850 = vsub.f32 %v2794, %v2832
        %v2851 = vsub.f32 %v2799, %v2834
        %v2852 = vsub.f32 %v2802, %v2836
        %v2853 = vmul.f32 %v2837, 1.442695
        %v2854 = vpow.pop %v2853
        %v2855 = vmul.f32 %v2838, 1.442695
        %v2856 = vpow.pop %v2855
        %v2857 = vmul.f32 %v2839, 1.442695
        %v2858 = vpow.pop %v2857
        %v2859 = vmul.f32 %v2840, 1.442695
        %v2860 = vpow.pop %v2859
        %v2861 = vmul.f32 %v2841, 1.442695
        %v2862 = vpow.pop %v2861
        %v2863 = vmul.f32 %v2842, 1.442695
        %v2864 = vpow.pop %v2863
        %v2865 = vmul.f32 %v2843, 1.442695
        %v2866 = vpow.pop %v2865
        %v2867 = vmul.f32 %v2844, 1.442695
        %v2868 = vpow.pop %v2867
        %v2869 = vmul.f32 %v2845, 1.442695
        %v2870 = vpow.pop %v2869
        %v2871 = vmul.f32 %v2846, 1.442695
        %v2872 = vpow.pop %v2871
        %v2873 = vmul.f32 %v2847, 1.442695
        %v2874 = vpow.pop %v2873
        %v2875 = vmul.f32 %v2848, 1.442695
        %v2876 = vpow.pop %v2875
        %v2877 = vmul.f32 %v2849, 1.442695
        %v2878 = vpow.pop %v2877
        %v2879 = vmul.f32 %v2850, 1.442695
        %v2880 = vpow.pop %v2879
        %v2881 = vmul.f32 %v2851, 1.442695
        %v2882 = vpow.pop %v2881
        %v2883 = vmul.f32 %v2852, 1.442695
        %v2884 = vpow.pop %v2883
        %2885 = vadd.xlane.f32.xlu0 %v2854
        %v2886 = vpop.xlane.xlu0 %2885
        %2887 = vadd.xlane.f32.xlu0 %v2856
        %v2888 = vpop.xlane.xlu0 %2887
        %2889 = vadd.xlane.f32.xlu0 %v2858
        %v2890 = vpop.xlane.xlu0 %2889
        %2891 = vadd.xlane.f32.xlu0 %v2860
        %v2892 = vpop.xlane.xlu0 %2891
        %2893 = vadd.xlane.f32.xlu0 %v2862
        %v2894 = vpop.xlane.xlu0 %2893
        %2895 = vadd.xlane.f32.xlu0 %v2864
        %v2896 = vpop.xlane.xlu0 %2895
        %2897 = vadd.xlane.f32.xlu0 %v2866
        %v2898 = vpop.xlane.xlu0 %2897
        %2899 = vadd.xlane.f32.xlu0 %v2868
        %v2900 = vpop.xlane.xlu0 %2899
        %2901 = vadd.xlane.f32.xlu0 %v2870
        %v2902 = vpop.xlane.xlu0 %2901
        %2903 = vadd.xlane.f32.xlu0 %v2872
        %v2904 = vpop.xlane.xlu0 %2903
        %2905 = vadd.xlane.f32.xlu0 %v2874
        %v2906 = vpop.xlane.xlu0 %2905
        %2907 = vadd.xlane.f32.xlu0 %v2876
        %v2908 = vpop.xlane.xlu0 %2907
        %2909 = vadd.xlane.f32.xlu0 %v2878
        %v2910 = vpop.xlane.xlu0 %2909
        %2911 = vadd.xlane.f32.xlu0 %v2880
        %v2912 = vpop.xlane.xlu0 %2911
        %2913 = vadd.xlane.f32.xlu0 %v2882
        %v2914 = vpop.xlane.xlu0 %2913
        %2915 = vadd.xlane.f32.xlu0 %v2884
        %v2916 = vpop.xlane.xlu0 %2915
        %v2917 = vpack.c.bf16 %v2856, %v2854
        %v2918 = vpack.c.bf16 %v2860, %v2858
        %v2919 = vpack.c.bf16 %v2864, %v2862
        %v2920 = vpack.c.bf16 %v2868, %v2866
        %v2921 = vpack.c.bf16 %v2872, %v2870
        %v2922 = vpack.c.bf16 %v2876, %v2874
        %v2923 = vpack.c.bf16 %v2880, %v2878
        %v2924 = vpack.c.bf16 %v2884, %v2882
        %2925 = vmatprep.subr.bf16.mxu0 0
        %2926 = vmatpush1.bf16.msra.mxu0 %v1369
        %2927 = vmatprep.subr.bf16.mxu0 0
        %2928 = vmatpush1.bf16.msra.mxu0 %v1367
        %2929 = vmatprep.subr.bf16.mxu0 0
        %2930 = vmatpush1.bf16.msra.mxu0 %v1365
        %2931 = vmatprep.subr.bf16.mxu0 0
        %2932 = vmatpush1.bf16.msra.mxu0 %v1363
        %2933 = vmatprep.subr.bf16.mxu0 0
        %2934 = vmatpush1.bf16.msra.mxu0 %v1361
        %2935 = vmatprep.subr.bf16.mxu0 0
        %2936 = vmatpush1.bf16.msra.mxu0 %v1359
        %2937 = vmatprep.subr.bf16.mxu0 0
        %2938 = vmatpush1.bf16.msra.mxu0 %v1357
        %2939 = vmatprep.subr.bf16.mxu0 0
        %2940 = vmatpush1.bf16.msra.mxu0 %v1355
        %2941 = vmatprep.subr.bf16.mxu0 0
        %2942 = vmatpush2.bf16.msra.mxu0 0
        %2943 = vmatprep.subr.bf16.mxu0 0
        %2944 = vmatpush2.bf16.msra.mxu0 0
        %2945 = vmatprep.subr.bf16.mxu0 0
        %2946 = vmatpush2.bf16.msra.mxu0 0
        %2947 = vmatprep.subr.bf16.mxu0 0
        %2948 = vmatpush2.bf16.msra.mxu0 0
        %2949 = vmatprep.subr.bf16.mxu0 0
        %2950 = vmatpush2.bf16.msra.mxu0 0
        %2951 = vmatprep.subr.bf16.mxu0 0
        %2952 = vmatpush2.bf16.msra.mxu0 0
        %2953 = vmatprep.subr.bf16.mxu0 0
        %2954 = vmatpush2.bf16.msra.mxu0 0
        %2955 = vmatprep.subr.bf16.mxu0 0
        %2956 = vmatpush2.bf16.msra.mxu0 0
        %2957 = vmatprep.mubr.bf16.mxu0 0
        %2958 = vmatmul.mubr.bf16.gmra.mxu0 %v2917
        %v2959 = vpop.f32.mrf.mxu0
        %v2960 = vadd.f32 0.0, %v2959
        %v2961 = vpop.f32.mrf.mxu0
        %v2962 = vpop.f32.mrf.mxu0
        %v2963 = vadd.f32 0.0, %v2962
        %v2964 = vpop.f32.mrf.mxu0
        %2965 = vmatprep.mubr.bf16.mxu0 0
        %2966 = vmatmul.mubr.bf16.gmra.mxu0 %v2918
        %v2967 = vpop.f32.mrf.mxu0
        %v2968 = vadd.f32 0.0, %v2967
        %v2969 = vpop.f32.mrf.mxu0
        %v2970 = vpop.f32.mrf.mxu0
        %v2971 = vadd.f32 0.0, %v2970
        %v2972 = vpop.f32.mrf.mxu0
        %2973 = vmatprep.mubr.bf16.mxu0 0
        %2974 = vmatmul.mubr.bf16.gmra.mxu0 %v2919
        %v2975 = vpop.f32.mrf.mxu0
        %v2976 = vadd.f32 0.0, %v2975
        %v2977 = vpop.f32.mrf.mxu0
        %v2978 = vpop.f32.mrf.mxu0
        %v2979 = vadd.f32 0.0, %v2978
        %v2980 = vpop.f32.mrf.mxu0
        %2981 = vmatprep.mubr.bf16.mxu0 0
        %2982 = vmatmul.mubr.bf16.gmra.mxu0 %v2920
        %v2983 = vpop.f32.mrf.mxu0
        %v2984 = vadd.f32 0.0, %v2983
        %v2985 = vpop.f32.mrf.mxu0
        %v2986 = vpop.f32.mrf.mxu0
        %v2987 = vadd.f32 0.0, %v2986
        %v2988 = vpop.f32.mrf.mxu0
        %2989 = vmatprep.mubr.bf16.mxu0 0
        %2990 = vmatmul.mubr.bf16.gmra.mxu0 %v2921
        %v2991 = vpop.f32.mrf.mxu0
        %v2992 = vadd.f32 0.0, %v2991
        %v2993 = vpop.f32.mrf.mxu0
        %v2994 = vpop.f32.mrf.mxu0
        %v2995 = vadd.f32 0.0, %v2994
        %v2996 = vpop.f32.mrf.mxu0
        %2997 = vmatprep.mubr.bf16.mxu0 0
        %2998 = vmatmul.mubr.bf16.gmra.mxu0 %v2922
        %v2999 = vpop.f32.mrf.mxu0
        %v3000 = vadd.f32 0.0, %v2999
        %v3001 = vpop.f32.mrf.mxu0
        %v3002 = vpop.f32.mrf.mxu0
        %v3003 = vadd.f32 0.0, %v3002
        %v3004 = vpop.f32.mrf.mxu0
        %3005 = vmatprep.mubr.bf16.mxu0 0
        %3006 = vmatmul.mubr.bf16.gmra.mxu0 %v2923
        %v3007 = vpop.f32.mrf.mxu0
        %v3008 = vadd.f32 0.0, %v3007
        %v3009 = vpop.f32.mrf.mxu0
        %v3010 = vpop.f32.mrf.mxu0
        %v3011 = vadd.f32 0.0, %v3010
        %v3012 = vpop.f32.mrf.mxu0
        %3013 = vmatprep.mubr.bf16.mxu0 0
        %3014 = vmatmul.mubr.bf16.gmra.mxu0 %v2924
        %v3015 = vpop.f32.mrf.mxu0
        %v3016 = vadd.f32 0.0, %v3015
        %v3017 = vpop.f32.mrf.mxu0
        %v3018 = vpop.f32.mrf.mxu0
        %v3019 = vadd.f32 0.0, %v3018
        %v3020 = vpop.f32.mrf.mxu0
        %3021 = vdwg.mxu0
        %v3022 = vrcp.pop %v2886
        %v3023 = vmul.f32 %v2960, %v3022
        %v3024 = vrcp.pop %v2888
        %v3025 = vmul.f32 %v2963, %v3024
        %v3026 = vrcp.pop %v2890
        %v3027 = vmul.f32 %v2968, %v3026
        %v3028 = vrcp.pop %v2892
        %v3029 = vmul.f32 %v2971, %v3028
        %v3030 = vrcp.pop %v2894
        %v3031 = vmul.f32 %v2976, %v3030
        %v3032 = vrcp.pop %v2896
        %v3033 = vmul.f32 %v2979, %v3032
        %v3034 = vrcp.pop %v2898
        %v3035 = vmul.f32 %v2984, %v3034
        %v3036 = vrcp.pop %v2900
        %v3037 = vmul.f32 %v2987, %v3036
        %v3038 = vrcp.pop %v2902
        %v3039 = vmul.f32 %v2992, %v3038
        %v3040 = vrcp.pop %v2904
        %v3041 = vmul.f32 %v2995, %v3040
        %v3042 = vrcp.pop %v2906
        %v3043 = vmul.f32 %v3000, %v3042
        %v3044 = vrcp.pop %v2908
        %v3045 = vmul.f32 %v3003, %v3044
        %v3046 = vrcp.pop %v2910
        %v3047 = vmul.f32 %v3008, %v3046
        %v3048 = vrcp.pop %v2912
        %v3049 = vmul.f32 %v3011, %v3048
        %v3050 = vrcp.pop %v2914
        %v3051 = vmul.f32 %v3016, %v3050
        %v3052 = vrcp.pop %v2916
        %v3053 = vmul.f32 %v3019, %v3052
        %v3054 = vpack.c.bf16 %v3025, %v3023
        %v3055 = vpack.c.bf16 %v3029, %v3027
        %v3056 = vpack.c.bf16 %v3033, %v3031
        %v3057 = vpack.c.bf16 %v3037, %v3035
        %v3058 = vpack.c.bf16 %v3041, %v3039
        %v3059 = vpack.c.bf16 %v3045, %v3043
        %v3060 = vpack.c.bf16 %v3049, %v3047
        %v3061 = vpack.c.bf16 %v3053, %v3051
        %v3070 = vunpack.c.l.b16 %v374
        %v3071 = vunpack.c.h.b16 %v374
        %v3072 = vunpack.c.l.b16 %v375
        %v3073 = vunpack.c.h.b16 %v375
        %v3074 = vunpack.c.l.b16 %v376
        %v3075 = vunpack.c.h.b16 %v376
        %v3076 = vunpack.c.l.b16 %v377
        %v3077 = vunpack.c.h.b16 %v377
        %v3078 = vunpack.c.l.b16 %v378
        %v3079 = vunpack.c.h.b16 %v378
        %v3080 = vunpack.c.l.b16 %v379
        %v3081 = vunpack.c.h.b16 %v379
        %v3082 = vunpack.c.l.b16 %v380
        %v3083 = vunpack.c.h.b16 %v380
        %v3084 = vunpack.c.l.b16 %v381
        %v3085 = vunpack.c.h.b16 %v381
        %v3086 = vpack.c.b16 %v3072, %v3070
        %v3087 = vpack.c.b16 %v3073, %v3071
        %v3088 = vpack.c.b16 %v3076, %v3074
        %v3089 = vpack.c.b16 %v3077, %v3075
        %v3090 = vpack.c.b16 %v3080, %v3078
        %v3091 = vpack.c.b16 %v3081, %v3079
        %v3092 = vpack.c.b16 %v3084, %v3082
        %v3093 = vpack.c.b16 %v3085, %v3083
        %v3103 = vsel %vm1421, %v3054, 0
        %v3106 = vsel %vm1421, %v3055, 0
        %v3109 = vsel %vm1421, %v3056, 0
        %v3112 = vsel %vm1421, %v3057, 0
        %v3115 = vsel %vm1421, %v3058, 0
        %v3118 = vsel %vm1421, %v3059, 0
        %v3121 = vsel %vm1421, %v3060, 0
        %v3124 = vsel %vm1421, %v3061, 0
        %3126 = vmatprep.subr.bf16.mxu0 0
        %3127 = vmatpush1.bf16.msra.mxu0 0
        %3128 = vmatprep.subr.bf16.mxu0 0
        %3129 = vmatpush1.bf16.msra.mxu0 0
        %3130 = vmatprep.subr.bf16.mxu0 0
        %3131 = vmatpush1.bf16.msra.mxu0 0
        %3132 = vmatprep.subr.bf16.mxu0 0
        %3133 = vmatpush1.bf16.msra.mxu0 0
        %3134 = vmatprep.subr.bf16.mxu0 %v3093
        %3135 = vmatpush1.bf16.msra.mxu0 %v3092
        %3136 = vmatprep.subr.bf16.mxu0 %v3091
        %3137 = vmatpush1.bf16.msra.mxu0 %v3090
        %3138 = vmatprep.subr.bf16.mxu0 %v3089
        %3139 = vmatpush1.bf16.msra.mxu0 %v3088
        %3140 = vmatprep.subr.bf16.mxu0 %v3087
        %3141 = vmatpush1.bf16.msra.mxu0 %v3086
        %3142 = vmatprep.subr.bf16.mxu0 0
        %3143 = vmatpush2.bf16.msra.mxu0 0
        %3144 = vmatprep.subr.bf16.mxu0 0
        %3145 = vmatpush2.bf16.msra.mxu0 0
        %3146 = vmatprep.subr.bf16.mxu0 0
        %3147 = vmatpush2.bf16.msra.mxu0 0
        %3148 = vmatprep.subr.bf16.mxu0 0
        %3149 = vmatpush2.bf16.msra.mxu0 0
        %3150 = vmatprep.subr.bf16.mxu0 0
        %3151 = vmatpush2.bf16.msra.mxu0 0
        %3152 = vmatprep.subr.bf16.mxu0 0
        %3153 = vmatpush2.bf16.msra.mxu0 0
        %3154 = vmatprep.subr.bf16.mxu0 0
        %3155 = vmatpush2.bf16.msra.mxu0 0
        %3156 = vmatprep.subr.bf16.mxu0 0
        %3157 = vmatpush2.bf16.msra.mxu0 0
        %3158 = vmatprep.mubr.bf16.mxu0 0
        %3159 = vmatmul.mubr.bf16.gmra.mxu0 %v3103
        %v3160 = vpop.f32.mrf.mxu0
        %v3161 = vadd.f32 0.0, %v3160
        %v3162 = vpop.f32.mrf.mxu0
        %v3163 = vadd.f32 0.0, %v3162
        %v3164 = vpop.f32.mrf.mxu0
        %v3165 = vadd.f32 0.0, %v3164
        %v3166 = vpop.f32.mrf.mxu0
        %v3167 = vadd.f32 0.0, %v3166
        %3168 = vmatprep.mubr.bf16.mxu0 0
        %3169 = vmatmul.mubr.bf16.gmra.mxu0 %v3106
        %v3170 = vpop.f32.mrf.mxu0
        %v3171 = vadd.f32 0.0, %v3170
        %v3172 = vpop.f32.mrf.mxu0
        %v3173 = vadd.f32 0.0, %v3172
        %v3174 = vpop.f32.mrf.mxu0
        %v3175 = vadd.f32 0.0, %v3174
        %v3176 = vpop.f32.mrf.mxu0
        %v3177 = vadd.f32 0.0, %v3176
        %3178 = vmatprep.mubr.bf16.mxu0 0
        %3179 = vmatmul.mubr.bf16.gmra.mxu0 %v3109
        %v3180 = vpop.f32.mrf.mxu0
        %v3181 = vadd.f32 0.0, %v3180
        %v3182 = vpop.f32.mrf.mxu0
        %v3183 = vadd.f32 0.0, %v3182
        %v3184 = vpop.f32.mrf.mxu0
        %v3185 = vadd.f32 0.0, %v3184
        %v3186 = vpop.f32.mrf.mxu0
        %v3187 = vadd.f32 0.0, %v3186
        %3188 = vmatprep.mubr.bf16.mxu0 0
        %3189 = vmatmul.mubr.bf16.gmra.mxu0 %v3112
        %v3190 = vpop.f32.mrf.mxu0
        %v3191 = vadd.f32 0.0, %v3190
        %v3192 = vpop.f32.mrf.mxu0
        %v3193 = vadd.f32 0.0, %v3192
        %v3194 = vpop.f32.mrf.mxu0
        %v3195 = vadd.f32 0.0, %v3194
        %v3196 = vpop.f32.mrf.mxu0
        %v3197 = vadd.f32 0.0, %v3196
        %3198 = vmatprep.mubr.bf16.mxu0 0
        %3199 = vmatmul.mubr.bf16.gmra.mxu0 %v3115
        %v3200 = vpop.f32.mrf.mxu0
        %v3201 = vadd.f32 0.0, %v3200
        %v3202 = vpop.f32.mrf.mxu0
        %v3203 = vadd.f32 0.0, %v3202
        %v3204 = vpop.f32.mrf.mxu0
        %v3205 = vadd.f32 0.0, %v3204
        %v3206 = vpop.f32.mrf.mxu0
        %v3207 = vadd.f32 0.0, %v3206
        %3208 = vmatprep.mubr.bf16.mxu0 0
        %3209 = vmatmul.mubr.bf16.gmra.mxu0 %v3118
        %v3210 = vpop.f32.mrf.mxu0
        %v3211 = vadd.f32 0.0, %v3210
        %v3212 = vpop.f32.mrf.mxu0
        %v3213 = vadd.f32 0.0, %v3212
        %v3214 = vpop.f32.mrf.mxu0
        %v3215 = vadd.f32 0.0, %v3214
        %v3216 = vpop.f32.mrf.mxu0
        %v3217 = vadd.f32 0.0, %v3216
        %3218 = vmatprep.mubr.bf16.mxu0 0
        %3219 = vmatmul.mubr.bf16.gmra.mxu0 %v3121
        %v3220 = vpop.f32.mrf.mxu0
        %v3221 = vadd.f32 0.0, %v3220
        %v3222 = vpop.f32.mrf.mxu0
        %v3223 = vadd.f32 0.0, %v3222
        %v3224 = vpop.f32.mrf.mxu0
        %v3225 = vadd.f32 0.0, %v3224
        %v3226 = vpop.f32.mrf.mxu0
        %v3227 = vadd.f32 0.0, %v3226
        %3228 = vmatprep.mubr.bf16.mxu0 0
        %3229 = vmatmul.mubr.bf16.gmra.mxu0 %v3124
        %v3230 = vpop.f32.mrf.mxu0
        %v3231 = vadd.f32 0.0, %v3230
        %v3232 = vpop.f32.mrf.mxu0
        %v3233 = vadd.f32 0.0, %v3232
        %v3234 = vpop.f32.mrf.mxu0
        %v3235 = vadd.f32 0.0, %v3234
        %v3236 = vpop.f32.mrf.mxu0
        %v3237 = vadd.f32 0.0, %v3236
        %3238 = vdwg.mxu0
        %v3239 = vadd.f32 %v2582, %v3161
        %v3240 = vadd.f32 %v2584, %v3163
        %v3241 = vadd.f32 %v2586, %v3165
        %v3242 = vadd.f32 %v2588, %v3167
        %v3243 = vadd.f32 %v2592, %v3171
        %v3244 = vadd.f32 %v2594, %v3173
        %v3245 = vadd.f32 %v2596, %v3175
        %v3246 = vadd.f32 %v2598, %v3177
        %v3247 = vadd.f32 %v2602, %v3181
        %v3248 = vadd.f32 %v2604, %v3183
        %v3249 = vadd.f32 %v2606, %v3185
        %v3250 = vadd.f32 %v2608, %v3187
        %v3251 = vadd.f32 %v2612, %v3191
        %v3252 = vadd.f32 %v2614, %v3193
        %v3253 = vadd.f32 %v2616, %v3195
        %v3254 = vadd.f32 %v2618, %v3197
        %v3255 = vadd.f32 %v2622, %v3201
        %v3256 = vadd.f32 %v2624, %v3203
        %v3257 = vadd.f32 %v2626, %v3205
        %v3258 = vadd.f32 %v2628, %v3207
        %v3259 = vadd.f32 %v2632, %v3211
        %v3260 = vadd.f32 %v2634, %v3213
        %v3261 = vadd.f32 %v2636, %v3215
        %v3262 = vadd.f32 %v2638, %v3217
        %v3263 = vadd.f32 %v2642, %v3221
        %v3264 = vadd.f32 %v2644, %v3223
        %v3265 = vadd.f32 %v2646, %v3225
        %v3266 = vadd.f32 %v2648, %v3227
        %v3267 = vadd.f32 %v2652, %v3231
        %v3268 = vadd.f32 %v2654, %v3233
        %v3269 = vadd.f32 %v2656, %v3235
        %v3270 = vadd.f32 %v2658, %v3237
        %3279 = vrot.lane.b32.xlu0 %v1323, 64
        %v3280 = vpop.permute.xlu0 %3279
        %3281 = vrot.lane.b32.xlu0 %v1325, 64
        %v3282 = vpop.permute.xlu0 %3281
        %3283 = vrot.lane.b32.xlu0 %v1327, 64
        %v3284 = vpop.permute.xlu0 %3283
        %3285 = vrot.lane.b32.xlu0 %v1329, 64
        %v3286 = vpop.permute.xlu0 %3285
        %3287 = vrot.lane.b32.xlu0 %v1331, 64
        %v3288 = vpop.permute.xlu0 %3287
        %3289 = vrot.lane.b32.xlu0 %v1333, 64
        %v3290 = vpop.permute.xlu0 %3289
        %3291 = vrot.lane.b32.xlu0 %v1335, 64
        %v3292 = vpop.permute.xlu0 %3291
        %3293 = vrot.lane.b32.xlu0 %v1337, 64
        %v3294 = vpop.permute.xlu0 %3293
        %3303 = vrot.lane.b32.xlu0 %v1339, 64
        %v3304 = vpop.permute.xlu0 %3303
        %3305 = vrot.lane.b32.xlu0 %v1341, 64
        %v3306 = vpop.permute.xlu0 %3305
        %3307 = vrot.lane.b32.xlu0 %v1343, 64
        %v3308 = vpop.permute.xlu0 %3307
        %3309 = vrot.lane.b32.xlu0 %v1345, 64
        %v3310 = vpop.permute.xlu0 %3309
        %3311 = vrot.lane.b32.xlu0 %v1347, 64
        %v3312 = vpop.permute.xlu0 %3311
        %3313 = vrot.lane.b32.xlu0 %v1349, 64
        %v3314 = vpop.permute.xlu0 %3313
        %3315 = vrot.lane.b32.xlu0 %v1351, 64
        %v3316 = vpop.permute.xlu0 %3315
        %3317 = vrot.lane.b32.xlu0 %v1353, 64
        %v3318 = vpop.permute.xlu0 %3317
        %v3320 = vsel %vm1421, %v3280, 0
        %v3323 = vsel %vm1421, %v3282, 0
        %v3326 = vsel %vm1421, %v3284, 0
        %v3329 = vsel %vm1421, %v3286, 0
        %v3332 = vsel %vm1421, %v3288, 0
        %v3335 = vsel %vm1421, %v3290, 0
        %v3338 = vsel %vm1421, %v3292, 0
        %v3341 = vsel %vm1421, %v3294, 0
        %v3344 = vsel %vm1421, %v3304, 0
        %v3347 = vsel %vm1421, %v3306, 0
        %v3350 = vsel %vm1421, %v3308, 0
        %v3353 = vsel %vm1421, %v3310, 0
        %v3356 = vsel %vm1421, %v3312, 0
        %v3359 = vsel %vm1421, %v3314, 0
        %v3362 = vsel %vm1421, %v3316, 0
        %v3365 = vsel %vm1421, %v3318, 0
        %3367 = vmatprep.subr.bf16.mxu0 0
        %3368 = vmatpush1.bf16.xpose.msra.mxu0 %v3365
        %3369 = vmatprep.subr.bf16.mxu0 0
        %3370 = vmatpush1.bf16.xpose.msra.mxu0 %v3362
        %3371 = vmatprep.subr.bf16.mxu0 0
        %3372 = vmatpush1.bf16.xpose.msra.mxu0 %v3359
        %3373 = vmatprep.subr.bf16.mxu0 0
        %3374 = vmatpush1.bf16.xpose.msra.mxu0 %v3356
        %3375 = vmatprep.subr.bf16.mxu0 0
        %3376 = vmatpush1.bf16.xpose.msra.mxu0 %v3353
        %3377 = vmatprep.subr.bf16.mxu0 0
        %3378 = vmatpush1.bf16.xpose.msra.mxu0 %v3350
        %3379 = vmatprep.subr.bf16.mxu0 0
        %3380 = vmatpush1.bf16.xpose.msra.mxu0 %v3347
        %3381 = vmatprep.subr.bf16.mxu0 0
        %3382 = vmatpush1.bf16.xpose.msra.mxu0 %v3344
        %3383 = vmatprep.subr.bf16.mxu0 0
        %3384 = vmatpush2.bf16.xpose.msra.mxu0 0
        %3385 = vmatprep.subr.bf16.mxu0 0
        %3386 = vmatpush2.bf16.xpose.msra.mxu0 0
        %3387 = vmatprep.subr.bf16.mxu0 0
        %3388 = vmatpush2.bf16.xpose.msra.mxu0 0
        %3389 = vmatprep.subr.bf16.mxu0 0
        %3390 = vmatpush2.bf16.xpose.msra.mxu0 0
        %3391 = vmatprep.subr.bf16.mxu0 0
        %3392 = vmatpush2.bf16.xpose.msra.mxu0 0
        %3393 = vmatprep.subr.bf16.mxu0 0
        %3394 = vmatpush2.bf16.xpose.msra.mxu0 0
        %3395 = vmatprep.subr.bf16.mxu0 0
        %3396 = vmatpush2.bf16.xpose.msra.mxu0 0
        %3397 = vmatprep.subr.bf16.mxu0 0
        %3398 = vmatpush2.bf16.xpose.msra.mxu0 0
        %3399 = vmatprep.mubr.bf16.mxu0 0
        %3400 = vmatmul.mubr.bf16.gmra.mxu0 %v3320
        %v3401 = vpop.f32.mrf.mxu0
        %v3402 = vadd.f32 %v1405, %v3401
        %v3403 = vpop.f32.mrf.mxu0
        %v3404 = vpop.f32.mrf.mxu0
        %v3405 = vadd.f32 %v1406, %v3404
        %v3406 = vpop.f32.mrf.mxu0
        %3407 = vmatprep.mubr.bf16.mxu0 0
        %3408 = vmatmul.mubr.bf16.gmra.mxu0 %v3323
        %v3409 = vpop.f32.mrf.mxu0
        %v3410 = vadd.f32 %v1407, %v3409
        %v3411 = vpop.f32.mrf.mxu0
        %v3412 = vpop.f32.mrf.mxu0
        %v3413 = vadd.f32 %v1408, %v3412
        %v3414 = vpop.f32.mrf.mxu0
        %3415 = vmatprep.mubr.bf16.mxu0 0
        %3416 = vmatmul.mubr.bf16.gmra.mxu0 %v3326
        %v3417 = vpop.f32.mrf.mxu0
        %v3418 = vadd.f32 %v1409, %v3417
        %v3419 = vpop.f32.mrf.mxu0
        %v3420 = vpop.f32.mrf.mxu0
        %v3421 = vadd.f32 %v1410, %v3420
        %v3422 = vpop.f32.mrf.mxu0
        %3423 = vmatprep.mubr.bf16.mxu0 0
        %3424 = vmatmul.mubr.bf16.gmra.mxu0 %v3329
        %v3425 = vpop.f32.mrf.mxu0
        %v3426 = vadd.f32 %v1411, %v3425
        %v3427 = vpop.f32.mrf.mxu0
        %v3428 = vpop.f32.mrf.mxu0
        %v3429 = vadd.f32 %v1412, %v3428
        %v3430 = vpop.f32.mrf.mxu0
        %3431 = vmatprep.mubr.bf16.mxu0 0
        %3432 = vmatmul.mubr.bf16.gmra.mxu0 %v3332
        %v3433 = vpop.f32.mrf.mxu0
        %v3434 = vadd.f32 %v1413, %v3433
        %v3435 = vpop.f32.mrf.mxu0
        %v3436 = vpop.f32.mrf.mxu0
        %v3437 = vadd.f32 %v1414, %v3436
        %v3438 = vpop.f32.mrf.mxu0
        %3439 = vmatprep.mubr.bf16.mxu0 0
        %3440 = vmatmul.mubr.bf16.gmra.mxu0 %v3335
        %v3441 = vpop.f32.mrf.mxu0
        %v3442 = vadd.f32 %v1415, %v3441
        %v3443 = vpop.f32.mrf.mxu0
        %v3444 = vpop.f32.mrf.mxu0
        %v3445 = vadd.f32 %v1416, %v3444
        %v3446 = vpop.f32.mrf.mxu0
        %3447 = vmatprep.mubr.bf16.mxu0 0
        %3448 = vmatmul.mubr.bf16.gmra.mxu0 %v3338
        %v3449 = vpop.f32.mrf.mxu0
        %v3450 = vadd.f32 %v1417, %v3449
        %v3451 = vpop.f32.mrf.mxu0
        %v3452 = vpop.f32.mrf.mxu0
        %v3453 = vadd.f32 %v1418, %v3452
        %v3454 = vpop.f32.mrf.mxu0
        %3455 = vmatprep.mubr.bf16.mxu0 0
        %3456 = vmatmul.mubr.bf16.gmra.mxu0 %v3341
        %v3457 = vpop.f32.mrf.mxu0
        %v3458 = vadd.f32 %v1419, %v3457
        %v3459 = vpop.f32.mrf.mxu0
        %v3460 = vpop.f32.mrf.mxu0
        %v3461 = vadd.f32 %v1420, %v3460
        %v3462 = vpop.f32.mrf.mxu0
        %3463 = vdwg.mxu0
        %3464 = vmax.xlane.f32.xlu0 %v3402
        %v3465 = vpop.xlane.xlu0 %3464
        %3466 = vmax.xlane.f32.xlu0 %v3405
        %v3467 = vpop.xlane.xlu0 %3466
        %3468 = vmax.xlane.f32.xlu0 %v3410
        %v3469 = vpop.xlane.xlu0 %3468
        %3470 = vmax.xlane.f32.xlu0 %v3413
        %v3471 = vpop.xlane.xlu0 %3470
        %3472 = vmax.xlane.f32.xlu0 %v3418
        %v3473 = vpop.xlane.xlu0 %3472
        %3474 = vmax.xlane.f32.xlu0 %v3421
        %v3475 = vpop.xlane.xlu0 %3474
        %3476 = vmax.xlane.f32.xlu0 %v3426
        %v3477 = vpop.xlane.xlu0 %3476
        %3478 = vmax.xlane.f32.xlu0 %v3429
        %v3479 = vpop.xlane.xlu0 %3478
        %3480 = vmax.xlane.f32.xlu0 %v3434
        %v3481 = vpop.xlane.xlu0 %3480
        %3482 = vmax.xlane.f32.xlu0 %v3437
        %v3483 = vpop.xlane.xlu0 %3482
        %3484 = vmax.xlane.f32.xlu0 %v3442
        %v3485 = vpop.xlane.xlu0 %3484
        %3486 = vmax.xlane.f32.xlu0 %v3445
        %v3487 = vpop.xlane.xlu0 %3486
        %3488 = vmax.xlane.f32.xlu0 %v3450
        %v3489 = vpop.xlane.xlu0 %3488
        %3490 = vmax.xlane.f32.xlu0 %v3453
        %v3491 = vpop.xlane.xlu0 %3490
        %3492 = vmax.xlane.f32.xlu0 %v3458
        %v3493 = vpop.xlane.xlu0 %3492
        %3494 = vmax.xlane.f32.xlu0 %v3461
        %v3495 = vpop.xlane.xlu0 %3494
        %v3496 = vsub.f32 %v3402, %v3465
        %v3497 = vsub.f32 %v3405, %v3467
        %v3498 = vsub.f32 %v3410, %v3469
        %v3499 = vsub.f32 %v3413, %v3471
        %v3500 = vsub.f32 %v3418, %v3473
        %v3501 = vsub.f32 %v3421, %v3475
        %v3502 = vsub.f32 %v3426, %v3477
        %v3503 = vsub.f32 %v3429, %v3479
        %v3504 = vsub.f32 %v3434, %v3481
        %v3505 = vsub.f32 %v3437, %v3483
        %v3506 = vsub.f32 %v3442, %v3485
        %v3507 = vsub.f32 %v3445, %v3487
        %v3508 = vsub.f32 %v3450, %v3489
        %v3509 = vsub.f32 %v3453, %v3491
        %v3510 = vsub.f32 %v3458, %v3493
        %v3511 = vsub.f32 %v3461, %v3495
        %v3512 = vmul.f32 %v3496, 1.442695
        %v3513 = vpow.pop %v3512
        %v3514 = vmul.f32 %v3497, 1.442695
        %v3515 = vpow.pop %v3514
        %v3516 = vmul.f32 %v3498, 1.442695
        %v3517 = vpow.pop %v3516
        %v3518 = vmul.f32 %v3499, 1.442695
        %v3519 = vpow.pop %v3518
        %v3520 = vmul.f32 %v3500, 1.442695
        %v3521 = vpow.pop %v3520
        %v3522 = vmul.f32 %v3501, 1.442695
        %v3523 = vpow.pop %v3522
        %v3524 = vmul.f32 %v3502, 1.442695
        %v3525 = vpow.pop %v3524
        %v3526 = vmul.f32 %v3503, 1.442695
        %v3527 = vpow.pop %v3526
        %v3528 = vmul.f32 %v3504, 1.442695
        %v3529 = vpow.pop %v3528
        %v3530 = vmul.f32 %v3505, 1.442695
        %v3531 = vpow.pop %v3530
        %v3532 = vmul.f32 %v3506, 1.442695
        %v3533 = vpow.pop %v3532
        %v3534 = vmul.f32 %v3507, 1.442695
        %v3535 = vpow.pop %v3534
        %v3536 = vmul.f32 %v3508, 1.442695
        %v3537 = vpow.pop %v3536
        %v3538 = vmul.f32 %v3509, 1.442695
        %v3539 = vpow.pop %v3538
        %v3540 = vmul.f32 %v3510, 1.442695
        %v3541 = vpow.pop %v3540
        %v3542 = vmul.f32 %v3511, 1.442695
        %v3543 = vpow.pop %v3542
        %3544 = vadd.xlane.f32.xlu0 %v3513
        %v3545 = vpop.xlane.xlu0 %3544
        %3546 = vadd.xlane.f32.xlu0 %v3515
        %v3547 = vpop.xlane.xlu0 %3546
        %3548 = vadd.xlane.f32.xlu0 %v3517
        %v3549 = vpop.xlane.xlu0 %3548
        %3550 = vadd.xlane.f32.xlu0 %v3519
        %v3551 = vpop.xlane.xlu0 %3550
        %3552 = vadd.xlane.f32.xlu0 %v3521
        %v3553 = vpop.xlane.xlu0 %3552
        %3554 = vadd.xlane.f32.xlu0 %v3523
        %v3555 = vpop.xlane.xlu0 %3554
        %3556 = vadd.xlane.f32.xlu0 %v3525
        %v3557 = vpop.xlane.xlu0 %3556
        %3558 = vadd.xlane.f32.xlu0 %v3527
        %v3559 = vpop.xlane.xlu0 %3558
        %3560 = vadd.xlane.f32.xlu0 %v3529
        %v3561 = vpop.xlane.xlu0 %3560
        %3562 = vadd.xlane.f32.xlu0 %v3531
        %v3563 = vpop.xlane.xlu0 %3562
        %3564 = vadd.xlane.f32.xlu0 %v3533
        %v3565 = vpop.xlane.xlu0 %3564
        %3566 = vadd.xlane.f32.xlu0 %v3535
        %v3567 = vpop.xlane.xlu0 %3566
        %3568 = vadd.xlane.f32.xlu0 %v3537
        %v3569 = vpop.xlane.xlu0 %3568
        %3570 = vadd.xlane.f32.xlu0 %v3539
        %v3571 = vpop.xlane.xlu0 %3570
        %3572 = vadd.xlane.f32.xlu0 %v3541
        %v3573 = vpop.xlane.xlu0 %3572
        %3574 = vadd.xlane.f32.xlu0 %v3543
        %v3575 = vpop.xlane.xlu0 %3574
        %v3576 = vpack.c.bf16 %v3515, %v3513
        %v3577 = vpack.c.bf16 %v3519, %v3517
        %v3578 = vpack.c.bf16 %v3523, %v3521
        %v3579 = vpack.c.bf16 %v3527, %v3525
        %v3580 = vpack.c.bf16 %v3531, %v3529
        %v3581 = vpack.c.bf16 %v3535, %v3533
        %v3582 = vpack.c.bf16 %v3539, %v3537
        %v3583 = vpack.c.bf16 %v3543, %v3541
        %3592 = vrot.lane.b32.xlu0 %v1355, 64
        %v3593 = vpop.permute.xlu0 %3592
        %3594 = vrot.lane.b32.xlu0 %v1357, 64
        %v3595 = vpop.permute.xlu0 %3594
        %3596 = vrot.lane.b32.xlu0 %v1359, 64
        %v3597 = vpop.permute.xlu0 %3596
        %3598 = vrot.lane.b32.xlu0 %v1361, 64
        %v3599 = vpop.permute.xlu0 %3598
        %3600 = vrot.lane.b32.xlu0 %v1363, 64
        %v3601 = vpop.permute.xlu0 %3600
        %3602 = vrot.lane.b32.xlu0 %v1365, 64
        %v3603 = vpop.permute.xlu0 %3602
        %3604 = vrot.lane.b32.xlu0 %v1367, 64
        %v3605 = vpop.permute.xlu0 %3604
        %3606 = vrot.lane.b32.xlu0 %v1369, 64
        %v3607 = vpop.permute.xlu0 %3606
        %3616 = vmatprep.subr.bf16.mxu0 0
        %3617 = vmatpush1.bf16.msra.mxu0 %v3607
        %3618 = vmatprep.subr.bf16.mxu0 0
        %3619 = vmatpush1.bf16.msra.mxu0 %v3605
        %3620 = vmatprep.subr.bf16.mxu0 0
        %3621 = vmatpush1.bf16.msra.mxu0 %v3603
        %3622 = vmatprep.subr.bf16.mxu0 0
        %3623 = vmatpush1.bf16.msra.mxu0 %v3601
        %3624 = vmatprep.subr.bf16.mxu0 0
        %3625 = vmatpush1.bf16.msra.mxu0 %v3599
        %3626 = vmatprep.subr.bf16.mxu0 0
        %3627 = vmatpush1.bf16.msra.mxu0 %v3597
        %3628 = vmatprep.subr.bf16.mxu0 0
        %3629 = vmatpush1.bf16.msra.mxu0 %v3595
        %3630 = vmatprep.subr.bf16.mxu0 0
        %3631 = vmatpush1.bf16.msra.mxu0 %v3593
        %3632 = vmatprep.subr.bf16.mxu0 0
        %3633 = vmatpush2.bf16.msra.mxu0 0
        %3634 = vmatprep.subr.bf16.mxu0 0
        %3635 = vmatpush2.bf16.msra.mxu0 0
        %3636 = vmatprep.subr.bf16.mxu0 0
        %3637 = vmatpush2.bf16.msra.mxu0 0
        %3638 = vmatprep.subr.bf16.mxu0 0
        %3639 = vmatpush2.bf16.msra.mxu0 0
        %3640 = vmatprep.subr.bf16.mxu0 0
        %3641 = vmatpush2.bf16.msra.mxu0 0
        %3642 = vmatprep.subr.bf16.mxu0 0
        %3643 = vmatpush2.bf16.msra.mxu0 0
        %3644 = vmatprep.subr.bf16.mxu0 0
        %3645 = vmatpush2.bf16.msra.mxu0 0
        %3646 = vmatprep.subr.bf16.mxu0 0
        %3647 = vmatpush2.bf16.msra.mxu0 0
        %3648 = vmatprep.mubr.bf16.mxu0 0
        %3649 = vmatmul.mubr.bf16.gmra.mxu0 %v3576
        %v3650 = vpop.f32.mrf.mxu0
        %v3651 = vadd.f32 0.0, %v3650
        %v3652 = vpop.f32.mrf.mxu0
        %v3653 = vpop.f32.mrf.mxu0
        %v3654 = vadd.f32 0.0, %v3653
        %v3655 = vpop.f32.mrf.mxu0
        %3656 = vmatprep.mubr.bf16.mxu0 0
        %3657 = vmatmul.mubr.bf16.gmra.mxu0 %v3577
        %v3658 = vpop.f32.mrf.mxu0
        %v3659 = vadd.f32 0.0, %v3658
        %v3660 = vpop.f32.mrf.mxu0
        %v3661 = vpop.f32.mrf.mxu0
        %v3662 = vadd.f32 0.0, %v3661
        %v3663 = vpop.f32.mrf.mxu0
        %3664 = vmatprep.mubr.bf16.mxu0 0
        %3665 = vmatmul.mubr.bf16.gmra.mxu0 %v3578
        %v3666 = vpop.f32.mrf.mxu0
        %v3667 = vadd.f32 0.0, %v3666
        %v3668 = vpop.f32.mrf.mxu0
        %v3669 = vpop.f32.mrf.mxu0
        %v3670 = vadd.f32 0.0, %v3669
        %v3671 = vpop.f32.mrf.mxu0
        %3672 = vmatprep.mubr.bf16.mxu0 0
        %3673 = vmatmul.mubr.bf16.gmra.mxu0 %v3579
        %v3674 = vpop.f32.mrf.mxu0
        %v3675 = vadd.f32 0.0, %v3674
        %v3676 = vpop.f32.mrf.mxu0
        %v3677 = vpop.f32.mrf.mxu0
        %v3678 = vadd.f32 0.0, %v3677
        %v3679 = vpop.f32.mrf.mxu0
        %3680 = vmatprep.mubr.bf16.mxu0 0
        %3681 = vmatmul.mubr.bf16.gmra.mxu0 %v3580
        %v3682 = vpop.f32.mrf.mxu0
        %v3683 = vadd.f32 0.0, %v3682
        %v3684 = vpop.f32.mrf.mxu0
        %v3685 = vpop.f32.mrf.mxu0
        %v3686 = vadd.f32 0.0, %v3685
        %v3687 = vpop.f32.mrf.mxu0
        %3688 = vmatprep.mubr.bf16.mxu0 0
        %3689 = vmatmul.mubr.bf16.gmra.mxu0 %v3581
        %v3690 = vpop.f32.mrf.mxu0
        %v3691 = vadd.f32 0.0, %v3690
        %v3692 = vpop.f32.mrf.mxu0
        %v3693 = vpop.f32.mrf.mxu0
        %v3694 = vadd.f32 0.0, %v3693
        %v3695 = vpop.f32.mrf.mxu0
        %3696 = vmatprep.mubr.bf16.mxu0 0
        %3697 = vmatmul.mubr.bf16.gmra.mxu0 %v3582
        %v3698 = vpop.f32.mrf.mxu0
        %v3699 = vadd.f32 0.0, %v3698
        %v3700 = vpop.f32.mrf.mxu0
        %v3701 = vpop.f32.mrf.mxu0
        %v3702 = vadd.f32 0.0, %v3701
        %v3703 = vpop.f32.mrf.mxu0
        %3704 = vmatprep.mubr.bf16.mxu0 0
        %3705 = vmatmul.mubr.bf16.gmra.mxu0 %v3583
        %v3706 = vpop.f32.mrf.mxu0
        %v3707 = vadd.f32 0.0, %v3706
        %v3708 = vpop.f32.mrf.mxu0
        %v3709 = vpop.f32.mrf.mxu0
        %v3710 = vadd.f32 0.0, %v3709
        %v3711 = vpop.f32.mrf.mxu0
        %3712 = vdwg.mxu0
        %v3713 = vrcp.pop %v3545
        %v3714 = vmul.f32 %v3651, %v3713
        %v3715 = vrcp.pop %v3547
        %v3716 = vmul.f32 %v3654, %v3715
        %v3717 = vrcp.pop %v3549
        %v3718 = vmul.f32 %v3659, %v3717
        %v3719 = vrcp.pop %v3551
        %v3720 = vmul.f32 %v3662, %v3719
        %v3721 = vrcp.pop %v3553
        %v3722 = vmul.f32 %v3667, %v3721
        %v3723 = vrcp.pop %v3555
        %v3724 = vmul.f32 %v3670, %v3723
        %v3725 = vrcp.pop %v3557
        %v3726 = vmul.f32 %v3675, %v3725
        %v3727 = vrcp.pop %v3559
        %v3728 = vmul.f32 %v3678, %v3727
        %v3729 = vrcp.pop %v3561
        %v3730 = vmul.f32 %v3683, %v3729
        %v3731 = vrcp.pop %v3563
        %v3732 = vmul.f32 %v3686, %v3731
        %v3733 = vrcp.pop %v3565
        %v3734 = vmul.f32 %v3691, %v3733
        %v3735 = vrcp.pop %v3567
        %v3736 = vmul.f32 %v3694, %v3735
        %v3737 = vrcp.pop %v3569
        %v3738 = vmul.f32 %v3699, %v3737
        %v3739 = vrcp.pop %v3571
        %v3740 = vmul.f32 %v3702, %v3739
        %v3741 = vrcp.pop %v3573
        %v3742 = vmul.f32 %v3707, %v3741
        %v3743 = vrcp.pop %v3575
        %v3744 = vmul.f32 %v3710, %v3743
        %v3745 = vpack.c.bf16 %v3716, %v3714
        %v3746 = vpack.c.bf16 %v3720, %v3718
        %v3747 = vpack.c.bf16 %v3724, %v3722
        %v3748 = vpack.c.bf16 %v3728, %v3726
        %v3749 = vpack.c.bf16 %v3732, %v3730
        %v3750 = vpack.c.bf16 %v3736, %v3734
        %v3751 = vpack.c.bf16 %v3740, %v3738
        %v3752 = vpack.c.bf16 %v3744, %v3742
        %v3761 = vunpack.c.l.b16 %v382
        %v3762 = vunpack.c.h.b16 %v382
        %v3763 = vunpack.c.l.b16 %v383
        %v3764 = vunpack.c.h.b16 %v383
        %v3765 = vunpack.c.l.b16 %v384
        %v3766 = vunpack.c.h.b16 %v384
        %v3767 = vunpack.c.l.b16 %v385
        %v3768 = vunpack.c.h.b16 %v385
        %v3769 = vunpack.c.l.b16 %v386
        %v3770 = vunpack.c.h.b16 %v386
        %v3771 = vunpack.c.l.b16 %v387
        %v3772 = vunpack.c.h.b16 %v387
        %v3773 = vunpack.c.l.b16 %v388
        %v3774 = vunpack.c.h.b16 %v388
        %v3775 = vunpack.c.l.b16 %v389
        %v3776 = vunpack.c.h.b16 %v389
        %v3777 = vpack.c.b16 %v3763, %v3761
        %v3778 = vpack.c.b16 %v3764, %v3762
        %v3779 = vpack.c.b16 %v3767, %v3765
        %v3780 = vpack.c.b16 %v3768, %v3766
        %v3781 = vpack.c.b16 %v3771, %v3769
        %v3782 = vpack.c.b16 %v3772, %v3770
        %v3783 = vpack.c.b16 %v3775, %v3773
        %v3784 = vpack.c.b16 %v3776, %v3774
        %v3794 = vsel %vm1421, %v3745, 0
        %v3797 = vsel %vm1421, %v3746, 0
        %v3800 = vsel %vm1421, %v3747, 0
        %v3803 = vsel %vm1421, %v3748, 0
        %v3806 = vsel %vm1421, %v3749, 0
        %v3809 = vsel %vm1421, %v3750, 0
        %v3812 = vsel %vm1421, %v3751, 0
        %v3815 = vsel %vm1421, %v3752, 0
        %3817 = vmatprep.subr.bf16.mxu0 0
        %3818 = vmatpush1.bf16.msra.mxu0 0
        %3819 = vmatprep.subr.bf16.mxu0 0
        %3820 = vmatpush1.bf16.msra.mxu0 0
        %3821 = vmatprep.subr.bf16.mxu0 0
        %3822 = vmatpush1.bf16.msra.mxu0 0
        %3823 = vmatprep.subr.bf16.mxu0 0
        %3824 = vmatpush1.bf16.msra.mxu0 0
        %3825 = vmatprep.subr.bf16.mxu0 %v3784
        %3826 = vmatpush1.bf16.msra.mxu0 %v3783
        %3827 = vmatprep.subr.bf16.mxu0 %v3782
        %3828 = vmatpush1.bf16.msra.mxu0 %v3781
        %3829 = vmatprep.subr.bf16.mxu0 %v3780
        %3830 = vmatpush1.bf16.msra.mxu0 %v3779
        %3831 = vmatprep.subr.bf16.mxu0 %v3778
        %3832 = vmatpush1.bf16.msra.mxu0 %v3777
        %3833 = vmatprep.subr.bf16.mxu0 0
        %3834 = vmatpush2.bf16.msra.mxu0 0
        %3835 = vmatprep.subr.bf16.mxu0 0
        %3836 = vmatpush2.bf16.msra.mxu0 0
        %3837 = vmatprep.subr.bf16.mxu0 0
        %3838 = vmatpush2.bf16.msra.mxu0 0
        %3839 = vmatprep.subr.bf16.mxu0 0
        %3840 = vmatpush2.bf16.msra.mxu0 0
        %3841 = vmatprep.subr.bf16.mxu0 0
        %3842 = vmatpush2.bf16.msra.mxu0 0
        %3843 = vmatprep.subr.bf16.mxu0 0
        %3844 = vmatpush2.bf16.msra.mxu0 0
        %3845 = vmatprep.subr.bf16.mxu0 0
        %3846 = vmatpush2.bf16.msra.mxu0 0
        %3847 = vmatprep.subr.bf16.mxu0 0
        %3848 = vmatpush2.bf16.msra.mxu0 0
        %3849 = vmatprep.mubr.bf16.mxu0 0
        %3850 = vmatmul.mubr.bf16.gmra.mxu0 %v3794
        %v3851 = vpop.f32.mrf.mxu0
        %v3852 = vadd.f32 0.0, %v3851
        %v3853 = vpop.f32.mrf.mxu0
        %v3854 = vadd.f32 0.0, %v3853
        %v3855 = vpop.f32.mrf.mxu0
        %v3856 = vadd.f32 0.0, %v3855
        %v3857 = vpop.f32.mrf.mxu0
        %v3858 = vadd.f32 0.0, %v3857
        %3859 = vmatprep.mubr.bf16.mxu0 0
        %3860 = vmatmul.mubr.bf16.gmra.mxu0 %v3797
        %v3861 = vpop.f32.mrf.mxu0
        %v3862 = vadd.f32 0.0, %v3861
        %v3863 = vpop.f32.mrf.mxu0
        %v3864 = vadd.f32 0.0, %v3863
        %v3865 = vpop.f32.mrf.mxu0
        %v3866 = vadd.f32 0.0, %v3865
        %v3867 = vpop.f32.mrf.mxu0
        %v3868 = vadd.f32 0.0, %v3867
        %3869 = vmatprep.mubr.bf16.mxu0 0
        %3870 = vmatmul.mubr.bf16.gmra.mxu0 %v3800
        %v3871 = vpop.f32.mrf.mxu0
        %v3872 = vadd.f32 0.0, %v3871
        %v3873 = vpop.f32.mrf.mxu0
        %v3874 = vadd.f32 0.0, %v3873
        %v3875 = vpop.f32.mrf.mxu0
        %v3876 = vadd.f32 0.0, %v3875
        %v3877 = vpop.f32.mrf.mxu0
        %v3878 = vadd.f32 0.0, %v3877
        %3879 = vmatprep.mubr.bf16.mxu0 0
        %3880 = vmatmul.mubr.bf16.gmra.mxu0 %v3803
        %v3881 = vpop.f32.mrf.mxu0
        %v3882 = vadd.f32 0.0, %v3881
        %v3883 = vpop.f32.mrf.mxu0
        %v3884 = vadd.f32 0.0, %v3883
        %v3885 = vpop.f32.mrf.mxu0
        %v3886 = vadd.f32 0.0, %v3885
        %v3887 = vpop.f32.mrf.mxu0
        %v3888 = vadd.f32 0.0, %v3887
        %3889 = vmatprep.mubr.bf16.mxu0 0
        %3890 = vmatmul.mubr.bf16.gmra.mxu0 %v3806
        %v3891 = vpop.f32.mrf.mxu0
        %v3892 = vadd.f32 0.0, %v3891
        %v3893 = vpop.f32.mrf.mxu0
        %v3894 = vadd.f32 0.0, %v3893
        %v3895 = vpop.f32.mrf.mxu0
        %v3896 = vadd.f32 0.0, %v3895
        %v3897 = vpop.f32.mrf.mxu0
        %v3898 = vadd.f32 0.0, %v3897
        %3899 = vmatprep.mubr.bf16.mxu0 0
        %3900 = vmatmul.mubr.bf16.gmra.mxu0 %v3809
        %v3901 = vpop.f32.mrf.mxu0
        %v3902 = vadd.f32 0.0, %v3901
        %v3903 = vpop.f32.mrf.mxu0
        %v3904 = vadd.f32 0.0, %v3903
        %v3905 = vpop.f32.mrf.mxu0
        %v3906 = vadd.f32 0.0, %v3905
        %v3907 = vpop.f32.mrf.mxu0
        %v3908 = vadd.f32 0.0, %v3907
        %3909 = vmatprep.mubr.bf16.mxu0 0
        %3910 = vmatmul.mubr.bf16.gmra.mxu0 %v3812
        %v3911 = vpop.f32.mrf.mxu0
        %v3912 = vadd.f32 0.0, %v3911
        %v3913 = vpop.f32.mrf.mxu0
        %v3914 = vadd.f32 0.0, %v3913
        %v3915 = vpop.f32.mrf.mxu0
        %v3916 = vadd.f32 0.0, %v3915
        %v3917 = vpop.f32.mrf.mxu0
        %v3918 = vadd.f32 0.0, %v3917
        %3919 = vmatprep.mubr.bf16.mxu0 0
        %3920 = vmatmul.mubr.bf16.gmra.mxu0 %v3815
        %v3921 = vpop.f32.mrf.mxu0
        %v3922 = vadd.f32 0.0, %v3921
        %v3923 = vpop.f32.mrf.mxu0
        %v3924 = vadd.f32 0.0, %v3923
        %v3925 = vpop.f32.mrf.mxu0
        %v3926 = vadd.f32 0.0, %v3925
        %v3927 = vpop.f32.mrf.mxu0
        %v3928 = vadd.f32 0.0, %v3927
        %3929 = vdwg.mxu0
        %v3930 = vadd.f32 %v3239, %v3852
        %v3931 = vadd.f32 %v3240, %v3854
        %v3932 = vadd.f32 %v3241, %v3856
        %v3933 = vadd.f32 %v3242, %v3858
        %v3934 = vadd.f32 %v3243, %v3862
        %v3935 = vadd.f32 %v3244, %v3864
        %v3936 = vadd.f32 %v3245, %v3866
        %v3937 = vadd.f32 %v3246, %v3868
        %v3938 = vadd.f32 %v3247, %v3872
        %v3939 = vadd.f32 %v3248, %v3874
        %v3940 = vadd.f32 %v3249, %v3876
        %v3941 = vadd.f32 %v3250, %v3878
        %v3942 = vadd.f32 %v3251, %v3882
        %v3943 = vadd.f32 %v3252, %v3884
        %v3944 = vadd.f32 %v3253, %v3886
        %v3945 = vadd.f32 %v3254, %v3888
        %v3946 = vadd.f32 %v3255, %v3892
        %v3947 = vadd.f32 %v3256, %v3894
        %v3948 = vadd.f32 %v3257, %v3896
        %v3949 = vadd.f32 %v3258, %v3898
        %v3950 = vadd.f32 %v3259, %v3902
        %v3951 = vadd.f32 %v3260, %v3904
        %v3952 = vadd.f32 %v3261, %v3906
        %v3953 = vadd.f32 %v3262, %v3908
        %v3954 = vadd.f32 %v3263, %v3912
        %v3955 = vadd.f32 %v3264, %v3914
        %v3956 = vadd.f32 %v3265, %v3916
        %v3957 = vadd.f32 %v3266, %v3918
        %v3958 = vadd.f32 %v3267, %v3922
        %v3959 = vadd.f32 %v3268, %v3924
        %v3960 = vadd.f32 %v3269, %v3926
        %v3961 = vadd.f32 %v3270, %v3928
        %v3963 = vlaneseq
        %v3964 = vshrl.u32 %v3963, 7
        %v3965 = vsub.s32 0, %v3964
        %v3966 = vrot.slane %v390, %v3965
        %v3967 = vlaneseq
        %v3968 = vshrl.u32 %v3967, 7
        %v3969 = vsub.s32 1, %v3968
        %v3970 = vrot.slane %v390, %v3969
        %v3973 = vadd.f32 %v3930, %v3966
        %v3974 = vadd.f32 %v3931, %v3970
        %v3975 = vadd.f32 %v3932, %v3966
        %v3976 = vadd.f32 %v3933, %v3970
        %v3977 = vadd.f32 %v3934, %v3966
        %v3978 = vadd.f32 %v3935, %v3970
        %v3979 = vadd.f32 %v3936, %v3966
        %v3980 = vadd.f32 %v3937, %v3970
        %v3981 = vadd.f32 %v3938, %v3966
        %v3982 = vadd.f32 %v3939, %v3970
        %v3983 = vadd.f32 %v3940, %v3966
        %v3984 = vadd.f32 %v3941, %v3970
        %v3985 = vadd.f32 %v3942, %v3966
        %v3986 = vadd.f32 %v3943, %v3970
        %v3987 = vadd.f32 %v3944, %v3966
        %v3988 = vadd.f32 %v3945, %v3970
        %v3989 = vadd.f32 %v3946, %v3966
        %v3990 = vadd.f32 %v3947, %v3970
        %v3991 = vadd.f32 %v3948, %v3966
        %v3992 = vadd.f32 %v3949, %v3970
        %v3993 = vadd.f32 %v3950, %v3966
        %v3994 = vadd.f32 %v3951, %v3970
        %v3995 = vadd.f32 %v3952, %v3966
        %v3996 = vadd.f32 %v3953, %v3970
        %v3997 = vadd.f32 %v3954, %v3966
        %v3998 = vadd.f32 %v3955, %v3970
        %v3999 = vadd.f32 %v3956, %v3966
        %v4000 = vadd.f32 %v3957, %v3970
        %v4001 = vadd.f32 %v3958, %v3966
        %v4002 = vadd.f32 %v3959, %v3970
        %v4003 = vadd.f32 %v3960, %v3966
        %v4004 = vadd.f32 %v3961, %v3970
        %4005 = vst [vmem:[%s244] sm:$0xff] %v3973
        %4006 = vst [vmem:[%s244 + $0x8] sm:$0xff] %v3974
        %4007 = vst [vmem:[%s244 + $0x10] sm:$0xff] %v3975
        %4008 = vst [vmem:[%s244 + $0x18] sm:$0xff] %v3976
        %4009 = vst [vmem:[%s244 + $0x20] sm:$0xff] %v3977
        %4010 = vst [vmem:[%s244 + $0x28] sm:$0xff] %v3978
        %4011 = vst [vmem:[%s244 + $0x30] sm:$0xff] %v3979
        %4012 = vst [vmem:[%s244 + $0x38] sm:$0xff] %v3980
        %4013 = vst [vmem:[%s244 + $0x40] sm:$0xff] %v3981
        %4014 = vst [vmem:[%s244 + $0x48] sm:$0xff] %v3982
        %4015 = vst [vmem:[%s244 + $0x50] sm:$0xff] %v3983
        %4016 = vst [vmem:[%s244 + $0x58] sm:$0xff] %v3984
        %4017 = vst [vmem:[%s244 + $0x60] sm:$0xff] %v3985
        %4018 = vst [vmem:[%s244 + $0x68] sm:$0xff] %v3986
        %4019 = vst [vmem:[%s244 + $0x70] sm:$0xff] %v3987
        %4020 = vst [vmem:[%s244 + $0x78] sm:$0xff] %v3988
        %4021 = vst [vmem:[%s244 + $0x80] sm:$0xff] %v3989
        %4022 = vst [vmem:[%s244 + $0x88] sm:$0xff] %v3990
        %4023 = vst [vmem:[%s244 + $0x90] sm:$0xff] %v3991
        %4024 = vst [vmem:[%s244 + $0x98] sm:$0xff] %v3992
        %4025 = vst [vmem:[%s244 + $0xa0] sm:$0xff] %v3993
        %4026 = vst [vmem:[%s244 + $0xa8] sm:$0xff] %v3994
        %4027 = vst [vmem:[%s244 + $0xb0] sm:$0xff] %v3995
        %4028 = vst [vmem:[%s244 + $0xb8] sm:$0xff] %v3996
        %4029 = vst [vmem:[%s244 + $0xc0] sm:$0xff] %v3997
        %4030 = vst [vmem:[%s244 + $0xc8] sm:$0xff] %v3998
        %4031 = vst [vmem:[%s244 + $0xd0] sm:$0xff] %v3999
        %4032 = vst [vmem:[%s244 + $0xd8] sm:$0xff] %v4000
        %4033 = vst [vmem:[%s244 + $0xe0] sm:$0xff] %v4001
        %4034 = vst [vmem:[%s244 + $0xe8] sm:$0xff] %v4002
        %4035 = vst [vmem:[%s244 + $0xf0] sm:$0xff] %v4003
        %4036 = vst [vmem:[%s244 + $0xf8] sm:$0xff] %v4004
        %s4037 = sand.u32 %s119, 1
        %s4038 = scalar_lea.sflag [#allocation4], %s4037
        %s4039 = sand.u32 %s119, 1
        %s4040 = smul.addr %s4039, 256
        %s4041 = scalar_lea.vmem [#allocation8], %s4040
        // Predicated region
        $region49: #{tpu_custom_call.1} parent=35 // pred_check
          %p4042 = pneg %p129
        $region50: #{tpu_custom_call.1} parent=35 // pred_check_branch
          %4044 = sbr.rel (%p4042) target = $region52
        $region51: #{tpu_custom_call.1} parent=35 // pred_region
          %s4046 = ssub.s32 4096, 4096
          %4047 = vsyncadd %s4038, %s4046
          %s4048 = smul.addr %s22, 32
          %s4049 = smul.addr %s4048, 128
          %s4050 = scalar_lea.hbm %s4, %s4049
          %s4051 = sshll.u32 %s4041, 4
          %s4052 = int_to_ptr.vmem [resolvable:$true] %s4051
          %4057 = dma.vmem_to_hbm [thread:$0]  %s4052, 4096, %s4050, %s4038, 256, 256, 16
        $region52: #{tpu_custom_call.1} parent=35 // pred_fallthru
          _
      $region36: #{tpu_custom_call.1} parent=5 // pred_fallthru
        _
      %p4058 = scmp.le.s32.totalorder 2, %s17
      // Predicated region
      $region53: #{tpu_custom_call.1} parent=5 // pred_check
        %p4059 = pneg %p4058
      $region54: #{tpu_custom_call.1} parent=5 // pred_check_branch
        %4061 = sbr.rel (%p4059) target = $region56
      $region55: #{tpu_custom_call.1} parent=5 // pred_region
        %s4062 = ssub.s32 %s17, 2
        // Predicated region
        $region57: #{tpu_custom_call.1} parent=55 // pred_check
          %p4063 = pneg %p135
        $region58: #{tpu_custom_call.1} parent=55 // pred_check_branch
          %4065 = sbr.rel (%p4063) target = $region60
        $region59: #{tpu_custom_call.1} parent=55 // pred_region
          %s4066 = sand.u32 %s120, 1
          %s4067 = scalar_lea.sflag [#allocation4], %s4066
          %s4068 = sand.u32 %s120, 1
          %s4069 = smul.addr %s4068, 256
          %s4070 = scalar_lea.vmem [#allocation8], %s4069
          %4071 = dma.done %s4067, 4096
        $region60: #{tpu_custom_call.1} parent=55 // pred_fallthru
          _
      $region56: #{tpu_custom_call.1} parent=5 // pred_fallthru
        _
    $region6: #{tpu_custom_call.1} parent=1 // loop_footer
      %s21 = sadd.s32 1, %s17
    $region7: #{tpu_custom_call.1} parent=1 // loop_footer_branch
      %16 = sbr.rel target = $region3
    $region8: #{tpu_custom_call.1} parent=1 // loop_exit
      _
    %4072 = vsyncpa [#allocation3], 1
    %s4073 = scalar_lea.sflag [#allocation3], 1
    %4074 = vsyncpa %s4073, 1
    %4075 = vsyncpa [#allocation6], 1
    %4076 = vsyncpa [#allocation4], 1
    %s4077 = scalar_lea.sflag [#allocation4], 1
    %4078 = vsyncpa %s4077, 1

</llo_original>
